<compile_context>
chip_gen: v6e
topology: v6e:2x2x1
jax: 0.10.0
libtpu: 0.0.40
codegen_flags: <defaults>
</compile_context>

<pallas_src>
import functools

import jax
import jax.numpy as jnp
from jax import lax
from jax.experimental import pallas as pl
from jax.experimental.pallas import tpu as pltpu


_TAPS = tuple((dh, dw) for dh in range(3) for dw in range(3))


@functools.lru_cache(maxsize=None)
def _roll_config():
    """Detect pltpu.roll availability for lane-axis rolls and its sign convention.

    Returns (use_pltpu_roll, sign) such that pltpu.roll(x, s) == jnp.roll(x, sign*s).
    Falls back to jnp.roll (slice+concat lowering) if pltpu.roll cannot be used.
    """
    def k(x_ref, o_ref):
        o_ref[...] = pltpu.roll(x_ref[...], 5, axis=1)

    try:
        x = jnp.arange(8 * 384, dtype=jnp.float32).reshape(8, 384)
        y = jax.device_get(
            pl.pallas_call(k, out_shape=jax.ShapeDtypeStruct((8, 384), jnp.float32))(x))
        if (y == jax.device_get(jnp.roll(x, 5, axis=1))).all():
            return True, 1
        if (y == jax.device_get(jnp.roll(x, -5, axis=1))).all():
            return True, -1
        return False, 1
    except Exception:
        return False, 1


def _make_kernel(H, W, M, use_pltpu_roll, roll_sign):
    """Fused UNet kernel operating on channel-major (C, M) tiles, M on lanes."""

    def _shift_lanes(x, s):
        # out[..., p] = x[..., (p + s) % M]   (== jnp.roll(x, -s) semantics)
        if s % M == 0:
            return x
        if use_pltpu_roll:
            return pltpu.roll(x, (roll_sign * (-s)) % M, axis=x.ndim - 1)
        return jnp.roll(x, -s, axis=-1)

    def kernel(xm_ref, coords_ref, w1_ref, b1_ref, w2_ref, b2_ref, wt_ref, bt_ref,
               w3_ref, b3_ref, out_ref, cols_ref):
        dt = cols_ref.dtype

        # Precomputed per-pixel coordinates along the flattened (b, h, w) lane axis.
        hpos = coords_ref[0:1, :]          # (1, M) int32
        wpos = coords_ref[1:2, :]
        h_even = coords_ref[2:3, :] == 0   # (1, M) bool
        w_even = coords_ref[3:4, :] == 0

        def tap_mask(dh, dw):
            # Valid iff the source pixel (h+dh-1, w+dw-1) lies inside the image.
            conds = []
            if dh == 0:
                conds.append(hpos >= 1)
            if dh == 2:
                conds.append(hpos <= H - 2)
            if dw == 0:
                conds.append(wpos >= 1)
            if dw == 2:
                conds.append(wpos <= W - 2)
            if not conds:
                return None
            m = conds[0]
            for c in conds[1:]:
                m = jnp.logical_and(m, c)
            return m

        def shifted_tap(x, dh, dw):
            # Zero-padded 3x3 neighborhood tap: XLU roll + boundary mask (VPU select).
            t = _shift_lanes(x, (dh - 1) * W + (dw - 1))
            m = tap_mask(dh, dw)
            return t if m is None else jnp.where(m, t, 0.0)

        def conv3x3(x, w_ref, b_ref, cin):
            # x: (cin, M) f32.  Write im2col rows [t*cin, (t+1)*cin) into the shared
            # scratch (sublane-aligned stores), then one deep-K channel-major matmul
            # with M (spatial) on the MXU N / lane side.
            for t, (dh, dw) in enumerate(_TAPS):
                cols_ref[t * cin:(t + 1) * cin, :] = shifted_tap(x, dh, dw).astype(dt)
            cols = cols_ref[0:9 * cin, :]
            return jnp.dot(w_ref[...], cols,
                           preferred_element_type=jnp.float32) + b_ref[...]

        # ---- Conv2d(4->32, 3, p=1) + ReLU  (input zero-padded to 8 channels) ----
        h1 = jnp.maximum(conv3x3(xm_ref[...], w1_ref, b1_ref, 8), 0.0)      # (32, M)

        # ---- Conv2d(32->32, 3, p=1) + ReLU ---------------------------------------
        h2 = jnp.maximum(conv3x3(h1, w2_ref, b2_ref, 32), 0.0)              # (32, M)

        # ---- MaxPool2d(2,2), broadcast back to full resolution (no compaction) ---
        # pooled[:, p] = max over the 2x2 block containing pixel p.
        pmax_w = jnp.maximum(
            h2, jnp.where(w_even, _shift_lanes(h2, 1), _shift_lanes(h2, -1)))
        pooled = jnp.maximum(
            pmax_w, jnp.where(h_even, _shift_lanes(pmax_w, W), _shift_lanes(pmax_w, -W)))

        # ---- ConvTranspose2d(32->32, 2, stride=2) + ReLU --------------------------
        # One (128,32)@(32,M) matmul produces all four phases; pick per pixel parity
        # (phase k = 2*(h%2) + (w%2)), then bias + ReLU.
        y = jnp.dot(wt_ref[...], pooled.astype(dt),
                    preferred_element_type=jnp.float32)                     # (128, M)
        dec = jnp.where(h_even,
                        jnp.where(w_even, y[0:32, :], y[32:64, :]),
                        jnp.where(w_even, y[64:96, :], y[96:128, :]))
        dec = jnp.maximum(dec + bt_ref[...], 0.0)                           # (32, M)

        # ---- Conv2d(32->3, 3, p=1), lane-dense (3, M) output ----------------------
        out = conv3x3(dec, w3_ref, b3_ref, 32)                              # (3, M)
        out_ref[...] = out.astype(out_ref.dtype)

    return kernel


def simple_unet_forward(x_nchw, mask_nchw, params, *,
                        matmul_dtype=jnp.bfloat16, block_batch=None):
    """x: (N,3,H,W) f32, mask: (N,1,H,W) f32 -> (N,3,H,W) f32."""
    N, _, H, W = x_nchw.shape
    assert H % 2 == 0 and W % 2 == 0, "MaxPool2d(2,2) requires even H and W"
    HW = H * W
    dt = matmul_dtype

    # --- batch blocking: fold B_blk images into the lane axis per grid step -------
    if block_batch is None:
        lane_budget = 4096                     # keeps the im2col scratch modest
        B_blk = N                              # full-array block is always legal
        for d in range(1, N + 1):
            if N % d == 0 and d * HW <= lane_budget and (d * HW) % 128 == 0:
                B_blk = d
    else:
        B_blk = block_batch
    assert N % B_blk == 0
    M_blk = B_blk * HW
    assert M_blk % 128 == 0 or B_blk == N, (
        "per-step lane extent must be a multiple of 128 (or cover the full batch)")
    # TODO(synk): add a row-strip spatial grid axis (1-row halo) for large H*W so the
    # materialized im2col fits v7x's 64 MiB VMEM and feeds its second TensorCore.

    # --- channel-major input, zero-padded from 4 to 8 channels (zero weights) -----
    xm = jnp.concatenate(
        [x_nchw, mask_nchw, jnp.zeros((N, 4, H, W), x_nchw.dtype)], axis=1)
    xm = (xm.reshape(N, 8, HW).transpose(1, 0, 2)
            .reshape(8, N * HW).astype(jnp.float32))

    # Per-pixel coordinates / parities, precomputed outside the kernel.
    hw = jnp.arange(HW, dtype=jnp.int32)
    hpos, wpos = hw // W, hw % W
    coords = jnp.tile(jnp.stack([hpos, wpos, hpos % 2, wpos % 2], axis=0), (1, N))

    # --- matmul-ready weight layouts (row = Cout, col = tap*Cin + ci), pre-cast ---
    w1p = jnp.pad(params['w1'], ((0, 0), (0, 0), (0, 4), (0, 0)))        # (3,3,8,32)
    w1m = jnp.transpose(w1p, (3, 0, 1, 2)).reshape(32, 72).astype(dt)
    w2m = jnp.transpose(params['w2'], (3, 0, 1, 2)).reshape(32, 288).astype(dt)
    w3m = jnp.transpose(params['w3'], (3, 0, 1, 2)).reshape(3, 288).astype(dt)
    # ConvTranspose2d: rows [32k:32k+32) map pooled -> output phase k = 2*di+dj.
    wtm = jnp.transpose(params['wt'], (0, 1, 3, 2)).reshape(128, 32).astype(dt)
    b1c = params['b1'].reshape(32, 1).astype(jnp.float32)
    b2c = params['b2'].reshape(32, 1).astype(jnp.float32)
    btc = params['bt'].reshape(32, 1).astype(jnp.float32)
    b3c = params['b3'].reshape(3, 1).astype(jnp.float32)
    ordered = [w1m, b1c, w2m, b2c, wtm, btc, w3m, b3c]

    in_specs = [pl.BlockSpec((8, M_blk), lambda i: (0, i)),
                pl.BlockSpec((4, M_blk), lambda i: (0, i))]
    for arr in ordered:
        in_specs.append(pl.BlockSpec(arr.shape, lambda i, nd=arr.ndim: (0,) * nd))

    # --- VMEM budget: im2col scratch + live activations + double-buffered I/O -----
    itm = jnp.dtype(dt).itemsize
    est = (288 * M_blk * itm                 # shared im2col scratch
           + M_blk * 4 * (6 * 32 + 128)      # f32 activation temporaries
           + M_blk * (4 * 8 + 4 * 4 + 4 * 3) * 2   # double-buffered in/out blocks
           + 256 * 1024)                     # weights + slack
    vmem_limit = int(min(56 * 2 ** 20, max(32 * 2 ** 20, 2 * est)))

    use_roll, roll_sign = _roll_config()
    kernel = _make_kernel(H, W, M_blk, use_roll, roll_sign)

    out = pl.pallas_call(
        kernel,
        out_shape=jax.ShapeDtypeStruct((3, N * HW), jnp.float32),
        grid=(N // B_blk,),
        in_specs=in_specs,
        out_specs=pl.BlockSpec((3, M_blk), lambda i: (0, i)),
        scratch_shapes=[pltpu.VMEM((9 * 32, M_blk), dt)],   # shared im2col buffer
        compiler_params=pltpu.CompilerParams(
            dimension_semantics=("parallel",),
            vmem_limit_bytes=vmem_limit),
    )(xm, coords, *ordered)

    return out.reshape(3, N, H, W).transpose(1, 0, 2, 3)


def reference_forward(x_nchw, mask_nchw, params):
    """Pure-JAX (XLA) f32 reference with identical semantics, for validation."""
    dn = ('NHWC', 'HWIO', 'NHWC')
    xm = jnp.concatenate([x_nchw, mask_nchw], axis=1)
    h = jnp.transpose(xm, (0, 2, 3, 1)).astype(jnp.float32)

    h = lax.conv_general_dilated(h, params['w1'], (1, 1), ((1, 1), (1, 1)),
                                 dimension_numbers=dn) + params['b1']
    h = jnp.maximum(h, 0.0)
    h = lax.conv_general_dilated(h, params['w2'], (1, 1), ((1, 1), (1, 1)),
                                 dimension_numbers=dn) + params['b2']
    h = jnp.maximum(h, 0.0)
    h = lax.reduce_window(h, -jnp.inf, lax.max, (1, 2, 2, 1), (1, 2, 2, 1),
                          'VALID')
    # ConvTranspose2d(k=2, s=2) == lhs-dilated conv with spatially flipped kernel.
    wt_flip = params['wt'][::-1, ::-1, :, :]
    h = lax.conv_general_dilated(h, wt_flip, (1, 1), ((1, 1), (1, 1)),
                                 lhs_dilation=(2, 2),
                                 dimension_numbers=dn) + params['bt']
    h = jnp.maximum(h, 0.0)
    h = lax.conv_general_dilated(h, params['w3'], (1, 1), ((1, 1), (1, 1)),
                                 dimension_numbers=dn) + params['b3']
    return jnp.transpose(h, (0, 3, 1, 2))


def init_params(key):
    """Deterministic synthetic weights, stored in HWIO (kh, kw, in, out)."""
    ks = jax.random.split(key, 8)
    return {
        'w1': 0.1 * jax.random.normal(ks[0], (3, 3, 4, 32), jnp.float32),
        'b1': 0.1 * jax.random.normal(ks[1], (1, 1, 32), jnp.float32),
        'w2': 0.1 * jax.random.normal(ks[2], (3, 3, 32, 32), jnp.float32),
        'b2': 0.1 * jax.random.normal(ks[3], (1, 1, 32), jnp.float32),
        # ConvTranspose2d weight, rearranged from torch (in, out, kh, kw) -> (kh, kw, in, out)
        'wt': 0.1 * jax.random.normal(ks[4], (2, 2, 32, 32), jnp.float32),
        'bt': 0.1 * jax.random.normal(ks[5], (1, 1, 32), jnp.float32),
        'w3': 0.1 * jax.random.normal(ks[6], (3, 3, 32, 3), jnp.float32),
        'b3': 0.1 * jax.random.normal(ks[7], (1, 1, 3), jnp.float32),
    }


if __name__ == "__main__":
    key = jax.random.PRNGKey(0)
    kx, km, kp = jax.random.split(key, 3)

    N, H, W = 2, 16, 16
    x = jax.random.normal(kx, (N, 3, H, W), jnp.float32)
    mask = (jax.random.uniform(km, (N, 1, H, W)) > 0.5).astype(jnp.float32)
    params = init_params(kp)

    ref = jax.block_until_ready(reference_forward(x, mask, params))

    # 1) Structural validation with f32 matmul operands (tight tolerance).
    out_f32 = jax.block_until_ready(
        simple_unet_forward(x, mask, params, matmul_dtype=jnp.float32))
    assert out_f32.shape == (N, 3, H, W), out_f32.shape
    err_f32 = float(jnp.max(jnp.abs(out_f32 - ref)))
    assert err_f32 < 2e-3, f"f32-operand kernel mismatch vs reference: {err_f32}"

    # 2) Production config: bf16 MXU operands with f32 accumulation.  Tolerance is
    #    widened only to cover bf16 operand rounding (~bf16 eps propagated through
    #    K=288 contractions over 4 layers); structural bugs are caught by check 1.
    out = jax.block_until_ready(simple_unet_forward(x, mask, params))
    assert out.shape == (N, 3, H, W), out.shape
    err_bf16 = float(jnp.max(jnp.abs(out - ref)))
    assert err_bf16 < 7.5e-2, f"bf16-operand kernel mismatch vs reference: {err_bf16}"

    print("KERNEL_OK")
</pallas_src>

<mosaic_0001>
module attributes {stable_mosaic.version = 11 : i64} {
  func.func @k(%arg0: memref<8x384xf32, #tpu.memory_space<vmem>>, %arg1: memref<8x384xf32, #tpu.memory_space<vmem>>) attributes {dimension_semantics = [], scalar_prefetch = 0 : i64, scratch_operands = 0 : i64, tpu.core_type = #tpu.core_type<tc>} {
    %c0 = arith.constant 0 : index
    %c0_0 = arith.constant 0 : index
    %0 = vector.load %arg0[%c0, %c0_0] : memref<8x384xf32, #tpu.memory_space<vmem>>, vector<8x384xf32>
    %c5_i32 = arith.constant 5 : i32
    %1 = tpu.dynamic_rotate %0 by %c5_i32 dim 1 : vector<8x384xf32>, i32 -> vector<8x384xf32>
    %c0_1 = arith.constant 0 : index
    %c0_2 = arith.constant 0 : index
    %2 = vector.load %arg1[%c0_1, %c0_2] : memref<8x384xf32, #tpu.memory_space<vmem>>, vector<8x384xf32>
    tpu.vector_store %arg1[%c0_1, %c0_2], %1 {strides = array<i32>} : memref<8x384xf32, #tpu.memory_space<vmem>>, vector<8x384xf32>,
    return
  }
}

module attributes {stable_mosaic.version = 11 : i64} {
  func.func @kernel(%arg0: i32, %arg1: memref<8x512xf32, #tpu.memory_space<vmem>>, %arg2: memref<4x512xi32, #tpu.memory_space<vmem>>, %arg3: memref<32x72xf32, #tpu.memory_space<vmem>>, %arg4: memref<32x1xf32, #tpu.memory_space<vmem>>, %arg5: memref<32x288xf32, #tpu.memory_space<vmem>>, %arg6: memref<32x1xf32, #tpu.memory_space<vmem>>, %arg7: memref<128x32xf32, #tpu.memory_space<vmem>>, %arg8: memref<32x1xf32, #tpu.memory_space<vmem>>, %arg9: memref<3x288xf32, #tpu.memory_space<vmem>>, %arg10: memref<3x1xf32, #tpu.memory_space<vmem>>, %arg11: memref<3x512xf32, #tpu.memory_space<vmem>>, %arg12: memref<288x512xf32, #tpu.memory_space<vmem>>) attributes {dimension_semantics = [#tpu.dimension_semantics<parallel>], iteration_bounds = array<i64: 1>, scalar_prefetch = 0 : i64, scratch_operands = 1 : i64, tpu.core_type = #tpu.core_type<tc>, window_params = [{transform_indices = @transform_0, window_bounds = array<i64: 8, 512>}, {transform_indices = @transform_1, window_bounds = array<i64: 4, 512>}, {pipeline_mode = #tpu.pipeline_mode<synchronous>, transform_indices = @transform_2, window_bounds = array<i64: 32, 72>}, {pipeline_mode = #tpu.pipeline_mode<synchronous>, transform_indices = @transform_3, window_bounds = array<i64: 32, 1>}, {pipeline_mode = #tpu.pipeline_mode<synchronous>, transform_indices = @transform_4, window_bounds = array<i64: 32, 288>}, {pipeline_mode = #tpu.pipeline_mode<synchronous>, transform_indices = @transform_5, window_bounds = array<i64: 32, 1>}, {pipeline_mode = #tpu.pipeline_mode<synchronous>, transform_indices = @transform_6, window_bounds = array<i64: 128, 32>}, {pipeline_mode = #tpu.pipeline_mode<synchronous>, transform_indices = @transform_7, window_bounds = array<i64: 32, 1>}, {pipeline_mode = #tpu.pipeline_mode<synchronous>, transform_indices = @transform_8, window_bounds = array<i64: 3, 288>}, {pipeline_mode = #tpu.pipeline_mode<synchronous>, transform_indices = @transform_9, window_bounds = array<i64: 3, 1>}, {transform_indices = @transform_10, window_bounds = array<i64: 3, 512>}]} {
    %c0 = arith.constant 0 : index
    %c0_0 = arith.constant 0 : index
    %0 = vector.load %arg2[%c0, %c0_0] : memref<4x512xi32, #tpu.memory_space<vmem>>, vector<1x512xi32>
    %c1 = arith.constant 1 : index
    %c0_1 = arith.constant 0 : index
    %1 = vector.load %arg2[%c1, %c0_1] : memref<4x512xi32, #tpu.memory_space<vmem>>, vector<1x512xi32>
    %c2 = arith.constant 2 : index
    %c0_2 = arith.constant 0 : index
    %2 = vector.load %arg2[%c2, %c0_2] : memref<4x512xi32, #tpu.memory_space<vmem>>, vector<1x512xi32>
    %c0_i32 = arith.constant 0 : i32
    %3 = vector.broadcast %c0_i32 : i32 to vector<1x512xi32>
    %4 = arith.cmpi eq, %2, %3 : vector<1x512xi32>
    %c3 = arith.constant 3 : index
    %c0_3 = arith.constant 0 : index
    %5 = vector.load %arg2[%c3, %c0_3] : memref<4x512xi32, #tpu.memory_space<vmem>>, vector<1x512xi32>
    %c0_i32_4 = arith.constant 0 : i32
    %6 = vector.broadcast %c0_i32_4 : i32 to vector<1x512xi32>
    %7 = arith.cmpi eq, %5, %6 : vector<1x512xi32>
    %c0_5 = arith.constant 0 : index
    %c0_6 = arith.constant 0 : index
    %8 = vector.load %arg1[%c0_5, %c0_6] : memref<8x512xf32, #tpu.memory_space<vmem>>, vector<8x512xf32>
    %9 = vector.extract_strided_slice %8 {offsets = [0, 495], sizes = [8, 17], strides = [1, 1]} : vector<8x512xf32> to vector<8x17xf32>
    %10 = vector.extract_strided_slice %8 {offsets = [0, 0], sizes = [8, 495], strides = [1, 1]} : vector<8x512xf32> to vector<8x495xf32>
    %11 = tpu.concatenate %9, %10 in 1 : vector<8x17xf32>, vector<8x495xf32> -> vector<8x512xf32>
    %c1_i32 = arith.constant 1 : i32
    %12 = vector.broadcast %c1_i32 : i32 to vector<1x512xi32>
    %13 = arith.cmpi sge, %0, %12 : vector<1x512xi32>
    %c1_i32_7 = arith.constant 1 : i32
    %14 = vector.broadcast %c1_i32_7 : i32 to vector<1x512xi32>
    %15 = arith.cmpi sge, %1, %14 : vector<1x512xi32>
    %16 = arith.andi %13, %15 : vector<1x512xi1>
    %cst = arith.constant 0.000000e+00 : f32
    %17 = vector.shape_cast %16 : vector<1x512xi1> to vector<1x512xi1>
    %18 = vector.broadcast %17 : vector<1x512xi1> to vector<8x512xi1>
    %19 = vector.broadcast %cst : f32 to vector<8x512xf32>
    %20 = arith.select %18, %11, %19 : vector<8x512xi1>, vector<8x512xf32>
    %c0_8 = arith.constant 0 : index
    %c0_9 = arith.constant 0 : index
    %21 = vector.load %arg12[%c0_8, %c0_9] : memref<288x512xf32, #tpu.memory_space<vmem>>, vector<8x512xf32>
    tpu.vector_store %arg12[%c0_8, %c0_9], %20 {strides = array<i32>} : memref<288x512xf32, #tpu.memory_space<vmem>>, vector<8x512xf32>,
    %22 = vector.extract_strided_slice %8 {offsets = [0, 496], sizes = [8, 16], strides = [1, 1]} : vector<8x512xf32> to vector<8x16xf32>
    %23 = vector.extract_strided_slice %8 {offsets = [0, 0], sizes = [8, 496], strides = [1, 1]} : vector<8x512xf32> to vector<8x496xf32>
    %24 = tpu.concatenate %22, %23 in 1 : vector<8x16xf32>, vector<8x496xf32> -> vector<8x512xf32>
    %c1_i32_10 = arith.constant 1 : i32
    %25 = vector.broadcast %c1_i32_10 : i32 to vector<1x512xi32>
    %26 = arith.cmpi sge, %0, %25 : vector<1x512xi32>
    %cst_11 = arith.constant 0.000000e+00 : f32
    %27 = vector.shape_cast %26 : vector<1x512xi1> to vector<1x512xi1>
    %28 = vector.broadcast %27 : vector<1x512xi1> to vector<8x512xi1>
    %29 = vector.broadcast %cst_11 : f32 to vector<8x512xf32>
    %30 = arith.select %28, %24, %29 : vector<8x512xi1>, vector<8x512xf32>
    %c8 = arith.constant 8 : index
    %c0_12 = arith.constant 0 : index
    %31 = vector.load %arg12[%c8, %c0_12] : memref<288x512xf32, #tpu.memory_space<vmem>>, vector<8x512xf32>
    tpu.vector_store %arg12[%c8, %c0_12], %30 {strides = array<i32>} : memref<288x512xf32, #tpu.memory_space<vmem>>, vector<8x512xf32>,
    %32 = vector.extract_strided_slice %8 {offsets = [0, 497], sizes = [8, 15], strides = [1, 1]} : vector<8x512xf32> to vector<8x15xf32>
    %33 = vector.extract_strided_slice %8 {offsets = [0, 0], sizes = [8, 497], strides = [1, 1]} : vector<8x512xf32> to vector<8x497xf32>
    %34 = tpu.concatenate %32, %33 in 1 : vector<8x15xf32>, vector<8x497xf32> -> vector<8x512xf32>
    %c1_i32_13 = arith.constant 1 : i32
    %35 = vector.broadcast %c1_i32_13 : i32 to vector<1x512xi32>
    %36 = arith.cmpi sge, %0, %35 : vector<1x512xi32>
    %c14_i32 = arith.constant 14 : i32
    %37 = vector.broadcast %c14_i32 : i32 to vector<1x512xi32>
    %38 = arith.cmpi sle, %1, %37 : vector<1x512xi32>
    %39 = arith.andi %36, %38 : vector<1x512xi1>
    %cst_14 = arith.constant 0.000000e+00 : f32
    %40 = vector.shape_cast %39 : vector<1x512xi1> to vector<1x512xi1>
    %41 = vector.broadcast %40 : vector<1x512xi1> to vector<8x512xi1>
    %42 = vector.broadcast %cst_14 : f32 to vector<8x512xf32>
    %43 = arith.select %41, %34, %42 : vector<8x512xi1>, vector<8x512xf32>
    %c16 = arith.constant 16 : index
    %c0_15 = arith.constant 0 : index
    %44 = vector.load %arg12[%c16, %c0_15] : memref<288x512xf32, #tpu.memory_space<vmem>>, vector<8x512xf32>
    tpu.vector_store %arg12[%c16, %c0_15], %43 {strides = array<i32>} : memref<288x512xf32, #tpu.memory_space<vmem>>, vector<8x512xf32>,
    %45 = vector.extract_strided_slice %8 {offsets = [0, 511], sizes = [8, 1], strides = [1, 1]} : vector<8x512xf32> to vector<8x1xf32>
    %46 = vector.extract_strided_slice %8 {offsets = [0, 0], sizes = [8, 511], strides = [1, 1]} : vector<8x512xf32> to vector<8x511xf32>
    %47 = tpu.concatenate %45, %46 in 1 : vector<8x1xf32>, vector<8x511xf32> -> vector<8x512xf32>
    %c1_i32_16 = arith.constant 1 : i32
    %48 = vector.broadcast %c1_i32_16 : i32 to vector<1x512xi32>
    %49 = arith.cmpi sge, %1, %48 : vector<1x512xi32>
    %cst_17 = arith.constant 0.000000e+00 : f32
    %50 = vector.shape_cast %49 : vector<1x512xi1> to vector<1x512xi1>
    %51 = vector.broadcast %50 : vector<1x512xi1> to vector<8x512xi1>
    %52 = vector.broadcast %cst_17 : f32 to vector<8x512xf32>
    %53 = arith.select %51, %47, %52 : vector<8x512xi1>, vector<8x512xf32>
    %c24 = arith.constant 24 : index
    %c0_18 = arith.constant 0 : index
    %54 = vector.load %arg12[%c24, %c0_18] : memref<288x512xf32, #tpu.memory_space<vmem>>, vector<8x512xf32>
    tpu.vector_store %arg12[%c24, %c0_18], %53 {strides = array<i32>} : memref<288x512xf32, #tpu.memory_space<vmem>>, vector<8x512xf32>,
    %c32 = arith.constant 32 : index
    %c0_19 = arith.constant 0 : index
    %55 = vector.load %arg12[%c32, %c0_19] : memref<288x512xf32, #tpu.memory_space<vmem>>, vector<8x512xf32>
    tpu.vector_store %arg12[%c32, %c0_19], %8 {strides = array<i32>} : memref<288x512xf32, #tpu.memory_space<vmem>>, vector<8x512xf32>,
    %56 = vector.extract_strided_slice %8 {offsets = [0, 1], sizes = [8, 511], strides = [1, 1]} : vector<8x512xf32> to vector<8x511xf32>
    %57 = vector.extract_strided_slice %8 {offsets = [0, 0], sizes = [8, 1], strides = [1, 1]} : vector<8x512xf32> to vector<8x1xf32>
    %58 = tpu.concatenate %56, %57 in 1 : vector<8x511xf32>, vector<8x1xf32> -> vector<8x512xf32>
    %c14_i32_20 = arith.constant 14 : i32
    %59 = vector.broadcast %c14_i32_20 : i32 to vector<1x512xi32>
    %60 = arith.cmpi sle, %1, %59 : vector<1x512xi32>
    %cst_21 = arith.constant 0.000000e+00 : f32
    %61 = vector.shape_cast %60 : vector<1x512xi1> to vector<1x512xi1>
    %62 = vector.broadcast %61 : vector<1x512xi1> to vector<8x512xi1>
    %63 = vector.broadcast %cst_21 : f32 to vector<8x512xf32>
    %64 = arith.select %62, %58, %63 : vector<8x512xi1>, vector<8x512xf32>
    %c40 = arith.constant 40 : index
    %c0_22 = arith.constant 0 : index
    %65 = vector.load %arg12[%c40, %c0_22] : memref<288x512xf32, #tpu.memory_space<vmem>>, vector<8x512xf32>
    tpu.vector_store %arg12[%c40, %c0_22], %64 {strides = array<i32>} : memref<288x512xf32, #tpu.memory_space<vmem>>, vector<8x512xf32>,
    %66 = vector.extract_strided_slice %8 {offsets = [0, 15], sizes = [8, 497], strides = [1, 1]} : vector<8x512xf32> to vector<8x497xf32>
    %67 = vector.extract_strided_slice %8 {offsets = [0, 0], sizes = [8, 15], strides = [1, 1]} : vector<8x512xf32> to vector<8x15xf32>
    %68 = tpu.concatenate %66, %67 in 1 : vector<8x497xf32>, vector<8x15xf32> -> vector<8x512xf32>
    %c14_i32_23 = arith.constant 14 : i32
    %69 = vector.broadcast %c14_i32_23 : i32 to vector<1x512xi32>
    %70 = arith.cmpi sle, %0, %69 : vector<1x512xi32>
    %c1_i32_24 = arith.constant 1 : i32
    %71 = vector.broadcast %c1_i32_24 : i32 to vector<1x512xi32>
    %72 = arith.cmpi sge, %1, %71 : vector<1x512xi32>
    %73 = arith.andi %70, %72 : vector<1x512xi1>
    %cst_25 = arith.constant 0.000000e+00 : f32
    %74 = vector.shape_cast %73 : vector<1x512xi1> to vector<1x512xi1>
    %75 = vector.broadcast %74 : vector<1x512xi1> to vector<8x512xi1>
    %76 = vector.broadcast %cst_25 : f32 to vector<8x512xf32>
    %77 = arith.select %75, %68, %76 : vector<8x512xi1>, vector<8x512xf32>
    %c48 = arith.constant 48 : index
    %c0_26 = arith.constant 0 : index
    %78 = vector.load %arg12[%c48, %c0_26] : memref<288x512xf32, #tpu.memory_space<vmem>>, vector<8x512xf32>
    tpu.vector_store %arg12[%c48, %c0_26], %77 {strides = array<i32>} : memref<288x512xf32, #tpu.memory_space<vmem>>, vector<8x512xf32>,
    %79 = vector.extract_strided_slice %8 {offsets = [0, 16], sizes = [8, 496], strides = [1, 1]} : vector<8x512xf32> to vector<8x496xf32>
    %80 = vector.extract_strided_slice %8 {offsets = [0, 0], sizes = [8, 16], strides = [1, 1]} : vector<8x512xf32> to vector<8x16xf32>
    %81 = tpu.concatenate %79, %80 in 1 : vector<8x496xf32>, vector<8x16xf32> -> vector<8x512xf32>
    %c14_i32_27 = arith.constant 14 : i32
    %82 = vector.broadcast %c14_i32_27 : i32 to vector<1x512xi32>
    %83 = arith.cmpi sle, %0, %82 : vector<1x512xi32>
    %cst_28 = arith.constant 0.000000e+00 : f32
    %84 = vector.shape_cast %83 : vector<1x512xi1> to vector<1x512xi1>
    %85 = vector.broadcast %84 : vector<1x512xi1> to vector<8x512xi1>
    %86 = vector.broadcast %cst_28 : f32 to vector<8x512xf32>
    %87 = arith.select %85, %81, %86 : vector<8x512xi1>, vector<8x512xf32>
    %c56 = arith.constant 56 : index
    %c0_29 = arith.constant 0 : index
    %88 = vector.load %arg12[%c56, %c0_29] : memref<288x512xf32, #tpu.memory_space<vmem>>, vector<8x512xf32>
    tpu.vector_store %arg12[%c56, %c0_29], %87 {strides = array<i32>} : memref<288x512xf32, #tpu.memory_space<vmem>>, vector<8x512xf32>,
    %89 = vector.extract_strided_slice %8 {offsets = [0, 17], sizes = [8, 495], strides = [1, 1]} : vector<8x512xf32> to vector<8x495xf32>
    %90 = vector.extract_strided_slice %8 {offsets = [0, 0], sizes = [8, 17], strides = [1, 1]} : vector<8x512xf32> to vector<8x17xf32>
    %91 = tpu.concatenate %89, %90 in 1 : vector<8x495xf32>, vector<8x17xf32> -> vector<8x512xf32>
    %c14_i32_30 = arith.constant 14 : i32
    %92 = vector.broadcast %c14_i32_30 : i32 to vector<1x512xi32>
    %93 = arith.cmpi sle, %0, %92 : vector<1x512xi32>
    %c14_i32_31 = arith.constant 14 : i32
    %94 = vector.broadcast %c14_i32_31 : i32 to vector<1x512xi32>
    %95 = arith.cmpi sle, %1, %94 : vector<1x512xi32>
    %96 = arith.andi %93, %95 : vector<1x512xi1>
    %cst_32 = arith.constant 0.000000e+00 : f32
    %97 = vector.shape_cast %96 : vector<1x512xi1> to vector<1x512xi1>
    %98 = vector.broadcast %97 : vector<1x512xi1> to vector<8x512xi1>
    %99 = vector.broadcast %cst_32 : f32 to vector<8x512xf32>
    %100 = arith.select %98, %91, %99 : vector<8x512xi1>, vector<8x512xf32>
    %c64 = arith.constant 64 : index
    %c0_33 = arith.constant 0 : index
    %101 = vector.load %arg12[%c64, %c0_33] : memref<288x512xf32, #tpu.memory_space<vmem>>, vector<8x512xf32>
    tpu.vector_store %arg12[%c64, %c0_33], %100 {strides = array<i32>} : memref<288x512xf32, #tpu.memory_space<vmem>>, vector<8x512xf32>,
    %c0_34 = arith.constant 0 : index
    %c0_35 = arith.constant 0 : index
    %102 = vector.load %arg12[%c0_34, %c0_35] : memref<288x512xf32, #tpu.memory_space<vmem>>, vector<72x512xf32>
    %c0_36 = arith.constant 0 : index
    %c0_37 = arith.constant 0 : index
    %103 = vector.load %arg3[%c0_36, %c0_37] : memref<32x72xf32, #tpu.memory_space<vmem>>, vector<32x72xf32>
    %cst_38 = arith.constant dense<0.000000e+00> : vector<32x512xf32>
    %104 = tpu.matmul %103, %102, %cst_38 {dimension_numbers = #tpu.dot_dimension_numbers<[1], [0], [0], [1], [0, 0, 1, 1], [], []>} : vector<32x72xf32>, vector<72x512xf32>, vector<32x512xf32> -> vector<32x512xf32>
    %c0_39 = arith.constant 0 : index
    %c0_40 = arith.constant 0 : index
    %105 = vector.load %arg4[%c0_39, %c0_40] : memref<32x1xf32, #tpu.memory_space<vmem>>, vector<32x1xf32>
    %106 = vector.broadcast %105 : vector<32x1xf32> to vector<32x512xf32>
    %107 = arith.addf %104, %106 : vector<32x512xf32>
    %cst_41 = arith.constant 0.000000e+00 : f32
    %108 = vector.broadcast %cst_41 : f32 to vector<32x512xf32>
    %109 = arith.maximumf %107, %108 : vector<32x512xf32>
    %110 = vector.extract_strided_slice %109 {offsets = [0, 495], sizes = [32, 17], strides = [1, 1]} : vector<32x512xf32> to vector<32x17xf32>
    %111 = vector.extract_strided_slice %109 {offsets = [0, 0], sizes = [32, 495], strides = [1, 1]} : vector<32x512xf32> to vector<32x495xf32>
    %112 = tpu.concatenate %110, %111 in 1 : vector<32x17xf32>, vector<32x495xf32> -> vector<32x512xf32>
    %c1_i32_42 = arith.constant 1 : i32
    %113 = vector.broadcast %c1_i32_42 : i32 to vector<1x512xi32>
    %114 = arith.cmpi sge, %0, %113 : vector<1x512xi32>
    %c1_i32_43 = arith.constant 1 : i32
    %115 = vector.broadcast %c1_i32_43 : i32 to vector<1x512xi32>
    %116 = arith.cmpi sge, %1, %115 : vector<1x512xi32>
    %117 = arith.andi %114, %116 : vector<1x512xi1>
    %cst_44 = arith.constant 0.000000e+00 : f32
    %118 = vector.shape_cast %117 : vector<1x512xi1> to vector<1x512xi1>
    %119 = vector.broadcast %118 : vector<1x512xi1> to vector<32x512xi1>
    %120 = vector.broadcast %cst_44 : f32 to vector<32x512xf32>
    %121 = arith.select %119, %112, %120 : vector<32x512xi1>, vector<32x512xf32>
    %c0_45 = arith.constant 0 : index
    %c0_46 = arith.constant 0 : index
    %122 = vector.load %arg12[%c0_45, %c0_46] : memref<288x512xf32, #tpu.memory_space<vmem>>, vector<32x512xf32>
    tpu.vector_store %arg12[%c0_45, %c0_46], %121 {strides = array<i32>} : memref<288x512xf32, #tpu.memory_space<vmem>>, vector<32x512xf32>,
    %123 = vector.extract_strided_slice %109 {offsets = [0, 496], sizes = [32, 16], strides = [1, 1]} : vector<32x512xf32> to vector<32x16xf32>
    %124 = vector.extract_strided_slice %109 {offsets = [0, 0], sizes = [32, 496], strides = [1, 1]} : vector<32x512xf32> to vector<32x496xf32>
    %125 = tpu.concatenate %123, %124 in 1 : vector<32x16xf32>, vector<32x496xf32> -> vector<32x512xf32>
    %c1_i32_47 = arith.constant 1 : i32
    %126 = vector.broadcast %c1_i32_47 : i32 to vector<1x512xi32>
    %127 = arith.cmpi sge, %0, %126 : vector<1x512xi32>
    %cst_48 = arith.constant 0.000000e+00 : f32
    %128 = vector.shape_cast %127 : vector<1x512xi1> to vector<1x512xi1>
    %129 = vector.broadcast %128 : vector<1x512xi1> to vector<32x512xi1>
    %130 = vector.broadcast %cst_48 : f32 to vector<32x512xf32>
    %131 = arith.select %129, %125, %130 : vector<32x512xi1>, vector<32x512xf32>
    %c32_49 = arith.constant 32 : index
    %c0_50 = arith.constant 0 : index
    %132 = vector.load %arg12[%c32_49, %c0_50] : memref<288x512xf32, #tpu.memory_space<vmem>>, vector<32x512xf32>
    tpu.vector_store %arg12[%c32_49, %c0_50], %131 {strides = array<i32>} : memref<288x512xf32, #tpu.memory_space<vmem>>, vector<32x512xf32>,
    %133 = vector.extract_strided_slice %109 {offsets = [0, 497], sizes = [32, 15], strides = [1, 1]} : vector<32x512xf32> to vector<32x15xf32>
    %134 = vector.extract_strided_slice %109 {offsets = [0, 0], sizes = [32, 497], strides = [1, 1]} : vector<32x512xf32> to vector<32x497xf32>
    %135 = tpu.concatenate %133, %134 in 1 : vector<32x15xf32>, vector<32x497xf32> -> vector<32x512xf32>
    %c1_i32_51 = arith.constant 1 : i32
    %136 = vector.broadcast %c1_i32_51 : i32 to vector<1x512xi32>
    %137 = arith.cmpi sge, %0, %136 : vector<1x512xi32>
    %c14_i32_52 = arith.constant 14 : i32
    %138 = vector.broadcast %c14_i32_52 : i32 to vector<1x512xi32>
    %139 = arith.cmpi sle, %1, %138 : vector<1x512xi32>
    %140 = arith.andi %137, %139 : vector<1x512xi1>
    %cst_53 = arith.constant 0.000000e+00 : f32
    %141 = vector.shape_cast %140 : vector<1x512xi1> to vector<1x512xi1>
    %142 = vector.broadcast %141 : vector<1x512xi1> to vector<32x512xi1>
    %143 = vector.broadcast %cst_53 : f32 to vector<32x512xf32>
    %144 = arith.select %142, %135, %143 : vector<32x512xi1>, vector<32x512xf32>
    %c64_54 = arith.constant 64 : index
    %c0_55 = arith.constant 0 : index
    %145 = vector.load %arg12[%c64_54, %c0_55] : memref<288x512xf32, #tpu.memory_space<vmem>>, vector<32x512xf32>
    tpu.vector_store %arg12[%c64_54, %c0_55], %144 {strides = array<i32>} : memref<288x512xf32, #tpu.memory_space<vmem>>, vector<32x512xf32>,
    %146 = vector.extract_strided_slice %109 {offsets = [0, 511], sizes = [32, 1], strides = [1, 1]} : vector<32x512xf32> to vector<32x1xf32>
    %147 = vector.extract_strided_slice %109 {offsets = [0, 0], sizes = [32, 511], strides = [1, 1]} : vector<32x512xf32> to vector<32x511xf32>
    %148 = tpu.concatenate %146, %147 in 1 : vector<32x1xf32>, vector<32x511xf32> -> vector<32x512xf32>
    %c1_i32_56 = arith.constant 1 : i32
    %149 = vector.broadcast %c1_i32_56 : i32 to vector<1x512xi32>
    %150 = arith.cmpi sge, %1, %149 : vector<1x512xi32>
    %cst_57 = arith.constant 0.000000e+00 : f32
    %151 = vector.shape_cast %150 : vector<1x512xi1> to vector<1x512xi1>
    %152 = vector.broadcast %151 : vector<1x512xi1> to vector<32x512xi1>
    %153 = vector.broadcast %cst_57 : f32 to vector<32x512xf32>
    %154 = arith.select %152, %148, %153 : vector<32x512xi1>, vector<32x512xf32>
    %c96 = arith.constant 96 : index
    %c0_58 = arith.constant 0 : index
    %155 = vector.load %arg12[%c96, %c0_58] : memref<288x512xf32, #tpu.memory_space<vmem>>, vector<32x512xf32>
    tpu.vector_store %arg12[%c96, %c0_58], %154 {strides = array<i32>} : memref<288x512xf32, #tpu.memory_space<vmem>>, vector<32x512xf32>,
    %c128 = arith.constant 128 : index
    %c0_59 = arith.constant 0 : index
    %156 = vector.load %arg12[%c128, %c0_59] : memref<288x512xf32, #tpu.memory_space<vmem>>, vector<32x512xf32>
    tpu.vector_store %arg12[%c128, %c0_59], %109 {strides = array<i32>} : memref<288x512xf32, #tpu.memory_space<vmem>>, vector<32x512xf32>,
    %157 = vector.extract_strided_slice %109 {offsets = [0, 1], sizes = [32, 511], strides = [1, 1]} : vector<32x512xf32> to vector<32x511xf32>
    %158 = vector.extract_strided_slice %109 {offsets = [0, 0], sizes = [32, 1], strides = [1, 1]} : vector<32x512xf32> to vector<32x1xf32>
    %159 = tpu.concatenate %157, %158 in 1 : vector<32x511xf32>, vector<32x1xf32> -> vector<32x512xf32>
    %c14_i32_60 = arith.constant 14 : i32
    %160 = vector.broadcast %c14_i32_60 : i32 to vector<1x512xi32>
    %161 = arith.cmpi sle, %1, %160 : vector<1x512xi32>
    %cst_61 = arith.constant 0.000000e+00 : f32
    %162 = vector.shape_cast %161 : vector<1x512xi1> to vector<1x512xi1>
    %163 = vector.broadcast %162 : vector<1x512xi1> to vector<32x512xi1>
    %164 = vector.broadcast %cst_61 : f32 to vector<32x512xf32>
    %165 = arith.select %163, %159, %164 : vector<32x512xi1>, vector<32x512xf32>
    %c160 = arith.constant 160 : index
    %c0_62 = arith.constant 0 : index
    %166 = vector.load %arg12[%c160, %c0_62] : memref<288x512xf32, #tpu.memory_space<vmem>>, vector<32x512xf32>
    tpu.vector_store %arg12[%c160, %c0_62], %165 {strides = array<i32>} : memref<288x512xf32, #tpu.memory_space<vmem>>, vector<32x512xf32>,
    %167 = vector.extract_strided_slice %109 {offsets = [0, 15], sizes = [32, 497], strides = [1, 1]} : vector<32x512xf32> to vector<32x497xf32>
    %168 = vector.extract_strided_slice %109 {offsets = [0, 0], sizes = [32, 15], strides = [1, 1]} : vector<32x512xf32> to vector<32x15xf32>
    %169 = tpu.concatenate %167, %168 in 1 : vector<32x497xf32>, vector<32x15xf32> -> vector<32x512xf32>
    %c14_i32_63 = arith.constant 14 : i32
    %170 = vector.broadcast %c14_i32_63 : i32 to vector<1x512xi32>
    %171 = arith.cmpi sle, %0, %170 : vector<1x512xi32>
    %c1_i32_64 = arith.constant 1 : i32
    %172 = vector.broadcast %c1_i32_64 : i32 to vector<1x512xi32>
    %173 = arith.cmpi sge, %1, %172 : vector<1x512xi32>
    %174 = arith.andi %171, %173 : vector<1x512xi1>
    %cst_65 = arith.constant 0.000000e+00 : f32
    %175 = vector.shape_cast %174 : vector<1x512xi1> to vector<1x512xi1>
    %176 = vector.broadcast %175 : vector<1x512xi1> to vector<32x512xi1>
    %177 = vector.broadcast %cst_65 : f32 to vector<32x512xf32>
    %178 = arith.select %176, %169, %177 : vector<32x512xi1>, vector<32x512xf32>
    %c192 = arith.constant 192 : index
    %c0_66 = arith.constant 0 : index
    %179 = vector.load %arg12[%c192, %c0_66] : memref<288x512xf32, #tpu.memory_space<vmem>>, vector<32x512xf32>
    tpu.vector_store %arg12[%c192, %c0_66], %178 {strides = array<i32>} : memref<288x512xf32, #tpu.memory_space<vmem>>, vector<32x512xf32>,
    %180 = vector.extract_strided_slice %109 {offsets = [0, 16], sizes = [32, 496], strides = [1, 1]} : vector<32x512xf32> to vector<32x496xf32>
    %181 = vector.extract_strided_slice %109 {offsets = [0, 0], sizes = [32, 16], strides = [1, 1]} : vector<32x512xf32> to vector<32x16xf32>
    %182 = tpu.concatenate %180, %181 in 1 : vector<32x496xf32>, vector<32x16xf32> -> vector<32x512xf32>
    %c14_i32_67 = arith.constant 14 : i32
    %183 = vector.broadcast %c14_i32_67 : i32 to vector<1x512xi32>
    %184 = arith.cmpi sle, %0, %183 : vector<1x512xi32>
    %cst_68 = arith.constant 0.000000e+00 : f32
    %185 = vector.shape_cast %184 : vector<1x512xi1> to vector<1x512xi1>
    %186 = vector.broadcast %185 : vector<1x512xi1> to vector<32x512xi1>
    %187 = vector.broadcast %cst_68 : f32 to vector<32x512xf32>
    %188 = arith.select %186, %182, %187 : vector<32x512xi1>, vector<32x512xf32>
    %c224 = arith.constant 224 : index
    %c0_69 = arith.constant 0 : index
    %189 = vector.load %arg12[%c224, %c0_69] : memref<288x512xf32, #tpu.memory_space<vmem>>, vector<32x512xf32>
    tpu.vector_store %arg12[%c224, %c0_69], %188 {strides = array<i32>} : memref<288x512xf32, #tpu.memory_space<vmem>>, vector<32x512xf32>,
    %190 = vector.extract_strided_slice %109 {offsets = [0, 17], sizes = [32, 495], strides = [1, 1]} : vector<32x512xf32> to vector<32x495xf32>
    %191 = vector.extract_strided_slice %109 {offsets = [0, 0], sizes = [32, 17], strides = [1, 1]} : vector<32x512xf32> to vector<32x17xf32>
    %192 = tpu.concatenate %190, %191 in 1 : vector<32x495xf32>, vector<32x17xf32> -> vector<32x512xf32>
    %c14_i32_70 = arith.constant 14 : i32
    %193 = vector.broadcast %c14_i32_70 : i32 to vector<1x512xi32>
    %194 = arith.cmpi sle, %0, %193 : vector<1x512xi32>
    %c14_i32_71 = arith.constant 14 : i32
    %195 = vector.broadcast %c14_i32_71 : i32 to vector<1x512xi32>
    %196 = arith.cmpi sle, %1, %195 : vector<1x512xi32>
    %197 = arith.andi %194, %196 : vector<1x512xi1>
    %cst_72 = arith.constant 0.000000e+00 : f32
    %198 = vector.shape_cast %197 : vector<1x512xi1> to vector<1x512xi1>
    %199 = vector.broadcast %198 : vector<1x512xi1> to vector<32x512xi1>
    %200 = vector.broadcast %cst_72 : f32 to vector<32x512xf32>
    %201 = arith.select %199, %192, %200 : vector<32x512xi1>, vector<32x512xf32>
    %c256 = arith.constant 256 : index
    %c0_73 = arith.constant 0 : index
    %202 = vector.load %arg12[%c256, %c0_73] : memref<288x512xf32, #tpu.memory_space<vmem>>, vector<32x512xf32>
    tpu.vector_store %arg12[%c256, %c0_73], %201 {strides = array<i32>} : memref<288x512xf32, #tpu.memory_space<vmem>>, vector<32x512xf32>,
    %c0_74 = arith.constant 0 : index
    %c0_75 = arith.constant 0 : index
    %203 = vector.load %arg12[%c0_74, %c0_75] : memref<288x512xf32, #tpu.memory_space<vmem>>, vector<288x512xf32>
    %c0_76 = arith.constant 0 : index
    %c0_77 = arith.constant 0 : index
    %204 = vector.load %arg5[%c0_76, %c0_77] : memref<32x288xf32, #tpu.memory_space<vmem>>, vector<32x288xf32>
    %cst_78 = arith.constant dense<0.000000e+00> : vector<32x512xf32>
    %205 = tpu.matmul %204, %203, %cst_78 {dimension_numbers = #tpu.dot_dimension_numbers<[1], [0], [0], [1], [0, 0, 1, 1], [], []>} : vector<32x288xf32>, vector<288x512xf32>, vector<32x512xf32> -> vector<32x512xf32>
    %c0_79 = arith.constant 0 : index
    %c0_80 = arith.constant 0 : index
    %206 = vector.load %arg6[%c0_79, %c0_80] : memref<32x1xf32, #tpu.memory_space<vmem>>, vector<32x1xf32>
    %207 = vector.broadcast %206 : vector<32x1xf32> to vector<32x512xf32>
    %208 = arith.addf %205, %207 : vector<32x512xf32>
    %cst_81 = arith.constant 0.000000e+00 : f32
    %209 = vector.broadcast %cst_81 : f32 to vector<32x512xf32>
    %210 = arith.maximumf %208, %209 : vector<32x512xf32>
    %211 = vector.extract_strided_slice %210 {offsets = [0, 1], sizes = [32, 511], strides = [1, 1]} : vector<32x512xf32> to vector<32x511xf32>
    %212 = vector.extract_strided_slice %210 {offsets = [0, 0], sizes = [32, 1], strides = [1, 1]} : vector<32x512xf32> to vector<32x1xf32>
    %213 = tpu.concatenate %211, %212 in 1 : vector<32x511xf32>, vector<32x1xf32> -> vector<32x512xf32>
    %214 = vector.extract_strided_slice %210 {offsets = [0, 511], sizes = [32, 1], strides = [1, 1]} : vector<32x512xf32> to vector<32x1xf32>
    %215 = vector.extract_strided_slice %210 {offsets = [0, 0], sizes = [32, 511], strides = [1, 1]} : vector<32x512xf32> to vector<32x511xf32>
    %216 = tpu.concatenate %214, %215 in 1 : vector<32x1xf32>, vector<32x511xf32> -> vector<32x512xf32>
    %217 = vector.shape_cast %7 : vector<1x512xi1> to vector<1x512xi1>
    %218 = vector.broadcast %217 : vector<1x512xi1> to vector<32x512xi1>
    %219 = arith.select %218, %213, %216 : vector<32x512xi1>, vector<32x512xf32>
    %220 = arith.maximumf %210, %219 : vector<32x512xf32>
    %221 = vector.extract_strided_slice %220 {offsets = [0, 16], sizes = [32, 496], strides = [1, 1]} : vector<32x512xf32> to vector<32x496xf32>
    %222 = vector.extract_strided_slice %220 {offsets = [0, 0], sizes = [32, 16], strides = [1, 1]} : vector<32x512xf32> to vector<32x16xf32>
    %223 = tpu.concatenate %221, %222 in 1 : vector<32x496xf32>, vector<32x16xf32> -> vector<32x512xf32>
    %224 = vector.extract_strided_slice %220 {offsets = [0, 496], sizes = [32, 16], strides = [1, 1]} : vector<32x512xf32> to vector<32x16xf32>
    %225 = vector.extract_strided_slice %220 {offsets = [0, 0], sizes = [32, 496], strides = [1, 1]} : vector<32x512xf32> to vector<32x496xf32>
    %226 = tpu.concatenate %224, %225 in 1 : vector<32x16xf32>, vector<32x496xf32> -> vector<32x512xf32>
    %227 = vector.shape_cast %4 : vector<1x512xi1> to vector<1x512xi1>
    %228 = vector.broadcast %227 : vector<1x512xi1> to vector<32x512xi1>
    %229 = arith.select %228, %223, %226 : vector<32x512xi1>, vector<32x512xf32>
    %230 = arith.maximumf %220, %229 : vector<32x512xf32>
    %c0_82 = arith.constant 0 : index
    %c0_83 = arith.constant 0 : index
    %231 = vector.load %arg7[%c0_82, %c0_83] : memref<128x32xf32, #tpu.memory_space<vmem>>, vector<128x32xf32>
    %cst_84 = arith.constant dense<0.000000e+00> : vector<128x512xf32>
    %232 = tpu.matmul %231, %230, %cst_84 {dimension_numbers = #tpu.dot_dimension_numbers<[1], [0], [0], [1], [0, 0, 1, 1], [], []>} : vector<128x32xf32>, vector<32x512xf32>, vector<128x512xf32> -> vector<128x512xf32>
    %233 = vector.extract_strided_slice %232 {offsets = [0, 0], sizes = [32, 512], strides = [1, 1]} : vector<128x512xf32> to vector<32x512xf32>
    %234 = vector.extract_strided_slice %232 {offsets = [32, 0], sizes = [32, 512], strides = [1, 1]} : vector<128x512xf32> to vector<32x512xf32>
    %235 = vector.shape_cast %7 : vector<1x512xi1> to vector<1x512xi1>
    %236 = vector.broadcast %235 : vector<1x512xi1> to vector<32x512xi1>
    %237 = arith.select %236, %233, %234 : vector<32x512xi1>, vector<32x512xf32>
    %238 = vector.extract_strided_slice %232 {offsets = [64, 0], sizes = [32, 512], strides = [1, 1]} : vector<128x512xf32> to vector<32x512xf32>
    %239 = vector.extract_strided_slice %232 {offsets = [96, 0], sizes = [32, 512], strides = [1, 1]} : vector<128x512xf32> to vector<32x512xf32>
    %240 = vector.shape_cast %7 : vector<1x512xi1> to vector<1x512xi1>
    %241 = vector.broadcast %240 : vector<1x512xi1> to vector<32x512xi1>
    %242 = arith.select %241, %238, %239 : vector<32x512xi1>, vector<32x512xf32>
    %243 = vector.shape_cast %4 : vector<1x512xi1> to vector<1x512xi1>
    %244 = vector.broadcast %243 : vector<1x512xi1> to vector<32x512xi1>
    %245 = arith.select %244, %237, %242 : vector<32x512xi1>, vector<32x512xf32>
    %c0_85 = arith.constant 0 : index
    %c0_86 = arith.constant 0 : index
    %246 = vector.load %arg8[%c0_85, %c0_86] : memref<32x1xf32, #tpu.memory_space<vmem>>, vector<32x1xf32>
    %247 = vector.broadcast %246 : vector<32x1xf32> to vector<32x512xf32>
    %248 = arith.addf %245, %247 : vector<32x512xf32>
    %cst_87 = arith.constant 0.000000e+00 : f32
    %249 = vector.broadcast %cst_87 : f32 to vector<32x512xf32>
    %250 = arith.maximumf %248, %249 : vector<32x512xf32>
    %251 = vector.extract_strided_slice %250 {offsets = [0, 495], sizes = [32, 17], strides = [1, 1]} : vector<32x512xf32> to vector<32x17xf32>
    %252 = vector.extract_strided_slice %250 {offsets = [0, 0], sizes = [32, 495], strides = [1, 1]} : vector<32x512xf32> to vector<32x495xf32>
    %253 = tpu.concatenate %251, %252 in 1 : vector<32x17xf32>, vector<32x495xf32> -> vector<32x512xf32>
    %c1_i32_88 = arith.constant 1 : i32
    %254 = vector.broadcast %c1_i32_88 : i32 to vector<1x512xi32>
    %255 = arith.cmpi sge, %0, %254 : vector<1x512xi32>
    %c1_i32_89 = arith.constant 1 : i32
    %256 = vector.broadcast %c1_i32_89 : i32 to vector<1x512xi32>
    %257 = arith.cmpi sge, %1, %256 : vector<1x512xi32>
    %258 = arith.andi %255, %257 : vector<1x512xi1>
    %cst_90 = arith.constant 0.000000e+00 : f32
    %259 = vector.shape_cast %258 : vector<1x512xi1> to vector<1x512xi1>
    %260 = vector.broadcast %259 : vector<1x512xi1> to vector<32x512xi1>
    %261 = vector.broadcast %cst_90 : f32 to vector<32x512xf32>
    %262 = arith.select %260, %253, %261 : vector<32x512xi1>, vector<32x512xf32>
    %c0_91 = arith.constant 0 : index
    %c0_92 = arith.constant 0 : index
    %263 = vector.load %arg12[%c0_91, %c0_92] : memref<288x512xf32, #tpu.memory_space<vmem>>, vector<32x512xf32>
    tpu.vector_store %arg12[%c0_91, %c0_92], %262 {strides = array<i32>} : memref<288x512xf32, #tpu.memory_space<vmem>>, vector<32x512xf32>,
    %264 = vector.extract_strided_slice %250 {offsets = [0, 496], sizes = [32, 16], strides = [1, 1]} : vector<32x512xf32> to vector<32x16xf32>
    %265 = vector.extract_strided_slice %250 {offsets = [0, 0], sizes = [32, 496], strides = [1, 1]} : vector<32x512xf32> to vector<32x496xf32>
    %266 = tpu.concatenate %264, %265 in 1 : vector<32x16xf32>, vector<32x496xf32> -> vector<32x512xf32>
    %c1_i32_93 = arith.constant 1 : i32
    %267 = vector.broadcast %c1_i32_93 : i32 to vector<1x512xi32>
    %268 = arith.cmpi sge, %0, %267 : vector<1x512xi32>
    %cst_94 = arith.constant 0.000000e+00 : f32
    %269 = vector.shape_cast %268 : vector<1x512xi1> to vector<1x512xi1>
    %270 = vector.broadcast %269 : vector<1x512xi1> to vector<32x512xi1>
    %271 = vector.broadcast %cst_94 : f32 to vector<32x512xf32>
    %272 = arith.select %270, %266, %271 : vector<32x512xi1>, vector<32x512xf32>
    %c32_95 = arith.constant 32 : index
    %c0_96 = arith.constant 0 : index
    %273 = vector.load %arg12[%c32_95, %c0_96] : memref<288x512xf32, #tpu.memory_space<vmem>>, vector<32x512xf32>
    tpu.vector_store %arg12[%c32_95, %c0_96], %272 {strides = array<i32>} : memref<288x512xf32, #tpu.memory_space<vmem>>, vector<32x512xf32>,
    %274 = vector.extract_strided_slice %250 {offsets = [0, 497], sizes = [32, 15], strides = [1, 1]} : vector<32x512xf32> to vector<32x15xf32>
    %275 = vector.extract_strided_slice %250 {offsets = [0, 0], sizes = [32, 497], strides = [1, 1]} : vector<32x512xf32> to vector<32x497xf32>
    %276 = tpu.concatenate %274, %275 in 1 : vector<32x15xf32>, vector<32x497xf32> -> vector<32x512xf32>
    %c1_i32_97 = arith.constant 1 : i32
    %277 = vector.broadcast %c1_i32_97 : i32 to vector<1x512xi32>
    %278 = arith.cmpi sge, %0, %277 : vector<1x512xi32>
    %c14_i32_98 = arith.constant 14 : i32
    %279 = vector.broadcast %c14_i32_98 : i32 to vector<1x512xi32>
    %280 = arith.cmpi sle, %1, %279 : vector<1x512xi32>
    %281 = arith.andi %278, %280 : vector<1x512xi1>
    %cst_99 = arith.constant 0.000000e+00 : f32
    %282 = vector.shape_cast %281 : vector<1x512xi1> to vector<1x512xi1>
    %283 = vector.broadcast %282 : vector<1x512xi1> to vector<32x512xi1>
    %284 = vector.broadcast %cst_99 : f32 to vector<32x512xf32>
    %285 = arith.select %283, %276, %284 : vector<32x512xi1>, vector<32x512xf32>
    %c64_100 = arith.constant 64 : index
    %c0_101 = arith.constant 0 : index
    %286 = vector.load %arg12[%c64_100, %c0_101] : memref<288x512xf32, #tpu.memory_space<vmem>>, vector<32x512xf32>
    tpu.vector_store %arg12[%c64_100, %c0_101], %285 {strides = array<i32>} : memref<288x512xf32, #tpu.memory_space<vmem>>, vector<32x512xf32>,
    %287 = vector.extract_strided_slice %250 {offsets = [0, 511], sizes = [32, 1], strides = [1, 1]} : vector<32x512xf32> to vector<32x1xf32>
    %288 = vector.extract_strided_slice %250 {offsets = [0, 0], sizes = [32, 511], strides = [1, 1]} : vector<32x512xf32> to vector<32x511xf32>
    %289 = tpu.concatenate %287, %288 in 1 : vector<32x1xf32>, vector<32x511xf32> -> vector<32x512xf32>
    %c1_i32_102 = arith.constant 1 : i32
    %290 = vector.broadcast %c1_i32_102 : i32 to vector<1x512xi32>
    %291 = arith.cmpi sge, %1, %290 : vector<1x512xi32>
    %cst_103 = arith.constant 0.000000e+00 : f32
    %292 = vector.shape_cast %291 : vector<1x512xi1> to vector<1x512xi1>
    %293 = vector.broadcast %292 : vector<1x512xi1> to vector<32x512xi1>
    %294 = vector.broadcast %cst_103 : f32 to vector<32x512xf32>
    %295 = arith.select %293, %289, %294 : vector<32x512xi1>, vector<32x512xf32>
    %c96_104 = arith.constant 96 : index
    %c0_105 = arith.constant 0 : index
    %296 = vector.load %arg12[%c96_104, %c0_105] : memref<288x512xf32, #tpu.memory_space<vmem>>, vector<32x512xf32>
    tpu.vector_store %arg12[%c96_104, %c0_105], %295 {strides = array<i32>} : memref<288x512xf32, #tpu.memory_space<vmem>>, vector<32x512xf32>,
    %c128_106 = arith.constant 128 : index
    %c0_107 = arith.constant 0 : index
    %297 = vector.load %arg12[%c128_106, %c0_107] : memref<288x512xf32, #tpu.memory_space<vmem>>, vector<32x512xf32>
    tpu.vector_store %arg12[%c128_106, %c0_107], %250 {strides = array<i32>} : memref<288x512xf32, #tpu.memory_space<vmem>>, vector<32x512xf32>,
    %298 = vector.extract_strided_slice %250 {offsets = [0, 1], sizes = [32, 511], strides = [1, 1]} : vector<32x512xf32> to vector<32x511xf32>
    %299 = vector.extract_strided_slice %250 {offsets = [0, 0], sizes = [32, 1], strides = [1, 1]} : vector<32x512xf32> to vector<32x1xf32>
    %300 = tpu.concatenate %298, %299 in 1 : vector<32x511xf32>, vector<32x1xf32> -> vector<32x512xf32>
    %c14_i32_108 = arith.constant 14 : i32
    %301 = vector.broadcast %c14_i32_108 : i32 to vector<1x512xi32>
    %302 = arith.cmpi sle, %1, %301 : vector<1x512xi32>
    %cst_109 = arith.constant 0.000000e+00 : f32
    %303 = vector.shape_cast %302 : vector<1x512xi1> to vector<1x512xi1>
    %304 = vector.broadcast %303 : vector<1x512xi1> to vector<32x512xi1>
    %305 = vector.broadcast %cst_109 : f32 to vector<32x512xf32>
    %306 = arith.select %304, %300, %305 : vector<32x512xi1>, vector<32x512xf32>
    %c160_110 = arith.constant 160 : index
    %c0_111 = arith.constant 0 : index
    %307 = vector.load %arg12[%c160_110, %c0_111] : memref<288x512xf32, #tpu.memory_space<vmem>>, vector<32x512xf32>
    tpu.vector_store %arg12[%c160_110, %c0_111], %306 {strides = array<i32>} : memref<288x512xf32, #tpu.memory_space<vmem>>, vector<32x512xf32>,
    %308 = vector.extract_strided_slice %250 {offsets = [0, 15], sizes = [32, 497], strides = [1, 1]} : vector<32x512xf32> to vector<32x497xf32>
    %309 = vector.extract_strided_slice %250 {offsets = [0, 0], sizes = [32, 15], strides = [1, 1]} : vector<32x512xf32> to vector<32x15xf32>
    %310 = tpu.concatenate %308, %309 in 1 : vector<32x497xf32>, vector<32x15xf32> -> vector<32x512xf32>
    %c14_i32_112 = arith.constant 14 : i32
    %311 = vector.broadcast %c14_i32_112 : i32 to vector<1x512xi32>
    %312 = arith.cmpi sle, %0, %311 : vector<1x512xi32>
    %c1_i32_113 = arith.constant 1 : i32
    %313 = vector.broadcast %c1_i32_113 : i32 to vector<1x512xi32>
    %314 = arith.cmpi sge, %1, %313 : vector<1x512xi32>
    %315 = arith.andi %312, %314 : vector<1x512xi1>
    %cst_114 = arith.constant 0.000000e+00 : f32
    %316 = vector.shape_cast %315 : vector<1x512xi1> to vector<1x512xi1>
    %317 = vector.broadcast %316 : vector<1x512xi1> to vector<32x512xi1>
    %318 = vector.broadcast %cst_114 : f32 to vector<32x512xf32>
    %319 = arith.select %317, %310, %318 : vector<32x512xi1>, vector<32x512xf32>
    %c192_115 = arith.constant 192 : index
    %c0_116 = arith.constant 0 : index
    %320 = vector.load %arg12[%c192_115, %c0_116] : memref<288x512xf32, #tpu.memory_space<vmem>>, vector<32x512xf32>
    tpu.vector_store %arg12[%c192_115, %c0_116], %319 {strides = array<i32>} : memref<288x512xf32, #tpu.memory_space<vmem>>, vector<32x512xf32>,
    %321 = vector.extract_strided_slice %250 {offsets = [0, 16], sizes = [32, 496], strides = [1, 1]} : vector<32x512xf32> to vector<32x496xf32>
    %322 = vector.extract_strided_slice %250 {offsets = [0, 0], sizes = [32, 16], strides = [1, 1]} : vector<32x512xf32> to vector<32x16xf32>
    %323 = tpu.concatenate %321, %322 in 1 : vector<32x496xf32>, vector<32x16xf32> -> vector<32x512xf32>
    %c14_i32_117 = arith.constant 14 : i32
    %324 = vector.broadcast %c14_i32_117 : i32 to vector<1x512xi32>
    %325 = arith.cmpi sle, %0, %324 : vector<1x512xi32>
    %cst_118 = arith.constant 0.000000e+00 : f32
    %326 = vector.shape_cast %325 : vector<1x512xi1> to vector<1x512xi1>
    %327 = vector.broadcast %326 : vector<1x512xi1> to vector<32x512xi1>
    %328 = vector.broadcast %cst_118 : f32 to vector<32x512xf32>
    %329 = arith.select %327, %323, %328 : vector<32x512xi1>, vector<32x512xf32>
    %c224_119 = arith.constant 224 : index
    %c0_120 = arith.constant 0 : index
    %330 = vector.load %arg12[%c224_119, %c0_120] : memref<288x512xf32, #tpu.memory_space<vmem>>, vector<32x512xf32>
    tpu.vector_store %arg12[%c224_119, %c0_120], %329 {strides = array<i32>} : memref<288x512xf32, #tpu.memory_space<vmem>>, vector<32x512xf32>,
    %331 = vector.extract_strided_slice %250 {offsets = [0, 17], sizes = [32, 495], strides = [1, 1]} : vector<32x512xf32> to vector<32x495xf32>
    %332 = vector.extract_strided_slice %250 {offsets = [0, 0], sizes = [32, 17], strides = [1, 1]} : vector<32x512xf32> to vector<32x17xf32>
    %333 = tpu.concatenate %331, %332 in 1 : vector<32x495xf32>, vector<32x17xf32> -> vector<32x512xf32>
    %c14_i32_121 = arith.constant 14 : i32
    %334 = vector.broadcast %c14_i32_121 : i32 to vector<1x512xi32>
    %335 = arith.cmpi sle, %0, %334 : vector<1x512xi32>
    %c14_i32_122 = arith.constant 14 : i32
    %336 = vector.broadcast %c14_i32_122 : i32 to vector<1x512xi32>
    %337 = arith.cmpi sle, %1, %336 : vector<1x512xi32>
    %338 = arith.andi %335, %337 : vector<1x512xi1>
    %cst_123 = arith.constant 0.000000e+00 : f32
    %339 = vector.shape_cast %338 : vector<1x512xi1> to vector<1x512xi1>
    %340 = vector.broadcast %339 : vector<1x512xi1> to vector<32x512xi1>
    %341 = vector.broadcast %cst_123 : f32 to vector<32x512xf32>
    %342 = arith.select %340, %333, %341 : vector<32x512xi1>, vector<32x512xf32>
    %c256_124 = arith.constant 256 : index
    %c0_125 = arith.constant 0 : index
    %343 = vector.load %arg12[%c256_124, %c0_125] : memref<288x512xf32, #tpu.memory_space<vmem>>, vector<32x512xf32>
    tpu.vector_store %arg12[%c256_124, %c0_125], %342 {strides = array<i32>} : memref<288x512xf32, #tpu.memory_space<vmem>>, vector<32x512xf32>,
    %c0_126 = arith.constant 0 : index
    %c0_127 = arith.constant 0 : index
    %344 = vector.load %arg12[%c0_126, %c0_127] : memref<288x512xf32, #tpu.memory_space<vmem>>, vector<288x512xf32>
    %c0_128 = arith.constant 0 : index
    %c0_129 = arith.constant 0 : index
    %345 = vector.load %arg9[%c0_128, %c0_129] : memref<3x288xf32, #tpu.memory_space<vmem>>, vector<3x288xf32>
    %cst_130 = arith.constant dense<0.000000e+00> : vector<3x512xf32>
    %346 = tpu.matmul %345, %344, %cst_130 {dimension_numbers = #tpu.dot_dimension_numbers<[1], [0], [0], [1], [0, 0, 1, 1], [], []>} : vector<3x288xf32>, vector<288x512xf32>, vector<3x512xf32> -> vector<3x512xf32>
    %c0_131 = arith.constant 0 : index
    %c0_132 = arith.constant 0 : index
    %347 = vector.load %arg10[%c0_131, %c0_132] : memref<3x1xf32, #tpu.memory_space<vmem>>, vector<3x1xf32>
    %348 = vector.broadcast %347 : vector<3x1xf32> to vector<3x512xf32>
    %349 = arith.addf %346, %348 : vector<3x512xf32>
    %c0_133 = arith.constant 0 : index
    %c0_134 = arith.constant 0 : index
    %350 = vector.load %arg11[%c0_133, %c0_134] : memref<3x512xf32, #tpu.memory_space<vmem>>, vector<3x512xf32>
    tpu.vector_store %arg11[%c0_133, %c0_134], %349 {strides = array<i32>} : memref<3x512xf32, #tpu.memory_space<vmem>>, vector<3x512xf32>,
    return
  }
  func.func @transform_0(%arg0: i32) -> (i32, i32) {
    %c0_i32 = arith.constant 0 : i32
    %c0_i32_0 = arith.constant 0 : i32
    return %c0_i32, %arg0 : i32, i32
  }
  func.func @transform_1(%arg0: i32) -> (i32, i32) {
    %c0_i32 = arith.constant 0 : i32
    %c0_i32_0 = arith.constant 0 : i32
    return %c0_i32, %arg0 : i32, i32
  }
  func.func @transform_2(%arg0: i32) -> (i32, i32) {
    %c0_i32 = arith.constant 0 : i32
    %c0_i32_0 = arith.constant 0 : i32
    %c0_i32_1 = arith.constant 0 : i32
    return %c0_i32, %c0_i32_0 : i32, i32
  }
  func.func @transform_3(%arg0: i32) -> (i32, i32) {
    %c0_i32 = arith.constant 0 : i32
    %c0_i32_0 = arith.constant 0 : i32
    %c0_i32_1 = arith.constant 0 : i32
    return %c0_i32, %c0_i32_0 : i32, i32
  }
  func.func @transform_4(%arg0: i32) -> (i32, i32) {
    %c0_i32 = arith.constant 0 : i32
    %c0_i32_0 = arith.constant 0 : i32
    %c0_i32_1 = arith.constant 0 : i32
    return %c0_i32, %c0_i32_0 : i32, i32
  }
  func.func @transform_5(%arg0: i32) -> (i32, i32) {
    %c0_i32 = arith.constant 0 : i32
    %c0_i32_0 = arith.constant 0 : i32
    %c0_i32_1 = arith.constant 0 : i32
    return %c0_i32, %c0_i32_0 : i32, i32
  }
  func.func @transform_6(%arg0: i32) -> (i32, i32) {
    %c0_i32 = arith.constant 0 : i32
    %c0_i32_0 = arith.constant 0 : i32
    %c0_i32_1 = arith.constant 0 : i32
    return %c0_i32, %c0_i32_0 : i32, i32
  }
  func.func @transform_7(%arg0: i32) -> (i32, i32) {
    %c0_i32 = arith.constant 0 : i32
    %c0_i32_0 = arith.constant 0 : i32
    %c0_i32_1 = arith.constant 0 : i32
    return %c0_i32, %c0_i32_0 : i32, i32
  }
  func.func @transform_8(%arg0: i32) -> (i32, i32) {
    %c0_i32 = arith.constant 0 : i32
    %c0_i32_0 = arith.constant 0 : i32
    %c0_i32_1 = arith.constant 0 : i32
    return %c0_i32, %c0_i32_0 : i32, i32
  }
  func.func @transform_9(%arg0: i32) -> (i32, i32) {
    %c0_i32 = arith.constant 0 : i32
    %c0_i32_0 = arith.constant 0 : i32
    %c0_i32_1 = arith.constant 0 : i32
    return %c0_i32, %c0_i32_0 : i32, i32
  }
  func.func @transform_10(%arg0: i32) -> (i32, i32) {
    %c0_i32 = arith.constant 0 : i32
    %c0_i32_0 = arith.constant 0 : i32
    return %c0_i32, %arg0 : i32, i32
  }
}

</mosaic_0001>

<llo_original>
// kernel: tpu_custom_call.1
$region0: #{tpu_custom_call.1}
  #allocation0 [shape = 'u32[]', space=smem, size = 0x4, offset = 0x4, fixed_abs, tag = 'smem constant byte address 0x4 - core index']
  #allocation1 [shape = 'u32[144,128]{1,0:T(1,128)}', space=vmem, size = 0x12000, scoped, tag = 'internal scratch']
  %s0 = inlined_call_operand.hbm [shape: f32[8,384], index: 0, kind: input, shape index: {}]
  %s1 = inlined_call_operand.hbm [shape: f32[8,384], index: 1, kind: output, shape index: {}]
  %s2 = sld [smem:[#allocation0]]
  $region18: #{tpu_custom_call.1} parent=0
    _
  %s4 = ssub.s32 1, %s2
  %s5 = scalar_select 0, %s4, %s2
  $region1: #{tpu_custom_call.1} parent=0
    #allocation2 [shape = 'u8[12288]{0}', space=vmem, size = 0x3000, scoped, tag = 'input window, operand 0, single buffered']
    #allocation3 [shape = 's32[1]{0}', space=sflag, size = 0x4, scoped, tag = 'scoped memory for tpu_custom_call.1']
    #allocation4 [shape = 's32[1]{0}', space=sflag, size = 0x4, scoped, tag = 'scoped memory for tpu_custom_call.1']
    #allocation5 [shape = 'u8[12288]{0}', space=vmem, size = 0x3000, scoped, tag = 'output window, operand 0, single buffered']
    %6 = vsyncpa [#allocation3], 0
    %7 = vsyncpa [#allocation4], 0
    // Predicated region
    $region2: #{tpu_custom_call.1} parent=1 // pred_check
      _
    $region3: #{tpu_custom_call.1} parent=1 // pred_check_branch
      %9 = sbr.rel (0) target = $region5
    $region4: #{tpu_custom_call.1} parent=1 // pred_region
      %s11 = ssub.s32 384, 384
      %12 = vsyncadd [#allocation3], %s11
      %s14 = sshll.u32 [#allocation2], 4
      %s15 = int_to_ptr.vmem [resolvable:$true] %s14
      %17 = dma.hbm_to_vmem [thread:$0]  %s0, 384, %s15, [#allocation3]
    $region5: #{tpu_custom_call.1} parent=1 // pred_fallthru
      _
    // Predicated region
    $region6: #{tpu_custom_call.1} parent=1 // pred_check
      _
    $region7: #{tpu_custom_call.1} parent=1 // pred_check_branch
      %19 = sbr.rel (0) target = $region9
    $region8: #{tpu_custom_call.1} parent=1 // pred_region
      %20 = dma.done [#allocation3], 384
    $region9: #{tpu_custom_call.1} parent=1 // pred_fallthru
      _
    %v21 = vld [vmem:[#allocation2] sm:$0xff]
    %v22 = vld [vmem:[#allocation2 + $0x8] sm:$0xff]
    %v23 = vld [vmem:[#allocation2 + $0x10] sm:$0xff]
    %24 = vrot.lane.b32.xlu0 %v21, 5
    %v25 = vpop.permute.xlu0 %24
    %26 = vrot.lane.b32.xlu0 %v22, 5
    %v27 = vpop.permute.xlu0 %26
    %28 = vrot.lane.b32.xlu0 %v23, 5
    %v29 = vpop.permute.xlu0 %28
    %v30 = vlaneseq
    %v31 = vand.u32 %v30, 127
    %vm32 = vcmp.lt.s32.totalorder %v31, 5
    %v33 = vsel %vm32, %v27, %v29
    %v34 = vsel %vm32, %v25, %v27
    %v35 = vsel %vm32, %v29, %v25
    %36 = vst [vmem:[#allocation5] sm:$0xff] %v35
    %37 = vst [vmem:[#allocation5 + $0x8] sm:$0xff] %v34
    %38 = vst [vmem:[#allocation5 + $0x10] sm:$0xff] %v33
    // Predicated region
    $region10: #{tpu_custom_call.1} parent=1 // pred_check
      _
    $region11: #{tpu_custom_call.1} parent=1 // pred_check_branch
      %40 = sbr.rel (0) target = $region13
    $region12: #{tpu_custom_call.1} parent=1 // pred_region
      %s42 = ssub.s32 384, 384
      %43 = vsyncadd [#allocation4], %s42
      %s45 = sshll.u32 [#allocation5], 4
      %s46 = int_to_ptr.vmem [resolvable:$true] %s45
      %48 = dma.vmem_to_hbm [thread:$0]  %s46, 384, %s1, [#allocation4]
    $region13: #{tpu_custom_call.1} parent=1 // pred_fallthru
      _
    // Predicated region
    $region14: #{tpu_custom_call.1} parent=1 // pred_check
      _
    $region15: #{tpu_custom_call.1} parent=1 // pred_check_branch
      %50 = sbr.rel (0) target = $region17
    $region16: #{tpu_custom_call.1} parent=1 // pred_region
      %51 = dma.done [#allocation4], 384
    $region17: #{tpu_custom_call.1} parent=1 // pred_fallthru
      _
    %52 = vsyncpa [#allocation3], 1
    %53 = vsyncpa [#allocation4], 1

// kernel: tpu_custom_call.1
$region0: #{tpu_custom_call.1}
  #allocation0 [shape = 'u32[]', space=smem, size = 0x4, offset = 0x4, fixed_abs, tag = 'smem constant byte address 0x4 - core index']
  #allocation1 [shape = 'u32[144,128]{1,0:T(1,128)}', space=vmem, size = 0x12000, scoped, tag = 'internal scratch']
  #allocation2 [shape = 'f32[288,512]{1,0:T(8,128)}', space=vmem, size = 0x90000, scoped, tag = 'scratch operand']
  %s0 = inlined_call_operand.vmem [shape: f32[8,512], index: 0, kind: input, shape index: {}]
  %s1 = inlined_call_operand.vmem [shape: s32[4,512], index: 1, kind: input, shape index: {}]
  %s2 = inlined_call_operand.vmem [shape: f32[32,72], index: 2, kind: input, shape index: {}]
  %s3 = inlined_call_operand.vmem [shape: f32[32,1], index: 3, kind: input, shape index: {}]
  %s4 = inlined_call_operand.vmem [shape: f32[32,288], index: 4, kind: input, shape index: {}]
  %s5 = inlined_call_operand.vmem [shape: f32[32,1], index: 5, kind: input, shape index: {}]
  %s6 = inlined_call_operand.vmem [shape: f32[128,32], index: 6, kind: input, shape index: {}]
  %s7 = inlined_call_operand.vmem [shape: f32[32,1], index: 7, kind: input, shape index: {}]
  %s8 = inlined_call_operand.vmem [shape: f32[3,288], index: 8, kind: input, shape index: {}]
  %s9 = inlined_call_operand.vmem [shape: f32[3,1], index: 9, kind: input, shape index: {}]
  %s10 = inlined_call_operand.hbm [shape: f32[3,512], index: 10, kind: output, shape index: {}]
  %s11 = sld [smem:[#allocation0]]
  $region50: #{tpu_custom_call.1} parent=0
    _
  %s13 = ssub.s32 1, %s11
  %s14 = scalar_select 0, %s13, %s11
  $region1: #{tpu_custom_call.1} parent=0
    #allocation3 [shape = 'u8[8192]{0}', space=vmem, size = 0x2000, scoped, tag = 'output window, operand 0, single buffered']
    #allocation4 [shape = 's32[1]{0}', space=sflag, size = 0x4, scoped, tag = 'scoped memory for tpu_custom_call.1']
    %15 = vsyncpa [#allocation4], 0
    // Predicated region
    $region2: #{tpu_custom_call.1} parent=1 // pred_check
      _
    $region3: #{tpu_custom_call.1} parent=1 // pred_check_branch
      %17 = sbr.rel (0) target = $region5
    $region4: #{tpu_custom_call.1} parent=1 // pred_region
      _
    $region5: #{tpu_custom_call.1} parent=1 // pred_fallthru
      _
    // Predicated region
    $region6: #{tpu_custom_call.1} parent=1 // pred_check
      _
    $region7: #{tpu_custom_call.1} parent=1 // pred_check_branch
      %19 = sbr.rel (0) target = $region9
    $region8: #{tpu_custom_call.1} parent=1 // pred_region
      _
    $region9: #{tpu_custom_call.1} parent=1 // pred_fallthru
      _
    // Predicated region
    $region10: #{tpu_custom_call.1} parent=1 // pred_check
      _
    $region11: #{tpu_custom_call.1} parent=1 // pred_check_branch
      %21 = sbr.rel (0) target = $region13
    $region12: #{tpu_custom_call.1} parent=1 // pred_region
      _
    $region13: #{tpu_custom_call.1} parent=1 // pred_fallthru
      _
    // Predicated region
    $region14: #{tpu_custom_call.1} parent=1 // pred_check
      _
    $region15: #{tpu_custom_call.1} parent=1 // pred_check_branch
      %23 = sbr.rel (0) target = $region17
    $region16: #{tpu_custom_call.1} parent=1 // pred_region
      _
    $region17: #{tpu_custom_call.1} parent=1 // pred_fallthru
      _
    // Predicated region
    $region18: #{tpu_custom_call.1} parent=1 // pred_check
      _
    $region19: #{tpu_custom_call.1} parent=1 // pred_check_branch
      %25 = sbr.rel (0) target = $region21
    $region20: #{tpu_custom_call.1} parent=1 // pred_region
      _
    $region21: #{tpu_custom_call.1} parent=1 // pred_fallthru
      _
    // Predicated region
    $region22: #{tpu_custom_call.1} parent=1 // pred_check
      _
    $region23: #{tpu_custom_call.1} parent=1 // pred_check_branch
      %27 = sbr.rel (0) target = $region25
    $region24: #{tpu_custom_call.1} parent=1 // pred_region
      _
    $region25: #{tpu_custom_call.1} parent=1 // pred_fallthru
      _
    // Predicated region
    $region26: #{tpu_custom_call.1} parent=1 // pred_check
      _
    $region27: #{tpu_custom_call.1} parent=1 // pred_check_branch
      %29 = sbr.rel (0) target = $region29
    $region28: #{tpu_custom_call.1} parent=1 // pred_region
      _
    $region29: #{tpu_custom_call.1} parent=1 // pred_fallthru
      _
    // Predicated region
    $region30: #{tpu_custom_call.1} parent=1 // pred_check
      _
    $region31: #{tpu_custom_call.1} parent=1 // pred_check_branch
      %31 = sbr.rel (0) target = $region33
    $region32: #{tpu_custom_call.1} parent=1 // pred_region
      _
    $region33: #{tpu_custom_call.1} parent=1 // pred_fallthru
      _
    // Predicated region
    $region34: #{tpu_custom_call.1} parent=1 // pred_check
      _
    $region35: #{tpu_custom_call.1} parent=1 // pred_check_branch
      %33 = sbr.rel (0) target = $region37
    $region36: #{tpu_custom_call.1} parent=1 // pred_region
      _
    $region37: #{tpu_custom_call.1} parent=1 // pred_fallthru
      _
    // Predicated region
    $region38: #{tpu_custom_call.1} parent=1 // pred_check
      _
    $region39: #{tpu_custom_call.1} parent=1 // pred_check_branch
      %35 = sbr.rel (0) target = $region41
    $region40: #{tpu_custom_call.1} parent=1 // pred_region
      _
    $region41: #{tpu_custom_call.1} parent=1 // pred_fallthru
      _
    %v36 = vld [vmem:[%s1] ss:$4 sm:$0xf]
    %s37 = scalar_lea.vmem %s1, 1
    %v38 = vld [vmem:[%s37] ss:$4 sm:$0xf]
    %s39 = scalar_lea.vmem %s1, 2
    %v40 = vld [vmem:[%s39] ss:$4 sm:$0xf]
    %vm41 = vcmp.eq.s32.totalorder %v40, 0
    %s42 = scalar_lea.vmem %s1, 3
    %v43 = vld [vmem:[%s42] ss:$4 sm:$0xf]
    %vm44 = vcmp.eq.s32.totalorder %v43, 0
    %v45 = vld [vmem:[%s0] sm:$0xff]
    %v46 = vld [vmem:[%s0 + $0x8] sm:$0xff]
    %v47 = vld [vmem:[%s0 + $0x10] sm:$0xff]
    %v48 = vld [vmem:[%s0 + $0x18] sm:$0xff]
    %50 = vrot.lane.b32.xlu0 %v48, 17
    %v51 = vpop.permute.xlu0 %50
    %56 = vrot.lane.b32.xlu0 %v45, 17
    %v57 = vpop.permute.xlu0 %56
    %58 = vrot.lane.b32.xlu0 %v46, 17
    %v59 = vpop.permute.xlu0 %58
    %60 = vrot.lane.b32.xlu0 %v47, 17
    %v61 = vpop.permute.xlu0 %60
    %vm62 = vcmask 138240
    %v63 = vsel %vm62, %v57, %v59
    %v64 = vsel %vm62, %v59, %v61
    %v65 = vsel %vm62, %v61, %v51
    %v70 = vsel %vm62, %v51, %v57
    %vm71 = vcmp.ge.s32.totalorder %v36, 1
    %vm72 = vcmp.ge.s32.totalorder %v38, 1
    %vm73 = vmand %vm71, %vm72
    %v74 = vsel %vm73, 1, 0
    %v75 = vlaneseq
    %v76 = vshrl.u32 %v75, 7
    %v77 = vsub.s32 0, %v76
    %v78 = vrot.slane %v74, %v77
    %v79 = vlaneseq
    %v80 = vshrl.u32 %v79, 7
    %v81 = vsub.s32 1, %v80
    %v82 = vrot.slane %v74, %v81
    %v83 = vlaneseq
    %v84 = vshrl.u32 %v83, 7
    %v85 = vsub.s32 2, %v84
    %v86 = vrot.slane %v74, %v85
    %v87 = vlaneseq
    %v88 = vshrl.u32 %v87, 7
    %v89 = vsub.s32 3, %v88
    %v90 = vrot.slane %v74, %v89
    %vm91 = vcmp.eq.s32.totalorder %v78, 1
    %vm92 = vcmp.eq.s32.totalorder %v82, 1
    %vm93 = vcmp.eq.s32.totalorder %v86, 1
    %vm94 = vcmp.eq.s32.totalorder %v90, 1
    %v95 = vsel %vm91, %v70, 0.0
    %v96 = vsel %vm92, %v63, 0.0
    %v97 = vsel %vm93, %v64, 0.0
    %v98 = vsel %vm94, %v65, 0.0
    %99 = vst [vmem:[#allocation2] sm:$0xff] %v95
    %100 = vst [vmem:[#allocation2 + $0x8] sm:$0xff] %v96
    %101 = vst [vmem:[#allocation2 + $0x10] sm:$0xff] %v97
    %102 = vst [vmem:[#allocation2 + $0x18] sm:$0xff] %v98
    %103 = vrot.lane.b32.xlu0 %v48, 16
    %v104 = vpop.permute.xlu0 %103
    %106 = vrot.lane.b32.xlu0 %v45, 16
    %v107 = vpop.permute.xlu0 %106
    %108 = vrot.lane.b32.xlu0 %v46, 16
    %v109 = vpop.permute.xlu0 %108
    %110 = vrot.lane.b32.xlu0 %v47, 16
    %v111 = vpop.permute.xlu0 %110
    %vm112 = vcmask 130048
    %v113 = vsel %vm112, %v107, %v109
    %v114 = vsel %vm112, %v109, %v111
    %v115 = vsel %vm112, %v111, %v104
    %v120 = vsel %vm112, %v104, %v107
    %v121 = vsel %vm71, 1, 0
    %v122 = vlaneseq
    %v123 = vshrl.u32 %v122, 7
    %v124 = vsub.s32 0, %v123
    %v125 = vrot.slane %v121, %v124
    %v126 = vlaneseq
    %v127 = vshrl.u32 %v126, 7
    %v128 = vsub.s32 1, %v127
    %v129 = vrot.slane %v121, %v128
    %v130 = vlaneseq
    %v131 = vshrl.u32 %v130, 7
    %v132 = vsub.s32 2, %v131
    %v133 = vrot.slane %v121, %v132
    %v134 = vlaneseq
    %v135 = vshrl.u32 %v134, 7
    %v136 = vsub.s32 3, %v135
    %v137 = vrot.slane %v121, %v136
    %vm138 = vcmp.eq.s32.totalorder %v125, 1
    %vm139 = vcmp.eq.s32.totalorder %v129, 1
    %vm140 = vcmp.eq.s32.totalorder %v133, 1
    %vm141 = vcmp.eq.s32.totalorder %v137, 1
    %v142 = vsel %vm138, %v120, 0.0
    %v143 = vsel %vm139, %v113, 0.0
    %v144 = vsel %vm140, %v114, 0.0
    %v145 = vsel %vm141, %v115, 0.0
    %146 = vst [vmem:[#allocation2 + $0x20] sm:$0xff] %v142
    %147 = vst [vmem:[#allocation2 + $0x28] sm:$0xff] %v143
    %148 = vst [vmem:[#allocation2 + $0x30] sm:$0xff] %v144
    %149 = vst [vmem:[#allocation2 + $0x38] sm:$0xff] %v145
    %150 = vrot.lane.b32.xlu0 %v48, 15
    %v151 = vpop.permute.xlu0 %150
    %153 = vrot.lane.b32.xlu0 %v45, 15
    %v154 = vpop.permute.xlu0 %153
    %155 = vrot.lane.b32.xlu0 %v46, 15
    %v156 = vpop.permute.xlu0 %155
    %157 = vrot.lane.b32.xlu0 %v47, 15
    %v158 = vpop.permute.xlu0 %157
    %vm159 = vcmask 121856
    %v160 = vsel %vm159, %v154, %v156
    %v161 = vsel %vm159, %v156, %v158
    %v162 = vsel %vm159, %v158, %v151
    %v167 = vsel %vm159, %v151, %v154
    %vm168 = vcmp.le.s32.totalorder %v38, 14
    %vm169 = vmand %vm71, %vm168
    %v170 = vsel %vm169, 1, 0
    %v171 = vlaneseq
    %v172 = vshrl.u32 %v171, 7
    %v173 = vsub.s32 0, %v172
    %v174 = vrot.slane %v170, %v173
    %v175 = vlaneseq
    %v176 = vshrl.u32 %v175, 7
    %v177 = vsub.s32 1, %v176
    %v178 = vrot.slane %v170, %v177
    %v179 = vlaneseq
    %v180 = vshrl.u32 %v179, 7
    %v181 = vsub.s32 2, %v180
    %v182 = vrot.slane %v170, %v181
    %v183 = vlaneseq
    %v184 = vshrl.u32 %v183, 7
    %v185 = vsub.s32 3, %v184
    %v186 = vrot.slane %v170, %v185
    %vm187 = vcmp.eq.s32.totalorder %v174, 1
    %vm188 = vcmp.eq.s32.totalorder %v178, 1
    %vm189 = vcmp.eq.s32.totalorder %v182, 1
    %vm190 = vcmp.eq.s32.totalorder %v186, 1
    %v191 = vsel %vm187, %v167, 0.0
    %v192 = vsel %vm188, %v160, 0.0
    %v193 = vsel %vm189, %v161, 0.0
    %v194 = vsel %vm190, %v162, 0.0
    %195 = vst [vmem:[#allocation2 + $0x40] sm:$0xff] %v191
    %196 = vst [vmem:[#allocation2 + $0x48] sm:$0xff] %v192
    %197 = vst [vmem:[#allocation2 + $0x50] sm:$0xff] %v193
    %198 = vst [vmem:[#allocation2 + $0x58] sm:$0xff] %v194
    %199 = vrot.lane.b32.xlu0 %v48, 1
    %v200 = vpop.permute.xlu0 %199
    %202 = vrot.lane.b32.xlu0 %v45, 1
    %v203 = vpop.permute.xlu0 %202
    %204 = vrot.lane.b32.xlu0 %v46, 1
    %v205 = vpop.permute.xlu0 %204
    %206 = vrot.lane.b32.xlu0 %v47, 1
    %v207 = vpop.permute.xlu0 %206
    %vm208 = vcmask 7168
    %v209 = vsel %vm208, %v203, %v205
    %v210 = vsel %vm208, %v205, %v207
    %v211 = vsel %vm208, %v207, %v200
    %v216 = vsel %vm208, %v200, %v203
    %v217 = vsel %vm72, 1, 0
    %v218 = vlaneseq
    %v219 = vshrl.u32 %v218, 7
    %v220 = vsub.s32 0, %v219
    %v221 = vrot.slane %v217, %v220
    %v222 = vlaneseq
    %v223 = vshrl.u32 %v222, 7
    %v224 = vsub.s32 1, %v223
    %v225 = vrot.slane %v217, %v224
    %v226 = vlaneseq
    %v227 = vshrl.u32 %v226, 7
    %v228 = vsub.s32 2, %v227
    %v229 = vrot.slane %v217, %v228
    %v230 = vlaneseq
    %v231 = vshrl.u32 %v230, 7
    %v232 = vsub.s32 3, %v231
    %v233 = vrot.slane %v217, %v232
    %vm234 = vcmp.eq.s32.totalorder %v221, 1
    %vm235 = vcmp.eq.s32.totalorder %v225, 1
    %vm236 = vcmp.eq.s32.totalorder %v229, 1
    %vm237 = vcmp.eq.s32.totalorder %v233, 1
    %v238 = vsel %vm234, %v216, 0.0
    %v239 = vsel %vm235, %v209, 0.0
    %v240 = vsel %vm236, %v210, 0.0
    %v241 = vsel %vm237, %v211, 0.0
    %242 = vst [vmem:[#allocation2 + $0x60] sm:$0xff] %v238
    %243 = vst [vmem:[#allocation2 + $0x68] sm:$0xff] %v239
    %244 = vst [vmem:[#allocation2 + $0x70] sm:$0xff] %v240
    %245 = vst [vmem:[#allocation2 + $0x78] sm:$0xff] %v241
    %246 = vst [vmem:[#allocation2 + $0x80] sm:$0xff] %v45
    %247 = vst [vmem:[#allocation2 + $0x88] sm:$0xff] %v46
    %248 = vst [vmem:[#allocation2 + $0x90] sm:$0xff] %v47
    %249 = vst [vmem:[#allocation2 + $0x98] sm:$0xff] %v48
    %250 = vrot.lane.b32.xlu0 %v45, 127
    %v251 = vpop.permute.xlu0 %250
    %252 = vrot.lane.b32.xlu0 %v46, 127
    %v253 = vpop.permute.xlu0 %252
    %254 = vrot.lane.b32.xlu0 %v47, 127
    %v255 = vpop.permute.xlu0 %254
    %256 = vrot.lane.b32.xlu0 %v48, 127
    %v257 = vpop.permute.xlu0 %256
    %vm258 = vcmask 1039360
    %v259 = vsel %vm258, %v251, %v253
    %v260 = vsel %vm258, %v253, %v255
    %v261 = vsel %vm258, %v255, %v257
    %v267 = vsel %vm258, %v257, %v251
    %v268 = vsel %vm168, 1, 0
    %v269 = vlaneseq
    %v270 = vshrl.u32 %v269, 7
    %v271 = vsub.s32 0, %v270
    %v272 = vrot.slane %v268, %v271
    %v273 = vlaneseq
    %v274 = vshrl.u32 %v273, 7
    %v275 = vsub.s32 1, %v274
    %v276 = vrot.slane %v268, %v275
    %v277 = vlaneseq
    %v278 = vshrl.u32 %v277, 7
    %v279 = vsub.s32 2, %v278
    %v280 = vrot.slane %v268, %v279
    %v281 = vlaneseq
    %v282 = vshrl.u32 %v281, 7
    %v283 = vsub.s32 3, %v282
    %v284 = vrot.slane %v268, %v283
    %vm285 = vcmp.eq.s32.totalorder %v272, 1
    %vm286 = vcmp.eq.s32.totalorder %v276, 1
    %vm287 = vcmp.eq.s32.totalorder %v280, 1
    %vm288 = vcmp.eq.s32.totalorder %v284, 1
    %v289 = vsel %vm285, %v259, 0.0
    %v290 = vsel %vm286, %v260, 0.0
    %v291 = vsel %vm287, %v261, 0.0
    %v292 = vsel %vm288, %v267, 0.0
    %293 = vst [vmem:[#allocation2 + $0xa0] sm:$0xff] %v289
    %294 = vst [vmem:[#allocation2 + $0xa8] sm:$0xff] %v290
    %295 = vst [vmem:[#allocation2 + $0xb0] sm:$0xff] %v291
    %296 = vst [vmem:[#allocation2 + $0xb8] sm:$0xff] %v292
    %297 = vrot.lane.b32.xlu0 %v45, 113
    %v298 = vpop.permute.xlu0 %297
    %299 = vrot.lane.b32.xlu0 %v46, 113
    %v300 = vpop.permute.xlu0 %299
    %301 = vrot.lane.b32.xlu0 %v47, 113
    %v302 = vpop.permute.xlu0 %301
    %303 = vrot.lane.b32.xlu0 %v48, 113
    %v304 = vpop.permute.xlu0 %303
    %vm305 = vcmask 924672
    %v306 = vsel %vm305, %v298, %v300
    %v307 = vsel %vm305, %v300, %v302
    %v308 = vsel %vm305, %v302, %v304
    %v314 = vsel %vm305, %v304, %v298
    %vm315 = vcmp.le.s32.totalorder %v36, 14
    %vm316 = vmand %vm315, %vm72
    %v317 = vsel %vm316, 1, 0
    %v318 = vlaneseq
    %v319 = vshrl.u32 %v318, 7
    %v320 = vsub.s32 0, %v319
    %v321 = vrot.slane %v317, %v320
    %v322 = vlaneseq
    %v323 = vshrl.u32 %v322, 7
    %v324 = vsub.s32 1, %v323
    %v325 = vrot.slane %v317, %v324
    %v326 = vlaneseq
    %v327 = vshrl.u32 %v326, 7
    %v328 = vsub.s32 2, %v327
    %v329 = vrot.slane %v317, %v328
    %v330 = vlaneseq
    %v331 = vshrl.u32 %v330, 7
    %v332 = vsub.s32 3, %v331
    %v333 = vrot.slane %v317, %v332
    %vm334 = vcmp.eq.s32.totalorder %v321, 1
    %vm335 = vcmp.eq.s32.totalorder %v325, 1
    %vm336 = vcmp.eq.s32.totalorder %v329, 1
    %vm337 = vcmp.eq.s32.totalorder %v333, 1
    %v338 = vsel %vm334, %v306, 0.0
    %v339 = vsel %vm335, %v307, 0.0
    %v340 = vsel %vm336, %v308, 0.0
    %v341 = vsel %vm337, %v314, 0.0
    %342 = vst [vmem:[#allocation2 + $0xc0] sm:$0xff] %v338
    %343 = vst [vmem:[#allocation2 + $0xc8] sm:$0xff] %v339
    %344 = vst [vmem:[#allocation2 + $0xd0] sm:$0xff] %v340
    %345 = vst [vmem:[#allocation2 + $0xd8] sm:$0xff] %v341
    %346 = vrot.lane.b32.xlu0 %v45, 112
    %v347 = vpop.permute.xlu0 %346
    %348 = vrot.lane.b32.xlu0 %v46, 112
    %v349 = vpop.permute.xlu0 %348
    %350 = vrot.lane.b32.xlu0 %v47, 112
    %v351 = vpop.permute.xlu0 %350
    %352 = vrot.lane.b32.xlu0 %v48, 112
    %v353 = vpop.permute.xlu0 %352
    %vm354 = vcmask 916480
    %v355 = vsel %vm354, %v347, %v349
    %v356 = vsel %vm354, %v349, %v351
    %v357 = vsel %vm354, %v351, %v353
    %v363 = vsel %vm354, %v353, %v347
    %v364 = vsel %vm315, 1, 0
    %v365 = vlaneseq
    %v366 = vshrl.u32 %v365, 7
    %v367 = vsub.s32 0, %v366
    %v368 = vrot.slane %v364, %v367
    %v369 = vlaneseq
    %v370 = vshrl.u32 %v369, 7
    %v371 = vsub.s32 1, %v370
    %v372 = vrot.slane %v364, %v371
    %v373 = vlaneseq
    %v374 = vshrl.u32 %v373, 7
    %v375 = vsub.s32 2, %v374
    %v376 = vrot.slane %v364, %v375
    %v377 = vlaneseq
    %v378 = vshrl.u32 %v377, 7
    %v379 = vsub.s32 3, %v378
    %v380 = vrot.slane %v364, %v379
    %vm381 = vcmp.eq.s32.totalorder %v368, 1
    %vm382 = vcmp.eq.s32.totalorder %v372, 1
    %vm383 = vcmp.eq.s32.totalorder %v376, 1
    %vm384 = vcmp.eq.s32.totalorder %v380, 1
    %v385 = vsel %vm381, %v355, 0.0
    %v386 = vsel %vm382, %v356, 0.0
    %v387 = vsel %vm383, %v357, 0.0
    %v388 = vsel %vm384, %v363, 0.0
    %389 = vst [vmem:[#allocation2 + $0xe0] sm:$0xff] %v385
    %390 = vst [vmem:[#allocation2 + $0xe8] sm:$0xff] %v386
    %391 = vst [vmem:[#allocation2 + $0xf0] sm:$0xff] %v387
    %392 = vst [vmem:[#allocation2 + $0xf8] sm:$0xff] %v388
    %393 = vrot.lane.b32.xlu0 %v45, 111
    %v394 = vpop.permute.xlu0 %393
    %395 = vrot.lane.b32.xlu0 %v46, 111
    %v396 = vpop.permute.xlu0 %395
    %397 = vrot.lane.b32.xlu0 %v47, 111
    %v398 = vpop.permute.xlu0 %397
    %399 = vrot.lane.b32.xlu0 %v48, 111
    %v400 = vpop.permute.xlu0 %399
    %vm401 = vcmask 908288
    %v402 = vsel %vm401, %v394, %v396
    %v403 = vsel %vm401, %v396, %v398
    %v404 = vsel %vm401, %v398, %v400
    %v410 = vsel %vm401, %v400, %v394
    %vm411 = vmand %vm315, %vm168
    %v412 = vsel %vm411, 1, 0
    %v413 = vlaneseq
    %v414 = vshrl.u32 %v413, 7
    %v415 = vsub.s32 0, %v414
    %v416 = vrot.slane %v412, %v415
    %v417 = vlaneseq
    %v418 = vshrl.u32 %v417, 7
    %v419 = vsub.s32 1, %v418
    %v420 = vrot.slane %v412, %v419
    %v421 = vlaneseq
    %v422 = vshrl.u32 %v421, 7
    %v423 = vsub.s32 2, %v422
    %v424 = vrot.slane %v412, %v423
    %v425 = vlaneseq
    %v426 = vshrl.u32 %v425, 7
    %v427 = vsub.s32 3, %v426
    %v428 = vrot.slane %v412, %v427
    %vm429 = vcmp.eq.s32.totalorder %v416, 1
    %vm430 = vcmp.eq.s32.totalorder %v420, 1
    %vm431 = vcmp.eq.s32.totalorder %v424, 1
    %vm432 = vcmp.eq.s32.totalorder %v428, 1
    %v433 = vsel %vm429, %v402, 0.0
    %v434 = vsel %vm430, %v403, 0.0
    %v435 = vsel %vm431, %v404, 0.0
    %v436 = vsel %vm432, %v410, 0.0
    %437 = vst [vmem:[#allocation2 + $0x100] sm:$0xff] %v433
    %438 = vst [vmem:[#allocation2 + $0x108] sm:$0xff] %v434
    %439 = vst [vmem:[#allocation2 + $0x110] sm:$0xff] %v435
    %440 = vst [vmem:[#allocation2 + $0x118] sm:$0xff] %v436
    %v441 = vld [vmem:[#allocation2] sm:$0xff]
    %v442 = vld [vmem:[#allocation2 + $0x8] sm:$0xff]
    %v443 = vld [vmem:[#allocation2 + $0x10] sm:$0xff]
    %v444 = vld [vmem:[#allocation2 + $0x18] sm:$0xff]
    %v445 = vld [vmem:[#allocation2 + $0x20] sm:$0xff]
    %v446 = vld [vmem:[#allocation2 + $0x28] sm:$0xff]
    %v447 = vld [vmem:[#allocation2 + $0x30] sm:$0xff]
    %v448 = vld [vmem:[#allocation2 + $0x38] sm:$0xff]
    %v449 = vld [vmem:[#allocation2 + $0x40] sm:$0xff]
    %v450 = vld [vmem:[#allocation2 + $0x48] sm:$0xff]
    %v451 = vld [vmem:[#allocation2 + $0x50] sm:$0xff]
    %v452 = vld [vmem:[#allocation2 + $0x58] sm:$0xff]
    %v453 = vld [vmem:[#allocation2 + $0x60] sm:$0xff]
    %v454 = vld [vmem:[#allocation2 + $0x68] sm:$0xff]
    %v455 = vld [vmem:[#allocation2 + $0x70] sm:$0xff]
    %v456 = vld [vmem:[#allocation2 + $0x78] sm:$0xff]
    %v457 = vld [vmem:[#allocation2 + $0x80] sm:$0xff]
    %v458 = vld [vmem:[#allocation2 + $0x88] sm:$0xff]
    %v459 = vld [vmem:[#allocation2 + $0x90] sm:$0xff]
    %v460 = vld [vmem:[#allocation2 + $0x98] sm:$0xff]
    %v461 = vld [vmem:[#allocation2 + $0xa0] sm:$0xff]
    %v462 = vld [vmem:[#allocation2 + $0xa8] sm:$0xff]
    %v463 = vld [vmem:[#allocation2 + $0xb0] sm:$0xff]
    %v464 = vld [vmem:[#allocation2 + $0xb8] sm:$0xff]
    %v465 = vld [vmem:[#allocation2 + $0xc0] sm:$0xff]
    %v466 = vld [vmem:[#allocation2 + $0xc8] sm:$0xff]
    %v467 = vld [vmem:[#allocation2 + $0xd0] sm:$0xff]
    %v468 = vld [vmem:[#allocation2 + $0xd8] sm:$0xff]
    %v469 = vld [vmem:[#allocation2 + $0xe0] sm:$0xff]
    %v470 = vld [vmem:[#allocation2 + $0xe8] sm:$0xff]
    %v471 = vld [vmem:[#allocation2 + $0xf0] sm:$0xff]
    %v472 = vld [vmem:[#allocation2 + $0xf8] sm:$0xff]
    %v473 = vld [vmem:[#allocation2 + $0x100] sm:$0xff]
    %v474 = vld [vmem:[#allocation2 + $0x108] sm:$0xff]
    %v475 = vld [vmem:[#allocation2 + $0x110] sm:$0xff]
    %v476 = vld [vmem:[#allocation2 + $0x118] sm:$0xff]
    %v477 = vld [vmem:[%s2] sm:$0xff]
    %v478 = vld [vmem:[%s2 + $0x8] sm:$0xff]
    %v479 = vld [vmem:[%s2 + $0x10] sm:$0xff]
    %v480 = vld [vmem:[%s2 + $0x18] sm:$0xff]
    %v481 = vld [vmem:[%s3] sm:$0xff]
    %v482 = vld [vmem:[%s3 + $0x8] sm:$0xff]
    %v483 = vld [vmem:[%s3 + $0x10] sm:$0xff]
    %v484 = vld [vmem:[%s3 + $0x18] sm:$0xff]
    %486 = vset.pattern.permute.xlu0 0
    %487 = vperm.xlu0 %486, %v481
    %v488 = vpop.permute.xlu0 %487
    %491 = vset.pattern.permute.xlu0 0
    %492 = vperm.xlu0 %491, %v482
    %v493 = vpop.permute.xlu0 %492
    %496 = vset.pattern.permute.xlu0 0
    %497 = vperm.xlu0 %496, %v483
    %v498 = vpop.permute.xlu0 %497
    %501 = vset.pattern.permute.xlu0 0
    %502 = vperm.xlu0 %501, %v484
    %v503 = vpop.permute.xlu0 %502
    %vm505 = vcmask 588800
    %v507 = vsel %vm505, %v477, 0
    %v510 = vsel %vm505, %v478, 0
    %v513 = vsel %vm505, %v479, 0
    %v516 = vsel %vm505, %v480, 0
    %518 = vmatprep.subr.mxu0 0.0
    %519 = vmatpush1.msra.mxu0 0.0
    %520 = vmatprep.subr.mxu0 0.0
    %521 = vmatpush1.msra.mxu0 0.0
    %522 = vmatprep.subr.mxu0 0.0
    %523 = vmatpush1.msra.mxu0 0.0
    %524 = vmatprep.subr.mxu0 0.0
    %525 = vmatpush1.msra.mxu0 0.0
    %526 = vmatprep.subr.mxu0 0.0
    %527 = vmatpush1.msra.mxu0 0.0
    %528 = vmatprep.subr.mxu0 0.0
    %529 = vmatpush1.msra.mxu0 0.0
    %530 = vmatprep.subr.mxu0 0.0
    %531 = vmatpush1.msra.mxu0 0.0
    %532 = vmatprep.subr.mxu0 %v474
    %533 = vmatpush1.msra.mxu0 %v473
    %534 = vmatprep.subr.mxu0 %v470
    %535 = vmatpush1.msra.mxu0 %v469
    %536 = vmatprep.subr.mxu0 %v466
    %537 = vmatpush1.msra.mxu0 %v465
    %538 = vmatprep.subr.mxu0 %v462
    %539 = vmatpush1.msra.mxu0 %v461
    %540 = vmatprep.subr.mxu0 %v458
    %541 = vmatpush1.msra.mxu0 %v457
    %542 = vmatprep.subr.mxu0 %v454
    %543 = vmatpush1.msra.mxu0 %v453
    %544 = vmatprep.subr.mxu0 %v450
    %545 = vmatpush1.msra.mxu0 %v449
    %546 = vmatprep.subr.mxu0 %v446
    %547 = vmatpush1.msra.mxu0 %v445
    %548 = vmatprep.subr.mxu0 %v442
    %549 = vmatpush1.msra.mxu0 %v441
    %550 = vmatprep.subr.mxu0 0.0
    %551 = vmatpush2.msra.mxu0 0.0
    %552 = vmatprep.subr.mxu0 0.0
    %553 = vmatpush2.msra.mxu0 0.0
    %554 = vmatprep.subr.mxu0 0.0
    %555 = vmatpush2.msra.mxu0 0.0
    %556 = vmatprep.subr.mxu0 0.0
    %557 = vmatpush2.msra.mxu0 0.0
    %558 = vmatprep.subr.mxu0 0.0
    %559 = vmatpush2.msra.mxu0 0.0
    %560 = vmatprep.subr.mxu0 0.0
    %561 = vmatpush2.msra.mxu0 0.0
    %562 = vmatprep.subr.mxu0 0.0
    %563 = vmatpush2.msra.mxu0 0.0
    %564 = vmatprep.subr.mxu0 0.0
    %565 = vmatpush2.msra.mxu0 0.0
    %566 = vmatprep.subr.mxu0 0.0
    %567 = vmatpush2.msra.mxu0 0.0
    %568 = vmatprep.subr.mxu0 0.0
    %569 = vmatpush2.msra.mxu0 0.0
    %570 = vmatprep.subr.mxu0 0.0
    %571 = vmatpush2.msra.mxu0 0.0
    %572 = vmatprep.subr.mxu0 0.0
    %573 = vmatpush2.msra.mxu0 0.0
    %574 = vmatprep.subr.mxu0 0.0
    %575 = vmatpush2.msra.mxu0 0.0
    %576 = vmatprep.subr.mxu0 0.0
    %577 = vmatpush2.msra.mxu0 0.0
    %578 = vmatprep.subr.mxu0 0.0
    %579 = vmatpush2.msra.mxu0 0.0
    %580 = vmatprep.subr.mxu0 0.0
    %581 = vmatpush2.msra.mxu0 0.0
    %582 = vmatprep.mubr.f32.mxu0 0.0
    %583 = vmatmul.mubr.f32.gmra.mxu0 %v507
    %v584 = vpop.f32.mrf.mxu0
    %v585 = vadd.f32 %v488, %v584
    %v586 = vpop.f32.mrf.mxu0
    %v587 = vadd.f32 %v488, %v586
    %588 = vmatprep.mubr.f32.mxu0 0.0
    %589 = vmatmul.mubr.f32.gmra.mxu0 %v510
    %v590 = vpop.f32.mrf.mxu0
    %v591 = vadd.f32 %v493, %v590
    %v592 = vpop.f32.mrf.mxu0
    %v593 = vadd.f32 %v493, %v592
    %594 = vmatprep.mubr.f32.mxu0 0.0
    %595 = vmatmul.mubr.f32.gmra.mxu0 %v513
    %v596 = vpop.f32.mrf.mxu0
    %v597 = vadd.f32 %v498, %v596
    %v598 = vpop.f32.mrf.mxu0
    %v599 = vadd.f32 %v498, %v598
    %600 = vmatprep.mubr.f32.mxu0 0.0
    %601 = vmatmul.mubr.f32.gmra.mxu0 %v516
    %v602 = vpop.f32.mrf.mxu0
    %v603 = vadd.f32 %v503, %v602
    %v604 = vpop.f32.mrf.mxu0
    %v605 = vadd.f32 %v503, %v604
    %606 = vdwg.mxu0
    %607 = vmatprep.subr.mxu0 0.0
    %608 = vmatpush1.msra.mxu0 0.0
    %609 = vmatprep.subr.mxu0 0.0
    %610 = vmatpush1.msra.mxu0 0.0
    %611 = vmatprep.subr.mxu0 0.0
    %612 = vmatpush1.msra.mxu0 0.0
    %613 = vmatprep.subr.mxu0 0.0
    %614 = vmatpush1.msra.mxu0 0.0
    %615 = vmatprep.subr.mxu0 0.0
    %616 = vmatpush1.msra.mxu0 0.0
    %617 = vmatprep.subr.mxu0 0.0
    %618 = vmatpush1.msra.mxu0 0.0
    %619 = vmatprep.subr.mxu0 0.0
    %620 = vmatpush1.msra.mxu0 0.0
    %621 = vmatprep.subr.mxu0 %v476
    %622 = vmatpush1.msra.mxu0 %v475
    %623 = vmatprep.subr.mxu0 %v472
    %624 = vmatpush1.msra.mxu0 %v471
    %625 = vmatprep.subr.mxu0 %v468
    %626 = vmatpush1.msra.mxu0 %v467
    %627 = vmatprep.subr.mxu0 %v464
    %628 = vmatpush1.msra.mxu0 %v463
    %629 = vmatprep.subr.mxu0 %v460
    %630 = vmatpush1.msra.mxu0 %v459
    %631 = vmatprep.subr.mxu0 %v456
    %632 = vmatpush1.msra.mxu0 %v455
    %633 = vmatprep.subr.mxu0 %v452
    %634 = vmatpush1.msra.mxu0 %v451
    %635 = vmatprep.subr.mxu0 %v448
    %636 = vmatpush1.msra.mxu0 %v447
    %637 = vmatprep.subr.mxu0 %v444
    %638 = vmatpush1.msra.mxu0 %v443
    %639 = vmatprep.subr.mxu0 0.0
    %640 = vmatpush2.msra.mxu0 0.0
    %641 = vmatprep.subr.mxu0 0.0
    %642 = vmatpush2.msra.mxu0 0.0
    %643 = vmatprep.subr.mxu0 0.0
    %644 = vmatpush2.msra.mxu0 0.0
    %645 = vmatprep.subr.mxu0 0.0
    %646 = vmatpush2.msra.mxu0 0.0
    %647 = vmatprep.subr.mxu0 0.0
    %648 = vmatpush2.msra.mxu0 0.0
    %649 = vmatprep.subr.mxu0 0.0
    %650 = vmatpush2.msra.mxu0 0.0
    %651 = vmatprep.subr.mxu0 0.0
    %652 = vmatpush2.msra.mxu0 0.0
    %653 = vmatprep.subr.mxu0 0.0
    %654 = vmatpush2.msra.mxu0 0.0
    %655 = vmatprep.subr.mxu0 0.0
    %656 = vmatpush2.msra.mxu0 0.0
    %657 = vmatprep.subr.mxu0 0.0
    %658 = vmatpush2.msra.mxu0 0.0
    %659 = vmatprep.subr.mxu0 0.0
    %660 = vmatpush2.msra.mxu0 0.0
    %661 = vmatprep.subr.mxu0 0.0
    %662 = vmatpush2.msra.mxu0 0.0
    %663 = vmatprep.subr.mxu0 0.0
    %664 = vmatpush2.msra.mxu0 0.0
    %665 = vmatprep.subr.mxu0 0.0
    %666 = vmatpush2.msra.mxu0 0.0
    %667 = vmatprep.subr.mxu0 0.0
    %668 = vmatpush2.msra.mxu0 0.0
    %669 = vmatprep.subr.mxu0 0.0
    %670 = vmatpush2.msra.mxu0 0.0
    %671 = vmatprep.mubr.f32.mxu0 0.0
    %672 = vmatmul.mubr.f32.gmra.mxu0 %v507
    %v673 = vpop.f32.mrf.mxu0
    %v674 = vadd.f32 %v488, %v673
    %v675 = vpop.f32.mrf.mxu0
    %v676 = vadd.f32 %v488, %v675
    %677 = vmatprep.mubr.f32.mxu0 0.0
    %678 = vmatmul.mubr.f32.gmra.mxu0 %v510
    %v679 = vpop.f32.mrf.mxu0
    %v680 = vadd.f32 %v493, %v679
    %v681 = vpop.f32.mrf.mxu0
    %v682 = vadd.f32 %v493, %v681
    %683 = vmatprep.mubr.f32.mxu0 0.0
    %684 = vmatmul.mubr.f32.gmra.mxu0 %v513
    %v685 = vpop.f32.mrf.mxu0
    %v686 = vadd.f32 %v498, %v685
    %v687 = vpop.f32.mrf.mxu0
    %v688 = vadd.f32 %v498, %v687
    %689 = vmatprep.mubr.f32.mxu0 0.0
    %690 = vmatmul.mubr.f32.gmra.mxu0 %v516
    %v691 = vpop.f32.mrf.mxu0
    %v692 = vadd.f32 %v503, %v691
    %v693 = vpop.f32.mrf.mxu0
    %v694 = vadd.f32 %v503, %v693
    %695 = vdwg.mxu0
    %v696 = vmax.f32 %v585, 0.0
    %v697 = vmax.f32 %v587, 0.0
    %v698 = vmax.f32 %v674, 0.0
    %v699 = vmax.f32 %v676, 0.0
    %v700 = vmax.f32 %v591, 0.0
    %v701 = vmax.f32 %v593, 0.0
    %v702 = vmax.f32 %v680, 0.0
    %v703 = vmax.f32 %v682, 0.0
    %v704 = vmax.f32 %v597, 0.0
    %v705 = vmax.f32 %v599, 0.0
    %v706 = vmax.f32 %v686, 0.0
    %v707 = vmax.f32 %v688, 0.0
    %v708 = vmax.f32 %v603, 0.0
    %v709 = vmax.f32 %v605, 0.0
    %v710 = vmax.f32 %v692, 0.0
    %v711 = vmax.f32 %v694, 0.0
    %716 = vrot.lane.b32.xlu0 %v699, 17
    %v717 = vpop.permute.xlu0 %716
    %718 = vrot.lane.b32.xlu0 %v703, 17
    %v719 = vpop.permute.xlu0 %718
    %720 = vrot.lane.b32.xlu0 %v707, 17
    %v721 = vpop.permute.xlu0 %720
    %722 = vrot.lane.b32.xlu0 %v711, 17
    %v723 = vpop.permute.xlu0 %722
    %740 = vrot.lane.b32.xlu0 %v696, 17
    %v741 = vpop.permute.xlu0 %740
    %742 = vrot.lane.b32.xlu0 %v697, 17
    %v743 = vpop.permute.xlu0 %742
    %744 = vrot.lane.b32.xlu0 %v698, 17
    %v745 = vpop.permute.xlu0 %744
    %746 = vrot.lane.b32.xlu0 %v700, 17
    %v747 = vpop.permute.xlu0 %746
    %748 = vrot.lane.b32.xlu0 %v701, 17
    %v749 = vpop.permute.xlu0 %748
    %750 = vrot.lane.b32.xlu0 %v702, 17
    %v751 = vpop.permute.xlu0 %750
    %752 = vrot.lane.b32.xlu0 %v704, 17
    %v753 = vpop.permute.xlu0 %752
    %754 = vrot.lane.b32.xlu0 %v705, 17
    %v755 = vpop.permute.xlu0 %754
    %756 = vrot.lane.b32.xlu0 %v706, 17
    %v757 = vpop.permute.xlu0 %756
    %758 = vrot.lane.b32.xlu0 %v708, 17
    %v759 = vpop.permute.xlu0 %758
    %760 = vrot.lane.b32.xlu0 %v709, 17
    %v761 = vpop.permute.xlu0 %760
    %762 = vrot.lane.b32.xlu0 %v710, 17
    %v763 = vpop.permute.xlu0 %762
    %v764 = vsel %vm62, %v741, %v743
    %v765 = vsel %vm62, %v743, %v745
    %v766 = vsel %vm62, %v745, %v717
    %v767 = vsel %vm62, %v747, %v749
    %v768 = vsel %vm62, %v749, %v751
    %v769 = vsel %vm62, %v751, %v719
    %v770 = vsel %vm62, %v753, %v755
    %v771 = vsel %vm62, %v755, %v757
    %v772 = vsel %vm62, %v757, %v721
    %v773 = vsel %vm62, %v759, %v761
    %v774 = vsel %vm62, %v761, %v763
    %v775 = vsel %vm62, %v763, %v723
    %v792 = vsel %vm62, %v717, %v741
    %v793 = vsel %vm62, %v719, %v747
    %v794 = vsel %vm62, %v721, %v753
    %v795 = vsel %vm62, %v723, %v759
    %v796 = vsel %vm91, %v792, 0.0
    %v797 = vsel %vm92, %v764, 0.0
    %v798 = vsel %vm93, %v765, 0.0
    %v799 = vsel %vm94, %v766, 0.0
    %v800 = vsel %vm91, %v793, 0.0
    %v801 = vsel %vm92, %v767, 0.0
    %v802 = vsel %vm93, %v768, 0.0
    %v803 = vsel %vm94, %v769, 0.0
    %v804 = vsel %vm91, %v794, 0.0
    %v805 = vsel %vm92, %v770, 0.0
    %v806 = vsel %vm93, %v771, 0.0
    %v807 = vsel %vm94, %v772, 0.0
    %v808 = vsel %vm91, %v795, 0.0
    %v809 = vsel %vm92, %v773, 0.0
    %v810 = vsel %vm93, %v774, 0.0
    %v811 = vsel %vm94, %v775, 0.0
    %812 = vst [vmem:[#allocation2] sm:$0xff] %v796
    %813 = vst [vmem:[#allocation2 + $0x8] sm:$0xff] %v797
    %814 = vst [vmem:[#allocation2 + $0x10] sm:$0xff] %v798
    %815 = vst [vmem:[#allocation2 + $0x18] sm:$0xff] %v799
    %816 = vst [vmem:[#allocation2 + $0x20] sm:$0xff] %v800
    %817 = vst [vmem:[#allocation2 + $0x28] sm:$0xff] %v801
    %818 = vst [vmem:[#allocation2 + $0x30] sm:$0xff] %v802
    %819 = vst [vmem:[#allocation2 + $0x38] sm:$0xff] %v803
    %820 = vst [vmem:[#allocation2 + $0x40] sm:$0xff] %v804
    %821 = vst [vmem:[#allocation2 + $0x48] sm:$0xff] %v805
    %822 = vst [vmem:[#allocation2 + $0x50] sm:$0xff] %v806
    %823 = vst [vmem:[#allocation2 + $0x58] sm:$0xff] %v807
    %824 = vst [vmem:[#allocation2 + $0x60] sm:$0xff] %v808
    %825 = vst [vmem:[#allocation2 + $0x68] sm:$0xff] %v809
    %826 = vst [vmem:[#allocation2 + $0x70] sm:$0xff] %v810
    %827 = vst [vmem:[#allocation2 + $0x78] sm:$0xff] %v811
    %828 = vrot.lane.b32.xlu0 %v699, 16
    %v829 = vpop.permute.xlu0 %828
    %830 = vrot.lane.b32.xlu0 %v703, 16
    %v831 = vpop.permute.xlu0 %830
    %832 = vrot.lane.b32.xlu0 %v707, 16
    %v833 = vpop.permute.xlu0 %832
    %834 = vrot.lane.b32.xlu0 %v711, 16
    %v835 = vpop.permute.xlu0 %834
    %840 = vrot.lane.b32.xlu0 %v696, 16
    %v841 = vpop.permute.xlu0 %840
    %842 = vrot.lane.b32.xlu0 %v697, 16
    %v843 = vpop.permute.xlu0 %842
    %844 = vrot.lane.b32.xlu0 %v698, 16
    %v845 = vpop.permute.xlu0 %844
    %846 = vrot.lane.b32.xlu0 %v700, 16
    %v847 = vpop.permute.xlu0 %846
    %848 = vrot.lane.b32.xlu0 %v701, 16
    %v849 = vpop.permute.xlu0 %848
    %850 = vrot.lane.b32.xlu0 %v702, 16
    %v851 = vpop.permute.xlu0 %850
    %852 = vrot.lane.b32.xlu0 %v704, 16
    %v853 = vpop.permute.xlu0 %852
    %854 = vrot.lane.b32.xlu0 %v705, 16
    %v855 = vpop.permute.xlu0 %854
    %856 = vrot.lane.b32.xlu0 %v706, 16
    %v857 = vpop.permute.xlu0 %856
    %858 = vrot.lane.b32.xlu0 %v708, 16
    %v859 = vpop.permute.xlu0 %858
    %860 = vrot.lane.b32.xlu0 %v709, 16
    %v861 = vpop.permute.xlu0 %860
    %862 = vrot.lane.b32.xlu0 %v710, 16
    %v863 = vpop.permute.xlu0 %862
    %v864 = vsel %vm112, %v841, %v843
    %v865 = vsel %vm112, %v843, %v845
    %v866 = vsel %vm112, %v845, %v829
    %v867 = vsel %vm112, %v847, %v849
    %v868 = vsel %vm112, %v849, %v851
    %v869 = vsel %vm112, %v851, %v831
    %v870 = vsel %vm112, %v853, %v855
    %v871 = vsel %vm112, %v855, %v857
    %v872 = vsel %vm112, %v857, %v833
    %v873 = vsel %vm112, %v859, %v861
    %v874 = vsel %vm112, %v861, %v863
    %v875 = vsel %vm112, %v863, %v835
    %v892 = vsel %vm112, %v829, %v841
    %v893 = vsel %vm112, %v831, %v847
    %v894 = vsel %vm112, %v833, %v853
    %v895 = vsel %vm112, %v835, %v859
    %v896 = vsel %vm138, %v892, 0.0
    %v897 = vsel %vm139, %v864, 0.0
    %v898 = vsel %vm140, %v865, 0.0
    %v899 = vsel %vm141, %v866, 0.0
    %v900 = vsel %vm138, %v893, 0.0
    %v901 = vsel %vm139, %v867, 0.0
    %v902 = vsel %vm140, %v868, 0.0
    %v903 = vsel %vm141, %v869, 0.0
    %v904 = vsel %vm138, %v894, 0.0
    %v905 = vsel %vm139, %v870, 0.0
    %v906 = vsel %vm140, %v871, 0.0
    %v907 = vsel %vm141, %v872, 0.0
    %v908 = vsel %vm138, %v895, 0.0
    %v909 = vsel %vm139, %v873, 0.0
    %v910 = vsel %vm140, %v874, 0.0
    %v911 = vsel %vm141, %v875, 0.0
    %912 = vst [vmem:[#allocation2 + $0x80] sm:$0xff] %v896
    %913 = vst [vmem:[#allocation2 + $0x88] sm:$0xff] %v897
    %914 = vst [vmem:[#allocation2 + $0x90] sm:$0xff] %v898
    %915 = vst [vmem:[#allocation2 + $0x98] sm:$0xff] %v899
    %916 = vst [vmem:[#allocation2 + $0xa0] sm:$0xff] %v900
    %917 = vst [vmem:[#allocation2 + $0xa8] sm:$0xff] %v901
    %918 = vst [vmem:[#allocation2 + $0xb0] sm:$0xff] %v902
    %919 = vst [vmem:[#allocation2 + $0xb8] sm:$0xff] %v903
    %920 = vst [vmem:[#allocation2 + $0xc0] sm:$0xff] %v904
    %921 = vst [vmem:[#allocation2 + $0xc8] sm:$0xff] %v905
    %922 = vst [vmem:[#allocation2 + $0xd0] sm:$0xff] %v906
    %923 = vst [vmem:[#allocation2 + $0xd8] sm:$0xff] %v907
    %924 = vst [vmem:[#allocation2 + $0xe0] sm:$0xff] %v908
    %925 = vst [vmem:[#allocation2 + $0xe8] sm:$0xff] %v909
    %926 = vst [vmem:[#allocation2 + $0xf0] sm:$0xff] %v910
    %927 = vst [vmem:[#allocation2 + $0xf8] sm:$0xff] %v911
    %928 = vrot.lane.b32.xlu0 %v699, 15
    %v929 = vpop.permute.xlu0 %928
    %930 = vrot.lane.b32.xlu0 %v703, 15
    %v931 = vpop.permute.xlu0 %930
    %932 = vrot.lane.b32.xlu0 %v707, 15
    %v933 = vpop.permute.xlu0 %932
    %934 = vrot.lane.b32.xlu0 %v711, 15
    %v935 = vpop.permute.xlu0 %934
    %940 = vrot.lane.b32.xlu0 %v696, 15
    %v941 = vpop.permute.xlu0 %940
    %942 = vrot.lane.b32.xlu0 %v697, 15
    %v943 = vpop.permute.xlu0 %942
    %944 = vrot.lane.b32.xlu0 %v698, 15
    %v945 = vpop.permute.xlu0 %944
    %946 = vrot.lane.b32.xlu0 %v700, 15
    %v947 = vpop.permute.xlu0 %946
    %948 = vrot.lane.b32.xlu0 %v701, 15
    %v949 = vpop.permute.xlu0 %948
    %950 = vrot.lane.b32.xlu0 %v702, 15
    %v951 = vpop.permute.xlu0 %950
    %952 = vrot.lane.b32.xlu0 %v704, 15
    %v953 = vpop.permute.xlu0 %952
    %954 = vrot.lane.b32.xlu0 %v705, 15
    %v955 = vpop.permute.xlu0 %954
    %956 = vrot.lane.b32.xlu0 %v706, 15
    %v957 = vpop.permute.xlu0 %956
    %958 = vrot.lane.b32.xlu0 %v708, 15
    %v959 = vpop.permute.xlu0 %958
    %960 = vrot.lane.b32.xlu0 %v709, 15
    %v961 = vpop.permute.xlu0 %960
    %962 = vrot.lane.b32.xlu0 %v710, 15
    %v963 = vpop.permute.xlu0 %962
    %v964 = vsel %vm159, %v941, %v943
    %v965 = vsel %vm159, %v943, %v945
    %v966 = vsel %vm159, %v945, %v929
    %v967 = vsel %vm159, %v947, %v949
    %v968 = vsel %vm159, %v949, %v951
    %v969 = vsel %vm159, %v951, %v931
    %v970 = vsel %vm159, %v953, %v955
    %v971 = vsel %vm159, %v955, %v957
    %v972 = vsel %vm159, %v957, %v933
    %v973 = vsel %vm159, %v959, %v961
    %v974 = vsel %vm159, %v961, %v963
    %v975 = vsel %vm159, %v963, %v935
    %v992 = vsel %vm159, %v929, %v941
    %v993 = vsel %vm159, %v931, %v947
    %v994 = vsel %vm159, %v933, %v953
    %v995 = vsel %vm159, %v935, %v959
    %v996 = vsel %vm187, %v992, 0.0
    %v997 = vsel %vm188, %v964, 0.0
    %v998 = vsel %vm189, %v965, 0.0
    %v999 = vsel %vm190, %v966, 0.0
    %v1000 = vsel %vm187, %v993, 0.0
    %v1001 = vsel %vm188, %v967, 0.0
    %v1002 = vsel %vm189, %v968, 0.0
    %v1003 = vsel %vm190, %v969, 0.0
    %v1004 = vsel %vm187, %v994, 0.0
    %v1005 = vsel %vm188, %v970, 0.0
    %v1006 = vsel %vm189, %v971, 0.0
    %v1007 = vsel %vm190, %v972, 0.0
    %v1008 = vsel %vm187, %v995, 0.0
    %v1009 = vsel %vm188, %v973, 0.0
    %v1010 = vsel %vm189, %v974, 0.0
    %v1011 = vsel %vm190, %v975, 0.0
    %1012 = vst [vmem:[#allocation2 + $0x100] sm:$0xff] %v996
    %1013 = vst [vmem:[#allocation2 + $0x108] sm:$0xff] %v997
    %1014 = vst [vmem:[#allocation2 + $0x110] sm:$0xff] %v998
    %1015 = vst [vmem:[#allocation2 + $0x118] sm:$0xff] %v999
    %1016 = vst [vmem:[#allocation2 + $0x120] sm:$0xff] %v1000
    %1017 = vst [vmem:[#allocation2 + $0x128] sm:$0xff] %v1001
    %1018 = vst [vmem:[#allocation2 + $0x130] sm:$0xff] %v1002
    %1019 = vst [vmem:[#allocation2 + $0x138] sm:$0xff] %v1003
    %1020 = vst [vmem:[#allocation2 + $0x140] sm:$0xff] %v1004
    %1021 = vst [vmem:[#allocation2 + $0x148] sm:$0xff] %v1005
    %1022 = vst [vmem:[#allocation2 + $0x150] sm:$0xff] %v1006
    %1023 = vst [vmem:[#allocation2 + $0x158] sm:$0xff] %v1007
    %1024 = vst [vmem:[#allocation2 + $0x160] sm:$0xff] %v1008
    %1025 = vst [vmem:[#allocation2 + $0x168] sm:$0xff] %v1009
    %1026 = vst [vmem:[#allocation2 + $0x170] sm:$0xff] %v1010
    %1027 = vst [vmem:[#allocation2 + $0x178] sm:$0xff] %v1011
    %1028 = vrot.lane.b32.xlu0 %v699, 1
    %v1029 = vpop.permute.xlu0 %1028
    %1030 = vrot.lane.b32.xlu0 %v703, 1
    %v1031 = vpop.permute.xlu0 %1030
    %1032 = vrot.lane.b32.xlu0 %v707, 1
    %v1033 = vpop.permute.xlu0 %1032
    %1034 = vrot.lane.b32.xlu0 %v711, 1
    %v1035 = vpop.permute.xlu0 %1034
    %1040 = vrot.lane.b32.xlu0 %v696, 1
    %v1041 = vpop.permute.xlu0 %1040
    %1042 = vrot.lane.b32.xlu0 %v697, 1
    %v1043 = vpop.permute.xlu0 %1042
    %1044 = vrot.lane.b32.xlu0 %v698, 1
    %v1045 = vpop.permute.xlu0 %1044
    %1046 = vrot.lane.b32.xlu0 %v700, 1
    %v1047 = vpop.permute.xlu0 %1046
    %1048 = vrot.lane.b32.xlu0 %v701, 1
    %v1049 = vpop.permute.xlu0 %1048
    %1050 = vrot.lane.b32.xlu0 %v702, 1
    %v1051 = vpop.permute.xlu0 %1050
    %1052 = vrot.lane.b32.xlu0 %v704, 1
    %v1053 = vpop.permute.xlu0 %1052
    %1054 = vrot.lane.b32.xlu0 %v705, 1
    %v1055 = vpop.permute.xlu0 %1054
    %1056 = vrot.lane.b32.xlu0 %v706, 1
    %v1057 = vpop.permute.xlu0 %1056
    %1058 = vrot.lane.b32.xlu0 %v708, 1
    %v1059 = vpop.permute.xlu0 %1058
    %1060 = vrot.lane.b32.xlu0 %v709, 1
    %v1061 = vpop.permute.xlu0 %1060
    %1062 = vrot.lane.b32.xlu0 %v710, 1
    %v1063 = vpop.permute.xlu0 %1062
    %v1064 = vsel %vm208, %v1041, %v1043
    %v1065 = vsel %vm208, %v1043, %v1045
    %v1066 = vsel %vm208, %v1045, %v1029
    %v1067 = vsel %vm208, %v1047, %v1049
    %v1068 = vsel %vm208, %v1049, %v1051
    %v1069 = vsel %vm208, %v1051, %v1031
    %v1070 = vsel %vm208, %v1053, %v1055
    %v1071 = vsel %vm208, %v1055, %v1057
    %v1072 = vsel %vm208, %v1057, %v1033
    %v1073 = vsel %vm208, %v1059, %v1061
    %v1074 = vsel %vm208, %v1061, %v1063
    %v1075 = vsel %vm208, %v1063, %v1035
    %v1092 = vsel %vm208, %v1029, %v1041
    %v1093 = vsel %vm208, %v1031, %v1047
    %v1094 = vsel %vm208, %v1033, %v1053
    %v1095 = vsel %vm208, %v1035, %v1059
    %v1096 = vsel %vm234, %v1092, 0.0
    %v1097 = vsel %vm235, %v1064, 0.0
    %v1098 = vsel %vm236, %v1065, 0.0
    %v1099 = vsel %vm237, %v1066, 0.0
    %v1100 = vsel %vm234, %v1093, 0.0
    %v1101 = vsel %vm235, %v1067, 0.0
    %v1102 = vsel %vm236, %v1068, 0.0
    %v1103 = vsel %vm237, %v1069, 0.0
    %v1104 = vsel %vm234, %v1094, 0.0
    %v1105 = vsel %vm235, %v1070, 0.0
    %v1106 = vsel %vm236, %v1071, 0.0
    %v1107 = vsel %vm237, %v1072, 0.0
    %v1108 = vsel %vm234, %v1095, 0.0
    %v1109 = vsel %vm235, %v1073, 0.0
    %v1110 = vsel %vm236, %v1074, 0.0
    %v1111 = vsel %vm237, %v1075, 0.0
    %1112 = vst [vmem:[#allocation2 + $0x180] sm:$0xff] %v1096
    %1113 = vst [vmem:[#allocation2 + $0x188] sm:$0xff] %v1097
    %1114 = vst [vmem:[#allocation2 + $0x190] sm:$0xff] %v1098
    %1115 = vst [vmem:[#allocation2 + $0x198] sm:$0xff] %v1099
    %1116 = vst [vmem:[#allocation2 + $0x1a0] sm:$0xff] %v1100
    %1117 = vst [vmem:[#allocation2 + $0x1a8] sm:$0xff] %v1101
    %1118 = vst [vmem:[#allocation2 + $0x1b0] sm:$0xff] %v1102
    %1119 = vst [vmem:[#allocation2 + $0x1b8] sm:$0xff] %v1103
    %1120 = vst [vmem:[#allocation2 + $0x1c0] sm:$0xff] %v1104
    %1121 = vst [vmem:[#allocation2 + $0x1c8] sm:$0xff] %v1105
    %1122 = vst [vmem:[#allocation2 + $0x1d0] sm:$0xff] %v1106
    %1123 = vst [vmem:[#allocation2 + $0x1d8] sm:$0xff] %v1107
    %1124 = vst [vmem:[#allocation2 + $0x1e0] sm:$0xff] %v1108
    %1125 = vst [vmem:[#allocation2 + $0x1e8] sm:$0xff] %v1109
    %1126 = vst [vmem:[#allocation2 + $0x1f0] sm:$0xff] %v1110
    %1127 = vst [vmem:[#allocation2 + $0x1f8] sm:$0xff] %v1111
    %1128 = vst [vmem:[#allocation2 + $0x200] sm:$0xff] %v696
    %1129 = vst [vmem:[#allocation2 + $0x208] sm:$0xff] %v697
    %1130 = vst [vmem:[#allocation2 + $0x210] sm:$0xff] %v698
    %1131 = vst [vmem:[#allocation2 + $0x218] sm:$0xff] %v699
    %1132 = vst [vmem:[#allocation2 + $0x220] sm:$0xff] %v700
    %1133 = vst [vmem:[#allocation2 + $0x228] sm:$0xff] %v701
    %1134 = vst [vmem:[#allocation2 + $0x230] sm:$0xff] %v702
    %1135 = vst [vmem:[#allocation2 + $0x238] sm:$0xff] %v703
    %1136 = vst [vmem:[#allocation2 + $0x240] sm:$0xff] %v704
    %1137 = vst [vmem:[#allocation2 + $0x248] sm:$0xff] %v705
    %1138 = vst [vmem:[#allocation2 + $0x250] sm:$0xff] %v706
    %1139 = vst [vmem:[#allocation2 + $0x258] sm:$0xff] %v707
    %1140 = vst [vmem:[#allocation2 + $0x260] sm:$0xff] %v708
    %1141 = vst [vmem:[#allocation2 + $0x268] sm:$0xff] %v709
    %1142 = vst [vmem:[#allocation2 + $0x270] sm:$0xff] %v710
    %1143 = vst [vmem:[#allocation2 + $0x278] sm:$0xff] %v711
    %1144 = vrot.lane.b32.xlu0 %v696, 127
    %v1145 = vpop.permute.xlu0 %1144
    %1146 = vrot.lane.b32.xlu0 %v697, 127
    %v1147 = vpop.permute.xlu0 %1146
    %1148 = vrot.lane.b32.xlu0 %v698, 127
    %v1149 = vpop.permute.xlu0 %1148
    %1150 = vrot.lane.b32.xlu0 %v699, 127
    %v1151 = vpop.permute.xlu0 %1150
    %1152 = vrot.lane.b32.xlu0 %v700, 127
    %v1153 = vpop.permute.xlu0 %1152
    %1154 = vrot.lane.b32.xlu0 %v701, 127
    %v1155 = vpop.permute.xlu0 %1154
    %1156 = vrot.lane.b32.xlu0 %v702, 127
    %v1157 = vpop.permute.xlu0 %1156
    %1158 = vrot.lane.b32.xlu0 %v703, 127
    %v1159 = vpop.permute.xlu0 %1158
    %1160 = vrot.lane.b32.xlu0 %v704, 127
    %v1161 = vpop.permute.xlu0 %1160
    %1162 = vrot.lane.b32.xlu0 %v705, 127
    %v1163 = vpop.permute.xlu0 %1162
    %1164 = vrot.lane.b32.xlu0 %v706, 127
    %v1165 = vpop.permute.xlu0 %1164
    %1166 = vrot.lane.b32.xlu0 %v707, 127
    %v1167 = vpop.permute.xlu0 %1166
    %1168 = vrot.lane.b32.xlu0 %v708, 127
    %v1169 = vpop.permute.xlu0 %1168
    %1170 = vrot.lane.b32.xlu0 %v709, 127
    %v1171 = vpop.permute.xlu0 %1170
    %1172 = vrot.lane.b32.xlu0 %v710, 127
    %v1173 = vpop.permute.xlu0 %1172
    %1174 = vrot.lane.b32.xlu0 %v711, 127
    %v1175 = vpop.permute.xlu0 %1174
    %v1176 = vsel %vm258, %v1145, %v1147
    %v1177 = vsel %vm258, %v1147, %v1149
    %v1178 = vsel %vm258, %v1149, %v1151
    %v1179 = vsel %vm258, %v1153, %v1155
    %v1180 = vsel %vm258, %v1155, %v1157
    %v1181 = vsel %vm258, %v1157, %v1159
    %v1182 = vsel %vm258, %v1161, %v1163
    %v1183 = vsel %vm258, %v1163, %v1165
    %v1184 = vsel %vm258, %v1165, %v1167
    %v1185 = vsel %vm258, %v1169, %v1171
    %v1186 = vsel %vm258, %v1171, %v1173
    %v1187 = vsel %vm258, %v1173, %v1175
    %v1208 = vsel %vm258, %v1151, %v1145
    %v1209 = vsel %vm258, %v1159, %v1153
    %v1210 = vsel %vm258, %v1167, %v1161
    %v1211 = vsel %vm258, %v1175, %v1169
    %v1212 = vsel %vm285, %v1176, 0.0
    %v1213 = vsel %vm286, %v1177, 0.0
    %v1214 = vsel %vm287, %v1178, 0.0
    %v1215 = vsel %vm288, %v1208, 0.0
    %v1216 = vsel %vm285, %v1179, 0.0
    %v1217 = vsel %vm286, %v1180, 0.0
    %v1218 = vsel %vm287, %v1181, 0.0
    %v1219 = vsel %vm288, %v1209, 0.0
    %v1220 = vsel %vm285, %v1182, 0.0
    %v1221 = vsel %vm286, %v1183, 0.0
    %v1222 = vsel %vm287, %v1184, 0.0
    %v1223 = vsel %vm288, %v1210, 0.0
    %v1224 = vsel %vm285, %v1185, 0.0
    %v1225 = vsel %vm286, %v1186, 0.0
    %v1226 = vsel %vm287, %v1187, 0.0
    %v1227 = vsel %vm288, %v1211, 0.0
    %1228 = vst [vmem:[#allocation2 + $0x280] sm:$0xff] %v1212
    %1229 = vst [vmem:[#allocation2 + $0x288] sm:$0xff] %v1213
    %1230 = vst [vmem:[#allocation2 + $0x290] sm:$0xff] %v1214
    %1231 = vst [vmem:[#allocation2 + $0x298] sm:$0xff] %v1215
    %1232 = vst [vmem:[#allocation2 + $0x2a0] sm:$0xff] %v1216
    %1233 = vst [vmem:[#allocation2 + $0x2a8] sm:$0xff] %v1217
    %1234 = vst [vmem:[#allocation2 + $0x2b0] sm:$0xff] %v1218
    %1235 = vst [vmem:[#allocation2 + $0x2b8] sm:$0xff] %v1219
    %1236 = vst [vmem:[#allocation2 + $0x2c0] sm:$0xff] %v1220
    %1237 = vst [vmem:[#allocation2 + $0x2c8] sm:$0xff] %v1221
    %1238 = vst [vmem:[#allocation2 + $0x2d0] sm:$0xff] %v1222
    %1239 = vst [vmem:[#allocation2 + $0x2d8] sm:$0xff] %v1223
    %1240 = vst [vmem:[#allocation2 + $0x2e0] sm:$0xff] %v1224
    %1241 = vst [vmem:[#allocation2 + $0x2e8] sm:$0xff] %v1225
    %1242 = vst [vmem:[#allocation2 + $0x2f0] sm:$0xff] %v1226
    %1243 = vst [vmem:[#allocation2 + $0x2f8] sm:$0xff] %v1227
    %1244 = vrot.lane.b32.xlu0 %v696, 113
    %v1245 = vpop.permute.xlu0 %1244
    %1246 = vrot.lane.b32.xlu0 %v697, 113
    %v1247 = vpop.permute.xlu0 %1246
    %1248 = vrot.lane.b32.xlu0 %v698, 113
    %v1249 = vpop.permute.xlu0 %1248
    %1250 = vrot.lane.b32.xlu0 %v699, 113
    %v1251 = vpop.permute.xlu0 %1250
    %1252 = vrot.lane.b32.xlu0 %v700, 113
    %v1253 = vpop.permute.xlu0 %1252
    %1254 = vrot.lane.b32.xlu0 %v701, 113
    %v1255 = vpop.permute.xlu0 %1254
    %1256 = vrot.lane.b32.xlu0 %v702, 113
    %v1257 = vpop.permute.xlu0 %1256
    %1258 = vrot.lane.b32.xlu0 %v703, 113
    %v1259 = vpop.permute.xlu0 %1258
    %1260 = vrot.lane.b32.xlu0 %v704, 113
    %v1261 = vpop.permute.xlu0 %1260
    %1262 = vrot.lane.b32.xlu0 %v705, 113
    %v1263 = vpop.permute.xlu0 %1262
    %1264 = vrot.lane.b32.xlu0 %v706, 113
    %v1265 = vpop.permute.xlu0 %1264
    %1266 = vrot.lane.b32.xlu0 %v707, 113
    %v1267 = vpop.permute.xlu0 %1266
    %1268 = vrot.lane.b32.xlu0 %v708, 113
    %v1269 = vpop.permute.xlu0 %1268
    %1270 = vrot.lane.b32.xlu0 %v709, 113
    %v1271 = vpop.permute.xlu0 %1270
    %1272 = vrot.lane.b32.xlu0 %v710, 113
    %v1273 = vpop.permute.xlu0 %1272
    %1274 = vrot.lane.b32.xlu0 %v711, 113
    %v1275 = vpop.permute.xlu0 %1274
    %v1276 = vsel %vm305, %v1245, %v1247
    %v1277 = vsel %vm305, %v1247, %v1249
    %v1278 = vsel %vm305, %v1249, %v1251
    %v1279 = vsel %vm305, %v1253, %v1255
    %v1280 = vsel %vm305, %v1255, %v1257
    %v1281 = vsel %vm305, %v1257, %v1259
    %v1282 = vsel %vm305, %v1261, %v1263
    %v1283 = vsel %vm305, %v1263, %v1265
    %v1284 = vsel %vm305, %v1265, %v1267
    %v1285 = vsel %vm305, %v1269, %v1271
    %v1286 = vsel %vm305, %v1271, %v1273
    %v1287 = vsel %vm305, %v1273, %v1275
    %v1308 = vsel %vm305, %v1251, %v1245
    %v1309 = vsel %vm305, %v1259, %v1253
    %v1310 = vsel %vm305, %v1267, %v1261
    %v1311 = vsel %vm305, %v1275, %v1269
    %v1312 = vsel %vm334, %v1276, 0.0
    %v1313 = vsel %vm335, %v1277, 0.0
    %v1314 = vsel %vm336, %v1278, 0.0
    %v1315 = vsel %vm337, %v1308, 0.0
    %v1316 = vsel %vm334, %v1279, 0.0
    %v1317 = vsel %vm335, %v1280, 0.0
    %v1318 = vsel %vm336, %v1281, 0.0
    %v1319 = vsel %vm337, %v1309, 0.0
    %v1320 = vsel %vm334, %v1282, 0.0
    %v1321 = vsel %vm335, %v1283, 0.0
    %v1322 = vsel %vm336, %v1284, 0.0
    %v1323 = vsel %vm337, %v1310, 0.0
    %v1324 = vsel %vm334, %v1285, 0.0
    %v1325 = vsel %vm335, %v1286, 0.0
    %v1326 = vsel %vm336, %v1287, 0.0
    %v1327 = vsel %vm337, %v1311, 0.0
    %1328 = vst [vmem:[#allocation2 + $0x300] sm:$0xff] %v1312
    %1329 = vst [vmem:[#allocation2 + $0x308] sm:$0xff] %v1313
    %1330 = vst [vmem:[#allocation2 + $0x310] sm:$0xff] %v1314
    %1331 = vst [vmem:[#allocation2 + $0x318] sm:$0xff] %v1315
    %1332 = vst [vmem:[#allocation2 + $0x320] sm:$0xff] %v1316
    %1333 = vst [vmem:[#allocation2 + $0x328] sm:$0xff] %v1317
    %1334 = vst [vmem:[#allocation2 + $0x330] sm:$0xff] %v1318
    %1335 = vst [vmem:[#allocation2 + $0x338] sm:$0xff] %v1319
    %1336 = vst [vmem:[#allocation2 + $0x340] sm:$0xff] %v1320
    %1337 = vst [vmem:[#allocation2 + $0x348] sm:$0xff] %v1321
    %1338 = vst [vmem:[#allocation2 + $0x350] sm:$0xff] %v1322
    %1339 = vst [vmem:[#allocation2 + $0x358] sm:$0xff] %v1323
    %1340 = vst [vmem:[#allocation2 + $0x360] sm:$0xff] %v1324
    %1341 = vst [vmem:[#allocation2 + $0x368] sm:$0xff] %v1325
    %1342 = vst [vmem:[#allocation2 + $0x370] sm:$0xff] %v1326
    %1343 = vst [vmem:[#allocation2 + $0x378] sm:$0xff] %v1327
    %1344 = vrot.lane.b32.xlu0 %v696, 112
    %v1345 = vpop.permute.xlu0 %1344
    %1346 = vrot.lane.b32.xlu0 %v697, 112
    %v1347 = vpop.permute.xlu0 %1346
    %1348 = vrot.lane.b32.xlu0 %v698, 112
    %v1349 = vpop.permute.xlu0 %1348
    %1350 = vrot.lane.b32.xlu0 %v699, 112
    %v1351 = vpop.permute.xlu0 %1350
    %1352 = vrot.lane.b32.xlu0 %v700, 112
    %v1353 = vpop.permute.xlu0 %1352
    %1354 = vrot.lane.b32.xlu0 %v701, 112
    %v1355 = vpop.permute.xlu0 %1354
    %1356 = vrot.lane.b32.xlu0 %v702, 112
    %v1357 = vpop.permute.xlu0 %1356
    %1358 = vrot.lane.b32.xlu0 %v703, 112
    %v1359 = vpop.permute.xlu0 %1358
    %1360 = vrot.lane.b32.xlu0 %v704, 112
    %v1361 = vpop.permute.xlu0 %1360
    %1362 = vrot.lane.b32.xlu0 %v705, 112
    %v1363 = vpop.permute.xlu0 %1362
    %1364 = vrot.lane.b32.xlu0 %v706, 112
    %v1365 = vpop.permute.xlu0 %1364
    %1366 = vrot.lane.b32.xlu0 %v707, 112
    %v1367 = vpop.permute.xlu0 %1366
    %1368 = vrot.lane.b32.xlu0 %v708, 112
    %v1369 = vpop.permute.xlu0 %1368
    %1370 = vrot.lane.b32.xlu0 %v709, 112
    %v1371 = vpop.permute.xlu0 %1370
    %1372 = vrot.lane.b32.xlu0 %v710, 112
    %v1373 = vpop.permute.xlu0 %1372
    %1374 = vrot.lane.b32.xlu0 %v711, 112
    %v1375 = vpop.permute.xlu0 %1374
    %v1376 = vsel %vm354, %v1345, %v1347
    %v1377 = vsel %vm354, %v1347, %v1349
    %v1378 = vsel %vm354, %v1349, %v1351
    %v1379 = vsel %vm354, %v1353, %v1355
    %v1380 = vsel %vm354, %v1355, %v1357
    %v1381 = vsel %vm354, %v1357, %v1359
    %v1382 = vsel %vm354, %v1361, %v1363
    %v1383 = vsel %vm354, %v1363, %v1365
    %v1384 = vsel %vm354, %v1365, %v1367
    %v1385 = vsel %vm354, %v1369, %v1371
    %v1386 = vsel %vm354, %v1371, %v1373
    %v1387 = vsel %vm354, %v1373, %v1375
    %v1408 = vsel %vm354, %v1351, %v1345
    %v1409 = vsel %vm354, %v1359, %v1353
    %v1410 = vsel %vm354, %v1367, %v1361
    %v1411 = vsel %vm354, %v1375, %v1369
    %v1412 = vsel %vm381, %v1376, 0.0
    %v1413 = vsel %vm382, %v1377, 0.0
    %v1414 = vsel %vm383, %v1378, 0.0
    %v1415 = vsel %vm384, %v1408, 0.0
    %v1416 = vsel %vm381, %v1379, 0.0
    %v1417 = vsel %vm382, %v1380, 0.0
    %v1418 = vsel %vm383, %v1381, 0.0
    %v1419 = vsel %vm384, %v1409, 0.0
    %v1420 = vsel %vm381, %v1382, 0.0
    %v1421 = vsel %vm382, %v1383, 0.0
    %v1422 = vsel %vm383, %v1384, 0.0
    %v1423 = vsel %vm384, %v1410, 0.0
    %v1424 = vsel %vm381, %v1385, 0.0
    %v1425 = vsel %vm382, %v1386, 0.0
    %v1426 = vsel %vm383, %v1387, 0.0
    %v1427 = vsel %vm384, %v1411, 0.0
    %1428 = vst [vmem:[#allocation2 + $0x380] sm:$0xff] %v1412
    %1429 = vst [vmem:[#allocation2 + $0x388] sm:$0xff] %v1413
    %1430 = vst [vmem:[#allocation2 + $0x390] sm:$0xff] %v1414
    %1431 = vst [vmem:[#allocation2 + $0x398] sm:$0xff] %v1415
    %1432 = vst [vmem:[#allocation2 + $0x3a0] sm:$0xff] %v1416
    %1433 = vst [vmem:[#allocation2 + $0x3a8] sm:$0xff] %v1417
    %1434 = vst [vmem:[#allocation2 + $0x3b0] sm:$0xff] %v1418
    %1435 = vst [vmem:[#allocation2 + $0x3b8] sm:$0xff] %v1419
    %1436 = vst [vmem:[#allocation2 + $0x3c0] sm:$0xff] %v1420
    %1437 = vst [vmem:[#allocation2 + $0x3c8] sm:$0xff] %v1421
    %1438 = vst [vmem:[#allocation2 + $0x3d0] sm:$0xff] %v1422
    %1439 = vst [vmem:[#allocation2 + $0x3d8] sm:$0xff] %v1423
    %1440 = vst [vmem:[#allocation2 + $0x3e0] sm:$0xff] %v1424
    %1441 = vst [vmem:[#allocation2 + $0x3e8] sm:$0xff] %v1425
    %1442 = vst [vmem:[#allocation2 + $0x3f0] sm:$0xff] %v1426
    %1443 = vst [vmem:[#allocation2 + $0x3f8] sm:$0xff] %v1427
    %1444 = vrot.lane.b32.xlu0 %v696, 111
    %v1445 = vpop.permute.xlu0 %1444
    %1446 = vrot.lane.b32.xlu0 %v697, 111
    %v1447 = vpop.permute.xlu0 %1446
    %1448 = vrot.lane.b32.xlu0 %v698, 111
    %v1449 = vpop.permute.xlu0 %1448
    %1450 = vrot.lane.b32.xlu0 %v699, 111
    %v1451 = vpop.permute.xlu0 %1450
    %1452 = vrot.lane.b32.xlu0 %v700, 111
    %v1453 = vpop.permute.xlu0 %1452
    %1454 = vrot.lane.b32.xlu0 %v701, 111
    %v1455 = vpop.permute.xlu0 %1454
    %1456 = vrot.lane.b32.xlu0 %v702, 111
    %v1457 = vpop.permute.xlu0 %1456
    %1458 = vrot.lane.b32.xlu0 %v703, 111
    %v1459 = vpop.permute.xlu0 %1458
    %1460 = vrot.lane.b32.xlu0 %v704, 111
    %v1461 = vpop.permute.xlu0 %1460
    %1462 = vrot.lane.b32.xlu0 %v705, 111
    %v1463 = vpop.permute.xlu0 %1462
    %1464 = vrot.lane.b32.xlu0 %v706, 111
    %v1465 = vpop.permute.xlu0 %1464
    %1466 = vrot.lane.b32.xlu0 %v707, 111
    %v1467 = vpop.permute.xlu0 %1466
    %1468 = vrot.lane.b32.xlu0 %v708, 111
    %v1469 = vpop.permute.xlu0 %1468
    %1470 = vrot.lane.b32.xlu0 %v709, 111
    %v1471 = vpop.permute.xlu0 %1470
    %1472 = vrot.lane.b32.xlu0 %v710, 111
    %v1473 = vpop.permute.xlu0 %1472
    %1474 = vrot.lane.b32.xlu0 %v711, 111
    %v1475 = vpop.permute.xlu0 %1474
    %v1476 = vsel %vm401, %v1445, %v1447
    %v1477 = vsel %vm401, %v1447, %v1449
    %v1478 = vsel %vm401, %v1449, %v1451
    %v1479 = vsel %vm401, %v1453, %v1455
    %v1480 = vsel %vm401, %v1455, %v1457
    %v1481 = vsel %vm401, %v1457, %v1459
    %v1482 = vsel %vm401, %v1461, %v1463
    %v1483 = vsel %vm401, %v1463, %v1465
    %v1484 = vsel %vm401, %v1465, %v1467
    %v1485 = vsel %vm401, %v1469, %v1471
    %v1486 = vsel %vm401, %v1471, %v1473
    %v1487 = vsel %vm401, %v1473, %v1475
    %v1508 = vsel %vm401, %v1451, %v1445
    %v1509 = vsel %vm401, %v1459, %v1453
    %v1510 = vsel %vm401, %v1467, %v1461
    %v1511 = vsel %vm401, %v1475, %v1469
    %v1512 = vsel %vm429, %v1476, 0.0
    %v1513 = vsel %vm430, %v1477, 0.0
    %v1514 = vsel %vm431, %v1478, 0.0
    %v1515 = vsel %vm432, %v1508, 0.0
    %v1516 = vsel %vm429, %v1479, 0.0
    %v1517 = vsel %vm430, %v1480, 0.0
    %v1518 = vsel %vm431, %v1481, 0.0
    %v1519 = vsel %vm432, %v1509, 0.0
    %v1520 = vsel %vm429, %v1482, 0.0
    %v1521 = vsel %vm430, %v1483, 0.0
    %v1522 = vsel %vm431, %v1484, 0.0
    %v1523 = vsel %vm432, %v1510, 0.0
    %v1524 = vsel %vm429, %v1485, 0.0
    %v1525 = vsel %vm430, %v1486, 0.0
    %v1526 = vsel %vm431, %v1487, 0.0
    %v1527 = vsel %vm432, %v1511, 0.0
    %1528 = vst [vmem:[#allocation2 + $0x400] sm:$0xff] %v1512
    %1529 = vst [vmem:[#allocation2 + $0x408] sm:$0xff] %v1513
    %1530 = vst [vmem:[#allocation2 + $0x410] sm:$0xff] %v1514
    %1531 = vst [vmem:[#allocation2 + $0x418] sm:$0xff] %v1515
    %1532 = vst [vmem:[#allocation2 + $0x420] sm:$0xff] %v1516
    %1533 = vst [vmem:[#allocation2 + $0x428] sm:$0xff] %v1517
    %1534 = vst [vmem:[#allocation2 + $0x430] sm:$0xff] %v1518
    %1535 = vst [vmem:[#allocation2 + $0x438] sm:$0xff] %v1519
    %1536 = vst [vmem:[#allocation2 + $0x440] sm:$0xff] %v1520
    %1537 = vst [vmem:[#allocation2 + $0x448] sm:$0xff] %v1521
    %1538 = vst [vmem:[#allocation2 + $0x450] sm:$0xff] %v1522
    %1539 = vst [vmem:[#allocation2 + $0x458] sm:$0xff] %v1523
    %1540 = vst [vmem:[#allocation2 + $0x460] sm:$0xff] %v1524
    %1541 = vst [vmem:[#allocation2 + $0x468] sm:$0xff] %v1525
    %1542 = vst [vmem:[#allocation2 + $0x470] sm:$0xff] %v1526
    %1543 = vst [vmem:[#allocation2 + $0x478] sm:$0xff] %v1527
    %v1544 = vld [vmem:[#allocation2] sm:$0xff]
    %v1545 = vld [vmem:[#allocation2 + $0x8] sm:$0xff]
    %v1546 = vld [vmem:[#allocation2 + $0x10] sm:$0xff]
    %v1547 = vld [vmem:[#allocation2 + $0x18] sm:$0xff]
    %v1548 = vld [vmem:[#allocation2 + $0x20] sm:$0xff]
    %v1549 = vld [vmem:[#allocation2 + $0x28] sm:$0xff]
    %v1550 = vld [vmem:[#allocation2 + $0x30] sm:$0xff]
    %v1551 = vld [vmem:[#allocation2 + $0x38] sm:$0xff]
    %v1552 = vld [vmem:[#allocation2 + $0x40] sm:$0xff]
    %v1553 = vld [vmem:[#allocation2 + $0x48] sm:$0xff]
    %v1554 = vld [vmem:[#allocation2 + $0x50] sm:$0xff]
    %v1555 = vld [vmem:[#allocation2 + $0x58] sm:$0xff]
    %v1556 = vld [vmem:[#allocation2 + $0x60] sm:$0xff]
    %v1557 = vld [vmem:[#allocation2 + $0x68] sm:$0xff]
    %v1558 = vld [vmem:[#allocation2 + $0x70] sm:$0xff]
    %v1559 = vld [vmem:[#allocation2 + $0x78] sm:$0xff]
    %v1560 = vld [vmem:[#allocation2 + $0x80] sm:$0xff]
    %v1561 = vld [vmem:[#allocation2 + $0x88] sm:$0xff]
    %v1562 = vld [vmem:[#allocation2 + $0x90] sm:$0xff]
    %v1563 = vld [vmem:[#allocation2 + $0x98] sm:$0xff]
    %v1564 = vld [vmem:[#allocation2 + $0xa0] sm:$0xff]
    %v1565 = vld [vmem:[#allocation2 + $0xa8] sm:$0xff]
    %v1566 = vld [vmem:[#allocation2 + $0xb0] sm:$0xff]
    %v1567 = vld [vmem:[#allocation2 + $0xb8] sm:$0xff]
    %v1568 = vld [vmem:[#allocation2 + $0xc0] sm:$0xff]
    %v1569 = vld [vmem:[#allocation2 + $0xc8] sm:$0xff]
    %v1570 = vld [vmem:[#allocation2 + $0xd0] sm:$0xff]
    %v1571 = vld [vmem:[#allocation2 + $0xd8] sm:$0xff]
    %v1572 = vld [vmem:[#allocation2 + $0xe0] sm:$0xff]
    %v1573 = vld [vmem:[#allocation2 + $0xe8] sm:$0xff]
    %v1574 = vld [vmem:[#allocation2 + $0xf0] sm:$0xff]
    %v1575 = vld [vmem:[#allocation2 + $0xf8] sm:$0xff]
    %v1576 = vld [vmem:[#allocation2 + $0x100] sm:$0xff]
    %v1577 = vld [vmem:[#allocation2 + $0x108] sm:$0xff]
    %v1578 = vld [vmem:[#allocation2 + $0x110] sm:$0xff]
    %v1579 = vld [vmem:[#allocation2 + $0x118] sm:$0xff]
    %v1580 = vld [vmem:[#allocation2 + $0x120] sm:$0xff]
    %v1581 = vld [vmem:[#allocation2 + $0x128] sm:$0xff]
    %v1582 = vld [vmem:[#allocation2 + $0x130] sm:$0xff]
    %v1583 = vld [vmem:[#allocation2 + $0x138] sm:$0xff]
    %v1584 = vld [vmem:[#allocation2 + $0x140] sm:$0xff]
    %v1585 = vld [vmem:[#allocation2 + $0x148] sm:$0xff]
    %v1586 = vld [vmem:[#allocation2 + $0x150] sm:$0xff]
    %v1587 = vld [vmem:[#allocation2 + $0x158] sm:$0xff]
    %v1588 = vld [vmem:[#allocation2 + $0x160] sm:$0xff]
    %v1589 = vld [vmem:[#allocation2 + $0x168] sm:$0xff]
    %v1590 = vld [vmem:[#allocation2 + $0x170] sm:$0xff]
    %v1591 = vld [vmem:[#allocation2 + $0x178] sm:$0xff]
    %v1592 = vld [vmem:[#allocation2 + $0x180] sm:$0xff]
    %v1593 = vld [vmem:[#allocation2 + $0x188] sm:$0xff]
    %v1594 = vld [vmem:[#allocation2 + $0x190] sm:$0xff]
    %v1595 = vld [vmem:[#allocation2 + $0x198] sm:$0xff]
    %v1596 = vld [vmem:[#allocation2 + $0x1a0] sm:$0xff]
    %v1597 = vld [vmem:[#allocation2 + $0x1a8] sm:$0xff]
    %v1598 = vld [vmem:[#allocation2 + $0x1b0] sm:$0xff]
    %v1599 = vld [vmem:[#allocation2 + $0x1b8] sm:$0xff]
    %v1600 = vld [vmem:[#allocation2 + $0x1c0] sm:$0xff]
    %v1601 = vld [vmem:[#allocation2 + $0x1c8] sm:$0xff]
    %v1602 = vld [vmem:[#allocation2 + $0x1d0] sm:$0xff]
    %v1603 = vld [vmem:[#allocation2 + $0x1d8] sm:$0xff]
    %v1604 = vld [vmem:[#allocation2 + $0x1e0] sm:$0xff]
    %v1605 = vld [vmem:[#allocation2 + $0x1e8] sm:$0xff]
    %v1606 = vld [vmem:[#allocation2 + $0x1f0] sm:$0xff]
    %v1607 = vld [vmem:[#allocation2 + $0x1f8] sm:$0xff]
    %v1608 = vld [vmem:[#allocation2 + $0x200] sm:$0xff]
    %v1609 = vld [vmem:[#allocation2 + $0x208] sm:$0xff]
    %v1610 = vld [vmem:[#allocation2 + $0x210] sm:$0xff]
    %v1611 = vld [vmem:[#allocation2 + $0x218] sm:$0xff]
    %v1612 = vld [vmem:[#allocation2 + $0x220] sm:$0xff]
    %v1613 = vld [vmem:[#allocation2 + $0x228] sm:$0xff]
    %v1614 = vld [vmem:[#allocation2 + $0x230] sm:$0xff]
    %v1615 = vld [vmem:[#allocation2 + $0x238] sm:$0xff]
    %v1616 = vld [vmem:[#allocation2 + $0x240] sm:$0xff]
    %v1617 = vld [vmem:[#allocation2 + $0x248] sm:$0xff]
    %v1618 = vld [vmem:[#allocation2 + $0x250] sm:$0xff]
    %v1619 = vld [vmem:[#allocation2 + $0x258] sm:$0xff]
    %v1620 = vld [vmem:[#allocation2 + $0x260] sm:$0xff]
    %v1621 = vld [vmem:[#allocation2 + $0x268] sm:$0xff]
    %v1622 = vld [vmem:[#allocation2 + $0x270] sm:$0xff]
    %v1623 = vld [vmem:[#allocation2 + $0x278] sm:$0xff]
    %v1624 = vld [vmem:[#allocation2 + $0x280] sm:$0xff]
    %v1625 = vld [vmem:[#allocation2 + $0x288] sm:$0xff]
    %v1626 = vld [vmem:[#allocation2 + $0x290] sm:$0xff]
    %v1627 = vld [vmem:[#allocation2 + $0x298] sm:$0xff]
    %v1628 = vld [vmem:[#allocation2 + $0x2a0] sm:$0xff]
    %v1629 = vld [vmem:[#allocation2 + $0x2a8] sm:$0xff]
    %v1630 = vld [vmem:[#allocation2 + $0x2b0] sm:$0xff]
    %v1631 = vld [vmem:[#allocation2 + $0x2b8] sm:$0xff]
    %v1632 = vld [vmem:[#allocation2 + $0x2c0] sm:$0xff]
    %v1633 = vld [vmem:[#allocation2 + $0x2c8] sm:$0xff]
    %v1634 = vld [vmem:[#allocation2 + $0x2d0] sm:$0xff]
    %v1635 = vld [vmem:[#allocation2 + $0x2d8] sm:$0xff]
    %v1636 = vld [vmem:[#allocation2 + $0x2e0] sm:$0xff]
    %v1637 = vld [vmem:[#allocation2 + $0x2e8] sm:$0xff]
    %v1638 = vld [vmem:[#allocation2 + $0x2f0] sm:$0xff]
    %v1639 = vld [vmem:[#allocation2 + $0x2f8] sm:$0xff]
    %v1640 = vld [vmem:[#allocation2 + $0x300] sm:$0xff]
    %v1641 = vld [vmem:[#allocation2 + $0x308] sm:$0xff]
    %v1642 = vld [vmem:[#allocation2 + $0x310] sm:$0xff]
    %v1643 = vld [vmem:[#allocation2 + $0x318] sm:$0xff]
    %v1644 = vld [vmem:[#allocation2 + $0x320] sm:$0xff]
    %v1645 = vld [vmem:[#allocation2 + $0x328] sm:$0xff]
    %v1646 = vld [vmem:[#allocation2 + $0x330] sm:$0xff]
    %v1647 = vld [vmem:[#allocation2 + $0x338] sm:$0xff]
    %v1648 = vld [vmem:[#allocation2 + $0x340] sm:$0xff]
    %v1649 = vld [vmem:[#allocation2 + $0x348] sm:$0xff]
    %v1650 = vld [vmem:[#allocation2 + $0x350] sm:$0xff]
    %v1651 = vld [vmem:[#allocation2 + $0x358] sm:$0xff]
    %v1652 = vld [vmem:[#allocation2 + $0x360] sm:$0xff]
    %v1653 = vld [vmem:[#allocation2 + $0x368] sm:$0xff]
    %v1654 = vld [vmem:[#allocation2 + $0x370] sm:$0xff]
    %v1655 = vld [vmem:[#allocation2 + $0x378] sm:$0xff]
    %v1656 = vld [vmem:[#allocation2 + $0x380] sm:$0xff]
    %v1657 = vld [vmem:[#allocation2 + $0x388] sm:$0xff]
    %v1658 = vld [vmem:[#allocation2 + $0x390] sm:$0xff]
    %v1659 = vld [vmem:[#allocation2 + $0x398] sm:$0xff]
    %v1660 = vld [vmem:[#allocation2 + $0x3a0] sm:$0xff]
    %v1661 = vld [vmem:[#allocation2 + $0x3a8] sm:$0xff]
    %v1662 = vld [vmem:[#allocation2 + $0x3b0] sm:$0xff]
    %v1663 = vld [vmem:[#allocation2 + $0x3b8] sm:$0xff]
    %v1664 = vld [vmem:[#allocation2 + $0x3c0] sm:$0xff]
    %v1665 = vld [vmem:[#allocation2 + $0x3c8] sm:$0xff]
    %v1666 = vld [vmem:[#allocation2 + $0x3d0] sm:$0xff]
    %v1667 = vld [vmem:[#allocation2 + $0x3d8] sm:$0xff]
    %v1668 = vld [vmem:[#allocation2 + $0x3e0] sm:$0xff]
    %v1669 = vld [vmem:[#allocation2 + $0x3e8] sm:$0xff]
    %v1670 = vld [vmem:[#allocation2 + $0x3f0] sm:$0xff]
    %v1671 = vld [vmem:[#allocation2 + $0x3f8] sm:$0xff]
    %v1672 = vld [vmem:[#allocation2 + $0x400] sm:$0xff]
    %v1673 = vld [vmem:[#allocation2 + $0x408] sm:$0xff]
    %v1674 = vld [vmem:[#allocation2 + $0x410] sm:$0xff]
    %v1675 = vld [vmem:[#allocation2 + $0x418] sm:$0xff]
    %v1676 = vld [vmem:[#allocation2 + $0x420] sm:$0xff]
    %v1677 = vld [vmem:[#allocation2 + $0x428] sm:$0xff]
    %v1678 = vld [vmem:[#allocation2 + $0x430] sm:$0xff]
    %v1679 = vld [vmem:[#allocation2 + $0x438] sm:$0xff]
    %v1680 = vld [vmem:[#allocation2 + $0x440] sm:$0xff]
    %v1681 = vld [vmem:[#allocation2 + $0x448] sm:$0xff]
    %v1682 = vld [vmem:[#allocation2 + $0x450] sm:$0xff]
    %v1683 = vld [vmem:[#allocation2 + $0x458] sm:$0xff]
    %v1684 = vld [vmem:[#allocation2 + $0x460] sm:$0xff]
    %v1685 = vld [vmem:[#allocation2 + $0x468] sm:$0xff]
    %v1686 = vld [vmem:[#allocation2 + $0x470] sm:$0xff]
    %v1687 = vld [vmem:[#allocation2 + $0x478] sm:$0xff]
    %v1688 = vld [vmem:[%s4] sm:$0xff]
    %v1689 = vld [vmem:[%s4 + $0x8] sm:$0xff]
    %v1690 = vld [vmem:[%s4 + $0x10] sm:$0xff]
    %v1691 = vld [vmem:[%s4 + $0x18] sm:$0xff]
    %v1692 = vld [vmem:[%s4 + $0x20] sm:$0xff]
    %v1693 = vld [vmem:[%s4 + $0x28] sm:$0xff]
    %v1694 = vld [vmem:[%s4 + $0x30] sm:$0xff]
    %v1695 = vld [vmem:[%s4 + $0x38] sm:$0xff]
    %v1696 = vld [vmem:[%s4 + $0x40] sm:$0xff]
    %v1697 = vld [vmem:[%s4 + $0x48] sm:$0xff]
    %v1698 = vld [vmem:[%s4 + $0x50] sm:$0xff]
    %v1699 = vld [vmem:[%s4 + $0x58] sm:$0xff]
    %v1700 = vld [vmem:[%s5] sm:$0xff]
    %v1701 = vld [vmem:[%s5 + $0x8] sm:$0xff]
    %v1702 = vld [vmem:[%s5 + $0x10] sm:$0xff]
    %v1703 = vld [vmem:[%s5 + $0x18] sm:$0xff]
    %1705 = vset.pattern.permute.xlu0 0
    %1706 = vperm.xlu0 %1705, %v1700
    %v1707 = vpop.permute.xlu0 %1706
    %1710 = vset.pattern.permute.xlu0 0
    %1711 = vperm.xlu0 %1710, %v1701
    %v1712 = vpop.permute.xlu0 %1711
    %1715 = vset.pattern.permute.xlu0 0
    %1716 = vperm.xlu0 %1715, %v1702
    %v1717 = vpop.permute.xlu0 %1716
    %1720 = vset.pattern.permute.xlu0 0
    %1721 = vperm.xlu0 %1720, %v1703
    %v1722 = vpop.permute.xlu0 %1721
    %vm1724 = vcmask 261120
    %v1726 = vsel %vm1724, %v1690, 0
    %v1729 = vsel %vm1724, %v1693, 0
    %v1732 = vsel %vm1724, %v1696, 0
    %v1735 = vsel %vm1724, %v1699, 0
    %1737 = vmatprep.subr.mxu0 %v1605
    %1738 = vmatpush1.msra.mxu0 %v1604
    %1739 = vmatprep.subr.mxu0 %v1601
    %1740 = vmatpush1.msra.mxu0 %v1600
    %1741 = vmatprep.subr.mxu0 %v1597
    %1742 = vmatpush1.msra.mxu0 %v1596
    %1743 = vmatprep.subr.mxu0 %v1593
    %1744 = vmatpush1.msra.mxu0 %v1592
    %1745 = vmatprep.subr.mxu0 %v1589
    %1746 = vmatpush1.msra.mxu0 %v1588
    %1747 = vmatprep.subr.mxu0 %v1585
    %1748 = vmatpush1.msra.mxu0 %v1584
    %1749 = vmatprep.subr.mxu0 %v1581
    %1750 = vmatpush1.msra.mxu0 %v1580
    %1751 = vmatprep.subr.mxu0 %v1577
    %1752 = vmatpush1.msra.mxu0 %v1576
    %1753 = vmatprep.subr.mxu0 %v1573
    %1754 = vmatpush1.msra.mxu0 %v1572
    %1755 = vmatprep.subr.mxu0 %v1569
    %1756 = vmatpush1.msra.mxu0 %v1568
    %1757 = vmatprep.subr.mxu0 %v1565
    %1758 = vmatpush1.msra.mxu0 %v1564
    %1759 = vmatprep.subr.mxu0 %v1561
    %1760 = vmatpush1.msra.mxu0 %v1560
    %1761 = vmatprep.subr.mxu0 %v1557
    %1762 = vmatpush1.msra.mxu0 %v1556
    %1763 = vmatprep.subr.mxu0 %v1553
    %1764 = vmatpush1.msra.mxu0 %v1552
    %1765 = vmatprep.subr.mxu0 %v1549
    %1766 = vmatpush1.msra.mxu0 %v1548
    %1767 = vmatprep.subr.mxu0 %v1545
    %1768 = vmatpush1.msra.mxu0 %v1544
    %1769 = vmatprep.subr.mxu0 %v1669
    %1770 = vmatpush2.msra.mxu0 %v1668
    %1771 = vmatprep.subr.mxu0 %v1665
    %1772 = vmatpush2.msra.mxu0 %v1664
    %1773 = vmatprep.subr.mxu0 %v1661
    %1774 = vmatpush2.msra.mxu0 %v1660
    %1775 = vmatprep.subr.mxu0 %v1657
    %1776 = vmatpush2.msra.mxu0 %v1656
    %1777 = vmatprep.subr.mxu0 %v1653
    %1778 = vmatpush2.msra.mxu0 %v1652
    %1779 = vmatprep.subr.mxu0 %v1649
    %1780 = vmatpush2.msra.mxu0 %v1648
    %1781 = vmatprep.subr.mxu0 %v1645
    %1782 = vmatpush2.msra.mxu0 %v1644
    %1783 = vmatprep.subr.mxu0 %v1641
    %1784 = vmatpush2.msra.mxu0 %v1640
    %1785 = vmatprep.subr.mxu0 %v1637
    %1786 = vmatpush2.msra.mxu0 %v1636
    %1787 = vmatprep.subr.mxu0 %v1633
    %1788 = vmatpush2.msra.mxu0 %v1632
    %1789 = vmatprep.subr.mxu0 %v1629
    %1790 = vmatpush2.msra.mxu0 %v1628
    %1791 = vmatprep.subr.mxu0 %v1625
    %1792 = vmatpush2.msra.mxu0 %v1624
    %1793 = vmatprep.subr.mxu0 %v1621
    %1794 = vmatpush2.msra.mxu0 %v1620
    %1795 = vmatprep.subr.mxu0 %v1617
    %1796 = vmatpush2.msra.mxu0 %v1616
    %1797 = vmatprep.subr.mxu0 %v1613
    %1798 = vmatpush2.msra.mxu0 %v1612
    %1799 = vmatprep.subr.mxu0 %v1609
    %1800 = vmatpush2.msra.mxu0 %v1608
    %1801 = vmatprep.mubr.f32.mxu0 %v1689
    %1802 = vmatmul.mubr.f32.gmra.mxu0 %v1688
    %v1803 = vpop.f32.mrf.mxu0
    %v1804 = vadd.f32 %v1707, %v1803
    %v1805 = vpop.f32.mrf.mxu0
    %v1806 = vadd.f32 %v1707, %v1805
    %1807 = vmatprep.mubr.f32.mxu0 %v1692
    %1808 = vmatmul.mubr.f32.gmra.mxu0 %v1691
    %v1809 = vpop.f32.mrf.mxu0
    %v1810 = vadd.f32 %v1712, %v1809
    %v1811 = vpop.f32.mrf.mxu0
    %v1812 = vadd.f32 %v1712, %v1811
    %1813 = vmatprep.mubr.f32.mxu0 %v1695
    %1814 = vmatmul.mubr.f32.gmra.mxu0 %v1694
    %v1815 = vpop.f32.mrf.mxu0
    %v1816 = vadd.f32 %v1717, %v1815
    %v1817 = vpop.f32.mrf.mxu0
    %v1818 = vadd.f32 %v1717, %v1817
    %1819 = vmatprep.mubr.f32.mxu0 %v1698
    %1820 = vmatmul.mubr.f32.gmra.mxu0 %v1697
    %v1821 = vpop.f32.mrf.mxu0
    %v1822 = vadd.f32 %v1722, %v1821
    %v1823 = vpop.f32.mrf.mxu0
    %v1824 = vadd.f32 %v1722, %v1823
    %1825 = vdwg.mxu0
    %1826 = vmatprep.subr.mxu0 0.0
    %1827 = vmatpush1.msra.mxu0 0.0
    %1828 = vmatprep.subr.mxu0 0.0
    %1829 = vmatpush1.msra.mxu0 0.0
    %1830 = vmatprep.subr.mxu0 0.0
    %1831 = vmatpush1.msra.mxu0 0.0
    %1832 = vmatprep.subr.mxu0 0.0
    %1833 = vmatpush1.msra.mxu0 0.0
    %1834 = vmatprep.subr.mxu0 0.0
    %1835 = vmatpush1.msra.mxu0 0.0
    %1836 = vmatprep.subr.mxu0 0.0
    %1837 = vmatpush1.msra.mxu0 0.0
    %1838 = vmatprep.subr.mxu0 0.0
    %1839 = vmatpush1.msra.mxu0 0.0
    %1840 = vmatprep.subr.mxu0 0.0
    %1841 = vmatpush1.msra.mxu0 0.0
    %1842 = vmatprep.subr.mxu0 0.0
    %1843 = vmatpush1.msra.mxu0 0.0
    %1844 = vmatprep.subr.mxu0 0.0
    %1845 = vmatpush1.msra.mxu0 0.0
    %1846 = vmatprep.subr.mxu0 0.0
    %1847 = vmatpush1.msra.mxu0 0.0
    %1848 = vmatprep.subr.mxu0 0.0
    %1849 = vmatpush1.msra.mxu0 0.0
    %1850 = vmatprep.subr.mxu0 %v1685
    %1851 = vmatpush1.msra.mxu0 %v1684
    %1852 = vmatprep.subr.mxu0 %v1681
    %1853 = vmatpush1.msra.mxu0 %v1680
    %1854 = vmatprep.subr.mxu0 %v1677
    %1855 = vmatpush1.msra.mxu0 %v1676
    %1856 = vmatprep.subr.mxu0 %v1673
    %1857 = vmatpush1.msra.mxu0 %v1672
    %1858 = vmatprep.subr.mxu0 0.0
    %1859 = vmatpush2.msra.mxu0 0.0
    %1860 = vmatprep.subr.mxu0 0.0
    %1861 = vmatpush2.msra.mxu0 0.0
    %1862 = vmatprep.subr.mxu0 0.0
    %1863 = vmatpush2.msra.mxu0 0.0
    %1864 = vmatprep.subr.mxu0 0.0
    %1865 = vmatpush2.msra.mxu0 0.0
    %1866 = vmatprep.subr.mxu0 0.0
    %1867 = vmatpush2.msra.mxu0 0.0
    %1868 = vmatprep.subr.mxu0 0.0
    %1869 = vmatpush2.msra.mxu0 0.0
    %1870 = vmatprep.subr.mxu0 0.0
    %1871 = vmatpush2.msra.mxu0 0.0
    %1872 = vmatprep.subr.mxu0 0.0
    %1873 = vmatpush2.msra.mxu0 0.0
    %1874 = vmatprep.subr.mxu0 0.0
    %1875 = vmatpush2.msra.mxu0 0.0
    %1876 = vmatprep.subr.mxu0 0.0
    %1877 = vmatpush2.msra.mxu0 0.0
    %1878 = vmatprep.subr.mxu0 0.0
    %1879 = vmatpush2.msra.mxu0 0.0
    %1880 = vmatprep.subr.mxu0 0.0
    %1881 = vmatpush2.msra.mxu0 0.0
    %1882 = vmatprep.subr.mxu0 0.0
    %1883 = vmatpush2.msra.mxu0 0.0
    %1884 = vmatprep.subr.mxu0 0.0
    %1885 = vmatpush2.msra.mxu0 0.0
    %1886 = vmatprep.subr.mxu0 0.0
    %1887 = vmatpush2.msra.mxu0 0.0
    %1888 = vmatprep.subr.mxu0 0.0
    %1889 = vmatpush2.msra.mxu0 0.0
    %1890 = vmatprep.mubr.f32.mxu0 0.0
    %1891 = vmatmul.mubr.f32.gmra.mxu0 %v1726
    %v1892 = vpop.f32.mrf.mxu0
    %v1893 = vadd.f32 %v1804, %v1892
    %v1894 = vpop.f32.mrf.mxu0
    %v1895 = vadd.f32 %v1806, %v1894
    %1896 = vmatprep.mubr.f32.mxu0 0.0
    %1897 = vmatmul.mubr.f32.gmra.mxu0 %v1729
    %v1898 = vpop.f32.mrf.mxu0
    %v1899 = vadd.f32 %v1810, %v1898
    %v1900 = vpop.f32.mrf.mxu0
    %v1901 = vadd.f32 %v1812, %v1900
    %1902 = vmatprep.mubr.f32.mxu0 0.0
    %1903 = vmatmul.mubr.f32.gmra.mxu0 %v1732
    %v1904 = vpop.f32.mrf.mxu0
    %v1905 = vadd.f32 %v1816, %v1904
    %v1906 = vpop.f32.mrf.mxu0
    %v1907 = vadd.f32 %v1818, %v1906
    %1908 = vmatprep.mubr.f32.mxu0 0.0
    %1909 = vmatmul.mubr.f32.gmra.mxu0 %v1735
    %v1910 = vpop.f32.mrf.mxu0
    %v1911 = vadd.f32 %v1822, %v1910
    %v1912 = vpop.f32.mrf.mxu0
    %v1913 = vadd.f32 %v1824, %v1912
    %1914 = vdwg.mxu0
    %1915 = vmatprep.subr.mxu0 %v1607
    %1916 = vmatpush1.msra.mxu0 %v1606
    %1917 = vmatprep.subr.mxu0 %v1603
    %1918 = vmatpush1.msra.mxu0 %v1602
    %1919 = vmatprep.subr.mxu0 %v1599
    %1920 = vmatpush1.msra.mxu0 %v1598
    %1921 = vmatprep.subr.mxu0 %v1595
    %1922 = vmatpush1.msra.mxu0 %v1594
    %1923 = vmatprep.subr.mxu0 %v1591
    %1924 = vmatpush1.msra.mxu0 %v1590
    %1925 = vmatprep.subr.mxu0 %v1587
    %1926 = vmatpush1.msra.mxu0 %v1586
    %1927 = vmatprep.subr.mxu0 %v1583
    %1928 = vmatpush1.msra.mxu0 %v1582
    %1929 = vmatprep.subr.mxu0 %v1579
    %1930 = vmatpush1.msra.mxu0 %v1578
    %1931 = vmatprep.subr.mxu0 %v1575
    %1932 = vmatpush1.msra.mxu0 %v1574
    %1933 = vmatprep.subr.mxu0 %v1571
    %1934 = vmatpush1.msra.mxu0 %v1570
    %1935 = vmatprep.subr.mxu0 %v1567
    %1936 = vmatpush1.msra.mxu0 %v1566
    %1937 = vmatprep.subr.mxu0 %v1563
    %1938 = vmatpush1.msra.mxu0 %v1562
    %1939 = vmatprep.subr.mxu0 %v1559
    %1940 = vmatpush1.msra.mxu0 %v1558
    %1941 = vmatprep.subr.mxu0 %v1555
    %1942 = vmatpush1.msra.mxu0 %v1554
    %1943 = vmatprep.subr.mxu0 %v1551
    %1944 = vmatpush1.msra.mxu0 %v1550
    %1945 = vmatprep.subr.mxu0 %v1547
    %1946 = vmatpush1.msra.mxu0 %v1546
    %1947 = vmatprep.subr.mxu0 %v1671
    %1948 = vmatpush2.msra.mxu0 %v1670
    %1949 = vmatprep.subr.mxu0 %v1667
    %1950 = vmatpush2.msra.mxu0 %v1666
    %1951 = vmatprep.subr.mxu0 %v1663
    %1952 = vmatpush2.msra.mxu0 %v1662
    %1953 = vmatprep.subr.mxu0 %v1659
    %1954 = vmatpush2.msra.mxu0 %v1658
    %1955 = vmatprep.subr.mxu0 %v1655
    %1956 = vmatpush2.msra.mxu0 %v1654
    %1957 = vmatprep.subr.mxu0 %v1651
    %1958 = vmatpush2.msra.mxu0 %v1650
    %1959 = vmatprep.subr.mxu0 %v1647
    %1960 = vmatpush2.msra.mxu0 %v1646
    %1961 = vmatprep.subr.mxu0 %v1643
    %1962 = vmatpush2.msra.mxu0 %v1642
    %1963 = vmatprep.subr.mxu0 %v1639
    %1964 = vmatpush2.msra.mxu0 %v1638
    %1965 = vmatprep.subr.mxu0 %v1635
    %1966 = vmatpush2.msra.mxu0 %v1634
    %1967 = vmatprep.subr.mxu0 %v1631
    %1968 = vmatpush2.msra.mxu0 %v1630
    %1969 = vmatprep.subr.mxu0 %v1627
    %1970 = vmatpush2.msra.mxu0 %v1626
    %1971 = vmatprep.subr.mxu0 %v1623
    %1972 = vmatpush2.msra.mxu0 %v1622
    %1973 = vmatprep.subr.mxu0 %v1619
    %1974 = vmatpush2.msra.mxu0 %v1618
    %1975 = vmatprep.subr.mxu0 %v1615
    %1976 = vmatpush2.msra.mxu0 %v1614
    %1977 = vmatprep.subr.mxu0 %v1611
    %1978 = vmatpush2.msra.mxu0 %v1610
    %1979 = vmatprep.mubr.f32.mxu0 %v1689
    %1980 = vmatmul.mubr.f32.gmra.mxu0 %v1688
    %v1981 = vpop.f32.mrf.mxu0
    %v1982 = vadd.f32 %v1707, %v1981
    %v1983 = vpop.f32.mrf.mxu0
    %v1984 = vadd.f32 %v1707, %v1983
    %1985 = vmatprep.mubr.f32.mxu0 %v1692
    %1986 = vmatmul.mubr.f32.gmra.mxu0 %v1691
    %v1987 = vpop.f32.mrf.mxu0
    %v1988 = vadd.f32 %v1712, %v1987
    %v1989 = vpop.f32.mrf.mxu0
    %v1990 = vadd.f32 %v1712, %v1989
    %1991 = vmatprep.mubr.f32.mxu0 %v1695
    %1992 = vmatmul.mubr.f32.gmra.mxu0 %v1694
    %v1993 = vpop.f32.mrf.mxu0
    %v1994 = vadd.f32 %v1717, %v1993
    %v1995 = vpop.f32.mrf.mxu0
    %v1996 = vadd.f32 %v1717, %v1995
    %1997 = vmatprep.mubr.f32.mxu0 %v1698
    %1998 = vmatmul.mubr.f32.gmra.mxu0 %v1697
    %v1999 = vpop.f32.mrf.mxu0
    %v2000 = vadd.f32 %v1722, %v1999
    %v2001 = vpop.f32.mrf.mxu0
    %v2002 = vadd.f32 %v1722, %v2001
    %2003 = vdwg.mxu0
    %2004 = vmatprep.subr.mxu0 0.0
    %2005 = vmatpush1.msra.mxu0 0.0
    %2006 = vmatprep.subr.mxu0 0.0
    %2007 = vmatpush1.msra.mxu0 0.0
    %2008 = vmatprep.subr.mxu0 0.0
    %2009 = vmatpush1.msra.mxu0 0.0
    %2010 = vmatprep.subr.mxu0 0.0
    %2011 = vmatpush1.msra.mxu0 0.0
    %2012 = vmatprep.subr.mxu0 0.0
    %2013 = vmatpush1.msra.mxu0 0.0
    %2014 = vmatprep.subr.mxu0 0.0
    %2015 = vmatpush1.msra.mxu0 0.0
    %2016 = vmatprep.subr.mxu0 0.0
    %2017 = vmatpush1.msra.mxu0 0.0
    %2018 = vmatprep.subr.mxu0 0.0
    %2019 = vmatpush1.msra.mxu0 0.0
    %2020 = vmatprep.subr.mxu0 0.0
    %2021 = vmatpush1.msra.mxu0 0.0
    %2022 = vmatprep.subr.mxu0 0.0
    %2023 = vmatpush1.msra.mxu0 0.0
    %2024 = vmatprep.subr.mxu0 0.0
    %2025 = vmatpush1.msra.mxu0 0.0
    %2026 = vmatprep.subr.mxu0 0.0
    %2027 = vmatpush1.msra.mxu0 0.0
    %2028 = vmatprep.subr.mxu0 %v1687
    %2029 = vmatpush1.msra.mxu0 %v1686
    %2030 = vmatprep.subr.mxu0 %v1683
    %2031 = vmatpush1.msra.mxu0 %v1682
    %2032 = vmatprep.subr.mxu0 %v1679
    %2033 = vmatpush1.msra.mxu0 %v1678
    %2034 = vmatprep.subr.mxu0 %v1675
    %2035 = vmatpush1.msra.mxu0 %v1674
    %2036 = vmatprep.subr.mxu0 0.0
    %2037 = vmatpush2.msra.mxu0 0.0
    %2038 = vmatprep.subr.mxu0 0.0
    %2039 = vmatpush2.msra.mxu0 0.0
    %2040 = vmatprep.subr.mxu0 0.0
    %2041 = vmatpush2.msra.mxu0 0.0
    %2042 = vmatprep.subr.mxu0 0.0
    %2043 = vmatpush2.msra.mxu0 0.0
    %2044 = vmatprep.subr.mxu0 0.0
    %2045 = vmatpush2.msra.mxu0 0.0
    %2046 = vmatprep.subr.mxu0 0.0
    %2047 = vmatpush2.msra.mxu0 0.0
    %2048 = vmatprep.subr.mxu0 0.0
    %2049 = vmatpush2.msra.mxu0 0.0
    %2050 = vmatprep.subr.mxu0 0.0
    %2051 = vmatpush2.msra.mxu0 0.0
    %2052 = vmatprep.subr.mxu0 0.0
    %2053 = vmatpush2.msra.mxu0 0.0
    %2054 = vmatprep.subr.mxu0 0.0
    %2055 = vmatpush2.msra.mxu0 0.0
    %2056 = vmatprep.subr.mxu0 0.0
    %2057 = vmatpush2.msra.mxu0 0.0
    %2058 = vmatprep.subr.mxu0 0.0
    %2059 = vmatpush2.msra.mxu0 0.0
    %2060 = vmatprep.subr.mxu0 0.0
    %2061 = vmatpush2.msra.mxu0 0.0
    %2062 = vmatprep.subr.mxu0 0.0
    %2063 = vmatpush2.msra.mxu0 0.0
    %2064 = vmatprep.subr.mxu0 0.0
    %2065 = vmatpush2.msra.mxu0 0.0
    %2066 = vmatprep.subr.mxu0 0.0
    %2067 = vmatpush2.msra.mxu0 0.0
    %2068 = vmatprep.mubr.f32.mxu0 0.0
    %2069 = vmatmul.mubr.f32.gmra.mxu0 %v1726
    %v2070 = vpop.f32.mrf.mxu0
    %v2071 = vadd.f32 %v1982, %v2070
    %v2072 = vpop.f32.mrf.mxu0
    %v2073 = vadd.f32 %v1984, %v2072
    %2074 = vmatprep.mubr.f32.mxu0 0.0
    %2075 = vmatmul.mubr.f32.gmra.mxu0 %v1729
    %v2076 = vpop.f32.mrf.mxu0
    %v2077 = vadd.f32 %v1988, %v2076
    %v2078 = vpop.f32.mrf.mxu0
    %v2079 = vadd.f32 %v1990, %v2078
    %2080 = vmatprep.mubr.f32.mxu0 0.0
    %2081 = vmatmul.mubr.f32.gmra.mxu0 %v1732
    %v2082 = vpop.f32.mrf.mxu0
    %v2083 = vadd.f32 %v1994, %v2082
    %v2084 = vpop.f32.mrf.mxu0
    %v2085 = vadd.f32 %v1996, %v2084
    %2086 = vmatprep.mubr.f32.mxu0 0.0
    %2087 = vmatmul.mubr.f32.gmra.mxu0 %v1735
    %v2088 = vpop.f32.mrf.mxu0
    %v2089 = vadd.f32 %v2000, %v2088
    %v2090 = vpop.f32.mrf.mxu0
    %v2091 = vadd.f32 %v2002, %v2090
    %2092 = vdwg.mxu0
    %v2093 = vmax.f32 %v1893, 0.0
    %v2094 = vmax.f32 %v1895, 0.0
    %v2095 = vmax.f32 %v2071, 0.0
    %v2096 = vmax.f32 %v2073, 0.0
    %v2097 = vmax.f32 %v1899, 0.0
    %v2098 = vmax.f32 %v1901, 0.0
    %v2099 = vmax.f32 %v2077, 0.0
    %v2100 = vmax.f32 %v2079, 0.0
    %v2101 = vmax.f32 %v1905, 0.0
    %v2102 = vmax.f32 %v1907, 0.0
    %v2103 = vmax.f32 %v2083, 0.0
    %v2104 = vmax.f32 %v2085, 0.0
    %v2105 = vmax.f32 %v1911, 0.0
    %v2106 = vmax.f32 %v1913, 0.0
    %v2107 = vmax.f32 %v2089, 0.0
    %v2108 = vmax.f32 %v2091, 0.0
    %2125 = vrot.lane.b32.xlu0 %v2093, 127
    %v2126 = vpop.permute.xlu0 %2125
    %2127 = vrot.lane.b32.xlu0 %v2094, 127
    %v2128 = vpop.permute.xlu0 %2127
    %2129 = vrot.lane.b32.xlu0 %v2095, 127
    %v2130 = vpop.permute.xlu0 %2129
    %2131 = vrot.lane.b32.xlu0 %v2096, 127
    %v2132 = vpop.permute.xlu0 %2131
    %2133 = vrot.lane.b32.xlu0 %v2097, 127
    %v2134 = vpop.permute.xlu0 %2133
    %2135 = vrot.lane.b32.xlu0 %v2098, 127
    %v2136 = vpop.permute.xlu0 %2135
    %2137 = vrot.lane.b32.xlu0 %v2099, 127
    %v2138 = vpop.permute.xlu0 %2137
    %2139 = vrot.lane.b32.xlu0 %v2100, 127
    %v2140 = vpop.permute.xlu0 %2139
    %2141 = vrot.lane.b32.xlu0 %v2101, 127
    %v2142 = vpop.permute.xlu0 %2141
    %2143 = vrot.lane.b32.xlu0 %v2102, 127
    %v2144 = vpop.permute.xlu0 %2143
    %2145 = vrot.lane.b32.xlu0 %v2103, 127
    %v2146 = vpop.permute.xlu0 %2145
    %2147 = vrot.lane.b32.xlu0 %v2104, 127
    %v2148 = vpop.permute.xlu0 %2147
    %2149 = vrot.lane.b32.xlu0 %v2105, 127
    %v2150 = vpop.permute.xlu0 %2149
    %2151 = vrot.lane.b32.xlu0 %v2106, 127
    %v2152 = vpop.permute.xlu0 %2151
    %2153 = vrot.lane.b32.xlu0 %v2107, 127
    %v2154 = vpop.permute.xlu0 %2153
    %2155 = vrot.lane.b32.xlu0 %v2108, 127
    %v2156 = vpop.permute.xlu0 %2155
    %v2157 = vsel %vm258, %v2126, %v2128
    %v2158 = vsel %vm258, %v2128, %v2130
    %v2159 = vsel %vm258, %v2130, %v2132
    %v2160 = vsel %vm258, %v2134, %v2136
    %v2161 = vsel %vm258, %v2136, %v2138
    %v2162 = vsel %vm258, %v2138, %v2140
    %v2163 = vsel %vm258, %v2142, %v2144
    %v2164 = vsel %vm258, %v2144, %v2146
    %v2165 = vsel %vm258, %v2146, %v2148
    %v2166 = vsel %vm258, %v2150, %v2152
    %v2167 = vsel %vm258, %v2152, %v2154
    %v2168 = vsel %vm258, %v2154, %v2156
    %v2189 = vsel %vm258, %v2132, %v2126
    %v2190 = vsel %vm258, %v2140, %v2134
    %v2191 = vsel %vm258, %v2148, %v2142
    %v2192 = vsel %vm258, %v2156, %v2150
    %2193 = vrot.lane.b32.xlu0 %v2096, 1
    %v2194 = vpop.permute.xlu0 %2193
    %2195 = vrot.lane.b32.xlu0 %v2100, 1
    %v2196 = vpop.permute.xlu0 %2195
    %2197 = vrot.lane.b32.xlu0 %v2104, 1
    %v2198 = vpop.permute.xlu0 %2197
    %2199 = vrot.lane.b32.xlu0 %v2108, 1
    %v2200 = vpop.permute.xlu0 %2199
    %2205 = vrot.lane.b32.xlu0 %v2093, 1
    %v2206 = vpop.permute.xlu0 %2205
    %2207 = vrot.lane.b32.xlu0 %v2094, 1
    %v2208 = vpop.permute.xlu0 %2207
    %2209 = vrot.lane.b32.xlu0 %v2095, 1
    %v2210 = vpop.permute.xlu0 %2209
    %2211 = vrot.lane.b32.xlu0 %v2097, 1
    %v2212 = vpop.permute.xlu0 %2211
    %2213 = vrot.lane.b32.xlu0 %v2098, 1
    %v2214 = vpop.permute.xlu0 %2213
    %2215 = vrot.lane.b32.xlu0 %v2099, 1
    %v2216 = vpop.permute.xlu0 %2215
    %2217 = vrot.lane.b32.xlu0 %v2101, 1
    %v2218 = vpop.permute.xlu0 %2217
    %2219 = vrot.lane.b32.xlu0 %v2102, 1
    %v2220 = vpop.permute.xlu0 %2219
    %2221 = vrot.lane.b32.xlu0 %v2103, 1
    %v2222 = vpop.permute.xlu0 %2221
    %2223 = vrot.lane.b32.xlu0 %v2105, 1
    %v2224 = vpop.permute.xlu0 %2223
    %2225 = vrot.lane.b32.xlu0 %v2106, 1
    %v2226 = vpop.permute.xlu0 %2225
    %2227 = vrot.lane.b32.xlu0 %v2107, 1
    %v2228 = vpop.permute.xlu0 %2227
    %v2229 = vsel %vm208, %v2206, %v2208
    %v2230 = vsel %vm208, %v2208, %v2210
    %v2231 = vsel %vm208, %v2210, %v2194
    %v2232 = vsel %vm208, %v2212, %v2214
    %v2233 = vsel %vm208, %v2214, %v2216
    %v2234 = vsel %vm208, %v2216, %v2196
    %v2235 = vsel %vm208, %v2218, %v2220
    %v2236 = vsel %vm208, %v2220, %v2222
    %v2237 = vsel %vm208, %v2222, %v2198
    %v2238 = vsel %vm208, %v2224, %v2226
    %v2239 = vsel %vm208, %v2226, %v2228
    %v2240 = vsel %vm208, %v2228, %v2200
    %v2257 = vsel %vm208, %v2194, %v2206
    %v2258 = vsel %vm208, %v2196, %v2212
    %v2259 = vsel %vm208, %v2198, %v2218
    %v2260 = vsel %vm208, %v2200, %v2224
    %v2261 = vsel %vm44, 1, 0
    %v2262 = vlaneseq
    %v2263 = vshrl.u32 %v2262, 7
    %v2264 = vsub.s32 0, %v2263
    %v2265 = vrot.slane %v2261, %v2264
    %v2266 = vlaneseq
    %v2267 = vshrl.u32 %v2266, 7
    %v2268 = vsub.s32 1, %v2267
    %v2269 = vrot.slane %v2261, %v2268
    %v2270 = vlaneseq
    %v2271 = vshrl.u32 %v2270, 7
    %v2272 = vsub.s32 2, %v2271
    %v2273 = vrot.slane %v2261, %v2272
    %v2274 = vlaneseq
    %v2275 = vshrl.u32 %v2274, 7
    %v2276 = vsub.s32 3, %v2275
    %v2277 = vrot.slane %v2261, %v2276
    %vm2278 = vcmp.eq.s32.totalorder %v2265, 1
    %vm2279 = vcmp.eq.s32.totalorder %v2269, 1
    %vm2280 = vcmp.eq.s32.totalorder %v2273, 1
    %vm2281 = vcmp.eq.s32.totalorder %v2277, 1
    %v2282 = vsel %vm2278, %v2157, %v2257
    %v2283 = vsel %vm2279, %v2158, %v2229
    %v2284 = vsel %vm2280, %v2159, %v2230
    %v2285 = vsel %vm2281, %v2189, %v2231
    %v2286 = vsel %vm2278, %v2160, %v2258
    %v2287 = vsel %vm2279, %v2161, %v2232
    %v2288 = vsel %vm2280, %v2162, %v2233
    %v2289 = vsel %vm2281, %v2190, %v2234
    %v2290 = vsel %vm2278, %v2163, %v2259
    %v2291 = vsel %vm2279, %v2164, %v2235
    %v2292 = vsel %vm2280, %v2165, %v2236
    %v2293 = vsel %vm2281, %v2191, %v2237
    %v2294 = vsel %vm2278, %v2166, %v2260
    %v2295 = vsel %vm2279, %v2167, %v2238
    %v2296 = vsel %vm2280, %v2168, %v2239
    %v2297 = vsel %vm2281, %v2192, %v2240
    %v2298 = vmax.f32 %v2093, %v2282
    %v2299 = vmax.f32 %v2094, %v2283
    %v2300 = vmax.f32 %v2095, %v2284
    %v2301 = vmax.f32 %v2096, %v2285
    %v2302 = vmax.f32 %v2097, %v2286
    %v2303 = vmax.f32 %v2098, %v2287
    %v2304 = vmax.f32 %v2099, %v2288
    %v2305 = vmax.f32 %v2100, %v2289
    %v2306 = vmax.f32 %v2101, %v2290
    %v2307 = vmax.f32 %v2102, %v2291
    %v2308 = vmax.f32 %v2103, %v2292
    %v2309 = vmax.f32 %v2104, %v2293
    %v2310 = vmax.f32 %v2105, %v2294
    %v2311 = vmax.f32 %v2106, %v2295
    %v2312 = vmax.f32 %v2107, %v2296
    %v2313 = vmax.f32 %v2108, %v2297
    %2330 = vrot.lane.b32.xlu0 %v2298, 112
    %v2331 = vpop.permute.xlu0 %2330
    %2332 = vrot.lane.b32.xlu0 %v2299, 112
    %v2333 = vpop.permute.xlu0 %2332
    %2334 = vrot.lane.b32.xlu0 %v2300, 112
    %v2335 = vpop.permute.xlu0 %2334
    %2336 = vrot.lane.b32.xlu0 %v2301, 112
    %v2337 = vpop.permute.xlu0 %2336
    %2338 = vrot.lane.b32.xlu0 %v2302, 112
    %v2339 = vpop.permute.xlu0 %2338
    %2340 = vrot.lane.b32.xlu0 %v2303, 112
    %v2341 = vpop.permute.xlu0 %2340
    %2342 = vrot.lane.b32.xlu0 %v2304, 112
    %v2343 = vpop.permute.xlu0 %2342
    %2344 = vrot.lane.b32.xlu0 %v2305, 112
    %v2345 = vpop.permute.xlu0 %2344
    %2346 = vrot.lane.b32.xlu0 %v2306, 112
    %v2347 = vpop.permute.xlu0 %2346
    %2348 = vrot.lane.b32.xlu0 %v2307, 112
    %v2349 = vpop.permute.xlu0 %2348
    %2350 = vrot.lane.b32.xlu0 %v2308, 112
    %v2351 = vpop.permute.xlu0 %2350
    %2352 = vrot.lane.b32.xlu0 %v2309, 112
    %v2353 = vpop.permute.xlu0 %2352
    %2354 = vrot.lane.b32.xlu0 %v2310, 112
    %v2355 = vpop.permute.xlu0 %2354
    %2356 = vrot.lane.b32.xlu0 %v2311, 112
    %v2357 = vpop.permute.xlu0 %2356
    %2358 = vrot.lane.b32.xlu0 %v2312, 112
    %v2359 = vpop.permute.xlu0 %2358
    %2360 = vrot.lane.b32.xlu0 %v2313, 112
    %v2361 = vpop.permute.xlu0 %2360
    %v2362 = vsel %vm354, %v2331, %v2333
    %v2363 = vsel %vm354, %v2333, %v2335
    %v2364 = vsel %vm354, %v2335, %v2337
    %v2365 = vsel %vm354, %v2339, %v2341
    %v2366 = vsel %vm354, %v2341, %v2343
    %v2367 = vsel %vm354, %v2343, %v2345
    %v2368 = vsel %vm354, %v2347, %v2349
    %v2369 = vsel %vm354, %v2349, %v2351
    %v2370 = vsel %vm354, %v2351, %v2353
    %v2371 = vsel %vm354, %v2355, %v2357
    %v2372 = vsel %vm354, %v2357, %v2359
    %v2373 = vsel %vm354, %v2359, %v2361
    %v2394 = vsel %vm354, %v2337, %v2331
    %v2395 = vsel %vm354, %v2345, %v2339
    %v2396 = vsel %vm354, %v2353, %v2347
    %v2397 = vsel %vm354, %v2361, %v2355
    %2398 = vrot.lane.b32.xlu0 %v2301, 16
    %v2399 = vpop.permute.xlu0 %2398
    %2400 = vrot.lane.b32.xlu0 %v2305, 16
    %v2401 = vpop.permute.xlu0 %2400
    %2402 = vrot.lane.b32.xlu0 %v2309, 16
    %v2403 = vpop.permute.xlu0 %2402
    %2404 = vrot.lane.b32.xlu0 %v2313, 16
    %v2405 = vpop.permute.xlu0 %2404
    %2410 = vrot.lane.b32.xlu0 %v2298, 16
    %v2411 = vpop.permute.xlu0 %2410
    %2412 = vrot.lane.b32.xlu0 %v2299, 16
    %v2413 = vpop.permute.xlu0 %2412
    %2414 = vrot.lane.b32.xlu0 %v2300, 16
    %v2415 = vpop.permute.xlu0 %2414
    %2416 = vrot.lane.b32.xlu0 %v2302, 16
    %v2417 = vpop.permute.xlu0 %2416
    %2418 = vrot.lane.b32.xlu0 %v2303, 16
    %v2419 = vpop.permute.xlu0 %2418
    %2420 = vrot.lane.b32.xlu0 %v2304, 16
    %v2421 = vpop.permute.xlu0 %2420
    %2422 = vrot.lane.b32.xlu0 %v2306, 16
    %v2423 = vpop.permute.xlu0 %2422
    %2424 = vrot.lane.b32.xlu0 %v2307, 16
    %v2425 = vpop.permute.xlu0 %2424
    %2426 = vrot.lane.b32.xlu0 %v2308, 16
    %v2427 = vpop.permute.xlu0 %2426
    %2428 = vrot.lane.b32.xlu0 %v2310, 16
    %v2429 = vpop.permute.xlu0 %2428
    %2430 = vrot.lane.b32.xlu0 %v2311, 16
    %v2431 = vpop.permute.xlu0 %2430
    %2432 = vrot.lane.b32.xlu0 %v2312, 16
    %v2433 = vpop.permute.xlu0 %2432
    %v2434 = vsel %vm112, %v2411, %v2413
    %v2435 = vsel %vm112, %v2413, %v2415
    %v2436 = vsel %vm112, %v2415, %v2399
    %v2437 = vsel %vm112, %v2417, %v2419
    %v2438 = vsel %vm112, %v2419, %v2421
    %v2439 = vsel %vm112, %v2421, %v2401
    %v2440 = vsel %vm112, %v2423, %v2425
    %v2441 = vsel %vm112, %v2425, %v2427
    %v2442 = vsel %vm112, %v2427, %v2403
    %v2443 = vsel %vm112, %v2429, %v2431
    %v2444 = vsel %vm112, %v2431, %v2433
    %v2445 = vsel %vm112, %v2433, %v2405
    %v2462 = vsel %vm112, %v2399, %v2411
    %v2463 = vsel %vm112, %v2401, %v2417
    %v2464 = vsel %vm112, %v2403, %v2423
    %v2465 = vsel %vm112, %v2405, %v2429
    %v2466 = vsel %vm41, 1, 0
    %v2467 = vlaneseq
    %v2468 = vshrl.u32 %v2467, 7
    %v2469 = vsub.s32 0, %v2468
    %v2470 = vrot.slane %v2466, %v2469
    %v2471 = vlaneseq
    %v2472 = vshrl.u32 %v2471, 7
    %v2473 = vsub.s32 1, %v2472
    %v2474 = vrot.slane %v2466, %v2473
    %v2475 = vlaneseq
    %v2476 = vshrl.u32 %v2475, 7
    %v2477 = vsub.s32 2, %v2476
    %v2478 = vrot.slane %v2466, %v2477
    %v2479 = vlaneseq
    %v2480 = vshrl.u32 %v2479, 7
    %v2481 = vsub.s32 3, %v2480
    %v2482 = vrot.slane %v2466, %v2481
    %vm2483 = vcmp.eq.s32.totalorder %v2470, 1
    %vm2484 = vcmp.eq.s32.totalorder %v2474, 1
    %vm2485 = vcmp.eq.s32.totalorder %v2478, 1
    %vm2486 = vcmp.eq.s32.totalorder %v2482, 1
    %v2487 = vsel %vm2483, %v2362, %v2462
    %v2488 = vsel %vm2484, %v2363, %v2434
    %v2489 = vsel %vm2485, %v2364, %v2435
    %v2490 = vsel %vm2486, %v2394, %v2436
    %v2491 = vsel %vm2483, %v2365, %v2463
    %v2492 = vsel %vm2484, %v2366, %v2437
    %v2493 = vsel %vm2485, %v2367, %v2438
    %v2494 = vsel %vm2486, %v2395, %v2439
    %v2495 = vsel %vm2483, %v2368, %v2464
    %v2496 = vsel %vm2484, %v2369, %v2440
    %v2497 = vsel %vm2485, %v2370, %v2441
    %v2498 = vsel %vm2486, %v2396, %v2442
    %v2499 = vsel %vm2483, %v2371, %v2465
    %v2500 = vsel %vm2484, %v2372, %v2443
    %v2501 = vsel %vm2485, %v2373, %v2444
    %v2502 = vsel %vm2486, %v2397, %v2445
    %v2503 = vmax.f32 %v2298, %v2487
    %v2504 = vmax.f32 %v2299, %v2488
    %v2505 = vmax.f32 %v2300, %v2489
    %v2506 = vmax.f32 %v2301, %v2490
    %v2507 = vmax.f32 %v2302, %v2491
    %v2508 = vmax.f32 %v2303, %v2492
    %v2509 = vmax.f32 %v2304, %v2493
    %v2510 = vmax.f32 %v2305, %v2494
    %v2511 = vmax.f32 %v2306, %v2495
    %v2512 = vmax.f32 %v2307, %v2496
    %v2513 = vmax.f32 %v2308, %v2497
    %v2514 = vmax.f32 %v2309, %v2498
    %v2515 = vmax.f32 %v2310, %v2499
    %v2516 = vmax.f32 %v2311, %v2500
    %v2517 = vmax.f32 %v2312, %v2501
    %v2518 = vmax.f32 %v2313, %v2502
    %v2519 = vld [vmem:[%s6] sm:$0xff]
    %v2520 = vld [vmem:[%s6 + $0x8] sm:$0xff]
    %v2521 = vld [vmem:[%s6 + $0x10] sm:$0xff]
    %v2522 = vld [vmem:[%s6 + $0x18] sm:$0xff]
    %v2523 = vld [vmem:[%s6 + $0x20] sm:$0xff]
    %v2524 = vld [vmem:[%s6 + $0x28] sm:$0xff]
    %v2525 = vld [vmem:[%s6 + $0x30] sm:$0xff]
    %v2526 = vld [vmem:[%s6 + $0x38] sm:$0xff]
    %v2527 = vld [vmem:[%s6 + $0x40] sm:$0xff]
    %v2528 = vld [vmem:[%s6 + $0x48] sm:$0xff]
    %v2529 = vld [vmem:[%s6 + $0x50] sm:$0xff]
    %v2530 = vld [vmem:[%s6 + $0x58] sm:$0xff]
    %v2531 = vld [vmem:[%s6 + $0x60] sm:$0xff]
    %v2532 = vld [vmem:[%s6 + $0x68] sm:$0xff]
    %v2533 = vld [vmem:[%s6 + $0x70] sm:$0xff]
    %v2534 = vld [vmem:[%s6 + $0x78] sm:$0xff]
    %v2536 = vsel %vm1724, %v2519, 0
    %v2539 = vsel %vm1724, %v2520, 0
    %v2542 = vsel %vm1724, %v2521, 0
    %v2545 = vsel %vm1724, %v2522, 0
    %v2548 = vsel %vm1724, %v2523, 0
    %v2551 = vsel %vm1724, %v2524, 0
    %v2554 = vsel %vm1724, %v2525, 0
    %v2557 = vsel %vm1724, %v2526, 0
    %v2560 = vsel %vm1724, %v2527, 0
    %v2563 = vsel %vm1724, %v2528, 0
    %v2566 = vsel %vm1724, %v2529, 0
    %v2569 = vsel %vm1724, %v2530, 0
    %v2572 = vsel %vm1724, %v2531, 0
    %v2575 = vsel %vm1724, %v2532, 0
    %v2578 = vsel %vm1724, %v2533, 0
    %v2581 = vsel %vm1724, %v2534, 0
    %2583 = vmatprep.subr.mxu0 0.0
    %2584 = vmatpush1.msra.mxu0 0.0
    %2585 = vmatprep.subr.mxu0 0.0
    %2586 = vmatpush1.msra.mxu0 0.0
    %2587 = vmatprep.subr.mxu0 0.0
    %2588 = vmatpush1.msra.mxu0 0.0
    %2589 = vmatprep.subr.mxu0 0.0
    %2590 = vmatpush1.msra.mxu0 0.0
    %2591 = vmatprep.subr.mxu0 0.0
    %2592 = vmatpush1.msra.mxu0 0.0
    %2593 = vmatprep.subr.mxu0 0.0
    %2594 = vmatpush1.msra.mxu0 0.0
    %2595 = vmatprep.subr.mxu0 0.0
    %2596 = vmatpush1.msra.mxu0 0.0
    %2597 = vmatprep.subr.mxu0 0.0
    %2598 = vmatpush1.msra.mxu0 0.0
    %2599 = vmatprep.subr.mxu0 0.0
    %2600 = vmatpush1.msra.mxu0 0.0
    %2601 = vmatprep.subr.mxu0 0.0
    %2602 = vmatpush1.msra.mxu0 0.0
    %2603 = vmatprep.subr.mxu0 0.0
    %2604 = vmatpush1.msra.mxu0 0.0
    %2605 = vmatprep.subr.mxu0 0.0
    %2606 = vmatpush1.msra.mxu0 0.0
    %2607 = vmatprep.subr.mxu0 %v2516
    %2608 = vmatpush1.msra.mxu0 %v2515
    %2609 = vmatprep.subr.mxu0 %v2512
    %2610 = vmatpush1.msra.mxu0 %v2511
    %2611 = vmatprep.subr.mxu0 %v2508
    %2612 = vmatpush1.msra.mxu0 %v2507
    %2613 = vmatprep.subr.mxu0 %v2504
    %2614 = vmatpush1.msra.mxu0 %v2503
    %2615 = vmatprep.subr.mxu0 0.0
    %2616 = vmatpush2.msra.mxu0 0.0
    %2617 = vmatprep.subr.mxu0 0.0
    %2618 = vmatpush2.msra.mxu0 0.0
    %2619 = vmatprep.subr.mxu0 0.0
    %2620 = vmatpush2.msra.mxu0 0.0
    %2621 = vmatprep.subr.mxu0 0.0
    %2622 = vmatpush2.msra.mxu0 0.0
    %2623 = vmatprep.subr.mxu0 0.0
    %2624 = vmatpush2.msra.mxu0 0.0
    %2625 = vmatprep.subr.mxu0 0.0
    %2626 = vmatpush2.msra.mxu0 0.0
    %2627 = vmatprep.subr.mxu0 0.0
    %2628 = vmatpush2.msra.mxu0 0.0
    %2629 = vmatprep.subr.mxu0 0.0
    %2630 = vmatpush2.msra.mxu0 0.0
    %2631 = vmatprep.subr.mxu0 0.0
    %2632 = vmatpush2.msra.mxu0 0.0
    %2633 = vmatprep.subr.mxu0 0.0
    %2634 = vmatpush2.msra.mxu0 0.0
    %2635 = vmatprep.subr.mxu0 0.0
    %2636 = vmatpush2.msra.mxu0 0.0
    %2637 = vmatprep.subr.mxu0 0.0
    %2638 = vmatpush2.msra.mxu0 0.0
    %2639 = vmatprep.subr.mxu0 0.0
    %2640 = vmatpush2.msra.mxu0 0.0
    %2641 = vmatprep.subr.mxu0 0.0
    %2642 = vmatpush2.msra.mxu0 0.0
    %2643 = vmatprep.subr.mxu0 0.0
    %2644 = vmatpush2.msra.mxu0 0.0
    %2645 = vmatprep.subr.mxu0 0.0
    %2646 = vmatpush2.msra.mxu0 0.0
    %2647 = vmatprep.mubr.f32.mxu0 0.0
    %2648 = vmatmul.mubr.f32.gmra.mxu0 %v2536
    %v2649 = vpop.f32.mrf.mxu0
    %v2650 = vadd.f32 0.0, %v2649
    %v2651 = vpop.f32.mrf.mxu0
    %v2652 = vadd.f32 0.0, %v2651
    %2653 = vmatprep.mubr.f32.mxu0 0.0
    %2654 = vmatmul.mubr.f32.gmra.mxu0 %v2539
    %v2655 = vpop.f32.mrf.mxu0
    %v2656 = vadd.f32 0.0, %v2655
    %v2657 = vpop.f32.mrf.mxu0
    %v2658 = vadd.f32 0.0, %v2657
    %2659 = vmatprep.mubr.f32.mxu0 0.0
    %2660 = vmatmul.mubr.f32.gmra.mxu0 %v2542
    %v2661 = vpop.f32.mrf.mxu0
    %v2662 = vadd.f32 0.0, %v2661
    %v2663 = vpop.f32.mrf.mxu0
    %v2664 = vadd.f32 0.0, %v2663
    %2665 = vmatprep.mubr.f32.mxu0 0.0
    %2666 = vmatmul.mubr.f32.gmra.mxu0 %v2545
    %v2667 = vpop.f32.mrf.mxu0
    %v2668 = vadd.f32 0.0, %v2667
    %v2669 = vpop.f32.mrf.mxu0
    %v2670 = vadd.f32 0.0, %v2669
    %2671 = vmatprep.mubr.f32.mxu0 0.0
    %2672 = vmatmul.mubr.f32.gmra.mxu0 %v2548
    %v2673 = vpop.f32.mrf.mxu0
    %v2674 = vadd.f32 0.0, %v2673
    %v2675 = vpop.f32.mrf.mxu0
    %v2676 = vadd.f32 0.0, %v2675
    %2677 = vmatprep.mubr.f32.mxu0 0.0
    %2678 = vmatmul.mubr.f32.gmra.mxu0 %v2551
    %v2679 = vpop.f32.mrf.mxu0
    %v2680 = vadd.f32 0.0, %v2679
    %v2681 = vpop.f32.mrf.mxu0
    %v2682 = vadd.f32 0.0, %v2681
    %2683 = vmatprep.mubr.f32.mxu0 0.0
    %2684 = vmatmul.mubr.f32.gmra.mxu0 %v2554
    %v2685 = vpop.f32.mrf.mxu0
    %v2686 = vadd.f32 0.0, %v2685
    %v2687 = vpop.f32.mrf.mxu0
    %v2688 = vadd.f32 0.0, %v2687
    %2689 = vmatprep.mubr.f32.mxu0 0.0
    %2690 = vmatmul.mubr.f32.gmra.mxu0 %v2557
    %v2691 = vpop.f32.mrf.mxu0
    %v2692 = vadd.f32 0.0, %v2691
    %v2693 = vpop.f32.mrf.mxu0
    %v2694 = vadd.f32 0.0, %v2693
    %2695 = vmatprep.mubr.f32.mxu0 0.0
    %2696 = vmatmul.mubr.f32.gmra.mxu0 %v2560
    %v2697 = vpop.f32.mrf.mxu0
    %v2698 = vadd.f32 0.0, %v2697
    %v2699 = vpop.f32.mrf.mxu0
    %v2700 = vadd.f32 0.0, %v2699
    %2701 = vmatprep.mubr.f32.mxu0 0.0
    %2702 = vmatmul.mubr.f32.gmra.mxu0 %v2563
    %v2703 = vpop.f32.mrf.mxu0
    %v2704 = vadd.f32 0.0, %v2703
    %v2705 = vpop.f32.mrf.mxu0
    %v2706 = vadd.f32 0.0, %v2705
    %2707 = vmatprep.mubr.f32.mxu0 0.0
    %2708 = vmatmul.mubr.f32.gmra.mxu0 %v2566
    %v2709 = vpop.f32.mrf.mxu0
    %v2710 = vadd.f32 0.0, %v2709
    %v2711 = vpop.f32.mrf.mxu0
    %v2712 = vadd.f32 0.0, %v2711
    %2713 = vmatprep.mubr.f32.mxu0 0.0
    %2714 = vmatmul.mubr.f32.gmra.mxu0 %v2569
    %v2715 = vpop.f32.mrf.mxu0
    %v2716 = vadd.f32 0.0, %v2715
    %v2717 = vpop.f32.mrf.mxu0
    %v2718 = vadd.f32 0.0, %v2717
    %2719 = vmatprep.mubr.f32.mxu0 0.0
    %2720 = vmatmul.mubr.f32.gmra.mxu0 %v2572
    %v2721 = vpop.f32.mrf.mxu0
    %v2722 = vadd.f32 0.0, %v2721
    %v2723 = vpop.f32.mrf.mxu0
    %v2724 = vadd.f32 0.0, %v2723
    %2725 = vmatprep.mubr.f32.mxu0 0.0
    %2726 = vmatmul.mubr.f32.gmra.mxu0 %v2575
    %v2727 = vpop.f32.mrf.mxu0
    %v2728 = vadd.f32 0.0, %v2727
    %v2729 = vpop.f32.mrf.mxu0
    %v2730 = vadd.f32 0.0, %v2729
    %2731 = vmatprep.mubr.f32.mxu0 0.0
    %2732 = vmatmul.mubr.f32.gmra.mxu0 %v2578
    %v2733 = vpop.f32.mrf.mxu0
    %v2734 = vadd.f32 0.0, %v2733
    %v2735 = vpop.f32.mrf.mxu0
    %v2736 = vadd.f32 0.0, %v2735
    %2737 = vmatprep.mubr.f32.mxu0 0.0
    %2738 = vmatmul.mubr.f32.gmra.mxu0 %v2581
    %v2739 = vpop.f32.mrf.mxu0
    %v2740 = vadd.f32 0.0, %v2739
    %v2741 = vpop.f32.mrf.mxu0
    %v2742 = vadd.f32 0.0, %v2741
    %2743 = vdwg.mxu0
    %2744 = vmatprep.subr.mxu0 0.0
    %2745 = vmatpush1.msra.mxu0 0.0
    %2746 = vmatprep.subr.mxu0 0.0
    %2747 = vmatpush1.msra.mxu0 0.0
    %2748 = vmatprep.subr.mxu0 0.0
    %2749 = vmatpush1.msra.mxu0 0.0
    %2750 = vmatprep.subr.mxu0 0.0
    %2751 = vmatpush1.msra.mxu0 0.0
    %2752 = vmatprep.subr.mxu0 0.0
    %2753 = vmatpush1.msra.mxu0 0.0
    %2754 = vmatprep.subr.mxu0 0.0
    %2755 = vmatpush1.msra.mxu0 0.0
    %2756 = vmatprep.subr.mxu0 0.0
    %2757 = vmatpush1.msra.mxu0 0.0
    %2758 = vmatprep.subr.mxu0 0.0
    %2759 = vmatpush1.msra.mxu0 0.0
    %2760 = vmatprep.subr.mxu0 0.0
    %2761 = vmatpush1.msra.mxu0 0.0
    %2762 = vmatprep.subr.mxu0 0.0
    %2763 = vmatpush1.msra.mxu0 0.0
    %2764 = vmatprep.subr.mxu0 0.0
    %2765 = vmatpush1.msra.mxu0 0.0
    %2766 = vmatprep.subr.mxu0 0.0
    %2767 = vmatpush1.msra.mxu0 0.0
    %2768 = vmatprep.subr.mxu0 %v2518
    %2769 = vmatpush1.msra.mxu0 %v2517
    %2770 = vmatprep.subr.mxu0 %v2514
    %2771 = vmatpush1.msra.mxu0 %v2513
    %2772 = vmatprep.subr.mxu0 %v2510
    %2773 = vmatpush1.msra.mxu0 %v2509
    %2774 = vmatprep.subr.mxu0 %v2506
    %2775 = vmatpush1.msra.mxu0 %v2505
    %2776 = vmatprep.subr.mxu0 0.0
    %2777 = vmatpush2.msra.mxu0 0.0
    %2778 = vmatprep.subr.mxu0 0.0
    %2779 = vmatpush2.msra.mxu0 0.0
    %2780 = vmatprep.subr.mxu0 0.0
    %2781 = vmatpush2.msra.mxu0 0.0
    %2782 = vmatprep.subr.mxu0 0.0
    %2783 = vmatpush2.msra.mxu0 0.0
    %2784 = vmatprep.subr.mxu0 0.0
    %2785 = vmatpush2.msra.mxu0 0.0
    %2786 = vmatprep.subr.mxu0 0.0
    %2787 = vmatpush2.msra.mxu0 0.0
    %2788 = vmatprep.subr.mxu0 0.0
    %2789 = vmatpush2.msra.mxu0 0.0
    %2790 = vmatprep.subr.mxu0 0.0
    %2791 = vmatpush2.msra.mxu0 0.0
    %2792 = vmatprep.subr.mxu0 0.0
    %2793 = vmatpush2.msra.mxu0 0.0
    %2794 = vmatprep.subr.mxu0 0.0
    %2795 = vmatpush2.msra.mxu0 0.0
    %2796 = vmatprep.subr.mxu0 0.0
    %2797 = vmatpush2.msra.mxu0 0.0
    %2798 = vmatprep.subr.mxu0 0.0
    %2799 = vmatpush2.msra.mxu0 0.0
    %2800 = vmatprep.subr.mxu0 0.0
    %2801 = vmatpush2.msra.mxu0 0.0
    %2802 = vmatprep.subr.mxu0 0.0
    %2803 = vmatpush2.msra.mxu0 0.0
    %2804 = vmatprep.subr.mxu0 0.0
    %2805 = vmatpush2.msra.mxu0 0.0
    %2806 = vmatprep.subr.mxu0 0.0
    %2807 = vmatpush2.msra.mxu0 0.0
    %2808 = vmatprep.mubr.f32.mxu0 0.0
    %2809 = vmatmul.mubr.f32.gmra.mxu0 %v2536
    %v2810 = vpop.f32.mrf.mxu0
    %v2811 = vadd.f32 0.0, %v2810
    %v2812 = vpop.f32.mrf.mxu0
    %v2813 = vadd.f32 0.0, %v2812
    %2814 = vmatprep.mubr.f32.mxu0 0.0
    %2815 = vmatmul.mubr.f32.gmra.mxu0 %v2539
    %v2816 = vpop.f32.mrf.mxu0
    %v2817 = vadd.f32 0.0, %v2816
    %v2818 = vpop.f32.mrf.mxu0
    %v2819 = vadd.f32 0.0, %v2818
    %2820 = vmatprep.mubr.f32.mxu0 0.0
    %2821 = vmatmul.mubr.f32.gmra.mxu0 %v2542
    %v2822 = vpop.f32.mrf.mxu0
    %v2823 = vadd.f32 0.0, %v2822
    %v2824 = vpop.f32.mrf.mxu0
    %v2825 = vadd.f32 0.0, %v2824
    %2826 = vmatprep.mubr.f32.mxu0 0.0
    %2827 = vmatmul.mubr.f32.gmra.mxu0 %v2545
    %v2828 = vpop.f32.mrf.mxu0
    %v2829 = vadd.f32 0.0, %v2828
    %v2830 = vpop.f32.mrf.mxu0
    %v2831 = vadd.f32 0.0, %v2830
    %2832 = vmatprep.mubr.f32.mxu0 0.0
    %2833 = vmatmul.mubr.f32.gmra.mxu0 %v2548
    %v2834 = vpop.f32.mrf.mxu0
    %v2835 = vadd.f32 0.0, %v2834
    %v2836 = vpop.f32.mrf.mxu0
    %v2837 = vadd.f32 0.0, %v2836
    %2838 = vmatprep.mubr.f32.mxu0 0.0
    %2839 = vmatmul.mubr.f32.gmra.mxu0 %v2551
    %v2840 = vpop.f32.mrf.mxu0
    %v2841 = vadd.f32 0.0, %v2840
    %v2842 = vpop.f32.mrf.mxu0
    %v2843 = vadd.f32 0.0, %v2842
    %2844 = vmatprep.mubr.f32.mxu0 0.0
    %2845 = vmatmul.mubr.f32.gmra.mxu0 %v2554
    %v2846 = vpop.f32.mrf.mxu0
    %v2847 = vadd.f32 0.0, %v2846
    %v2848 = vpop.f32.mrf.mxu0
    %v2849 = vadd.f32 0.0, %v2848
    %2850 = vmatprep.mubr.f32.mxu0 0.0
    %2851 = vmatmul.mubr.f32.gmra.mxu0 %v2557
    %v2852 = vpop.f32.mrf.mxu0
    %v2853 = vadd.f32 0.0, %v2852
    %v2854 = vpop.f32.mrf.mxu0
    %v2855 = vadd.f32 0.0, %v2854
    %2856 = vmatprep.mubr.f32.mxu0 0.0
    %2857 = vmatmul.mubr.f32.gmra.mxu0 %v2560
    %v2858 = vpop.f32.mrf.mxu0
    %v2859 = vadd.f32 0.0, %v2858
    %v2860 = vpop.f32.mrf.mxu0
    %v2861 = vadd.f32 0.0, %v2860
    %2862 = vmatprep.mubr.f32.mxu0 0.0
    %2863 = vmatmul.mubr.f32.gmra.mxu0 %v2563
    %v2864 = vpop.f32.mrf.mxu0
    %v2865 = vadd.f32 0.0, %v2864
    %v2866 = vpop.f32.mrf.mxu0
    %v2867 = vadd.f32 0.0, %v2866
    %2868 = vmatprep.mubr.f32.mxu0 0.0
    %2869 = vmatmul.mubr.f32.gmra.mxu0 %v2566
    %v2870 = vpop.f32.mrf.mxu0
    %v2871 = vadd.f32 0.0, %v2870
    %v2872 = vpop.f32.mrf.mxu0
    %v2873 = vadd.f32 0.0, %v2872
    %2874 = vmatprep.mubr.f32.mxu0 0.0
    %2875 = vmatmul.mubr.f32.gmra.mxu0 %v2569
    %v2876 = vpop.f32.mrf.mxu0
    %v2877 = vadd.f32 0.0, %v2876
    %v2878 = vpop.f32.mrf.mxu0
    %v2879 = vadd.f32 0.0, %v2878
    %2880 = vmatprep.mubr.f32.mxu0 0.0
    %2881 = vmatmul.mubr.f32.gmra.mxu0 %v2572
    %v2882 = vpop.f32.mrf.mxu0
    %v2883 = vadd.f32 0.0, %v2882
    %v2884 = vpop.f32.mrf.mxu0
    %v2885 = vadd.f32 0.0, %v2884
    %2886 = vmatprep.mubr.f32.mxu0 0.0
    %2887 = vmatmul.mubr.f32.gmra.mxu0 %v2575
    %v2888 = vpop.f32.mrf.mxu0
    %v2889 = vadd.f32 0.0, %v2888
    %v2890 = vpop.f32.mrf.mxu0
    %v2891 = vadd.f32 0.0, %v2890
    %2892 = vmatprep.mubr.f32.mxu0 0.0
    %2893 = vmatmul.mubr.f32.gmra.mxu0 %v2578
    %v2894 = vpop.f32.mrf.mxu0
    %v2895 = vadd.f32 0.0, %v2894
    %v2896 = vpop.f32.mrf.mxu0
    %v2897 = vadd.f32 0.0, %v2896
    %2898 = vmatprep.mubr.f32.mxu0 0.0
    %2899 = vmatmul.mubr.f32.gmra.mxu0 %v2581
    %v2900 = vpop.f32.mrf.mxu0
    %v2901 = vadd.f32 0.0, %v2900
    %v2902 = vpop.f32.mrf.mxu0
    %v2903 = vadd.f32 0.0, %v2902
    %2904 = vdwg.mxu0
    %v2905 = vsel %vm2278, %v2650, %v2674
    %v2906 = vsel %vm2279, %v2652, %v2676
    %v2907 = vsel %vm2280, %v2811, %v2835
    %v2908 = vsel %vm2281, %v2813, %v2837
    %v2909 = vsel %vm2278, %v2656, %v2680
    %v2910 = vsel %vm2279, %v2658, %v2682
    %v2911 = vsel %vm2280, %v2817, %v2841
    %v2912 = vsel %vm2281, %v2819, %v2843
    %v2913 = vsel %vm2278, %v2662, %v2686
    %v2914 = vsel %vm2279, %v2664, %v2688
    %v2915 = vsel %vm2280, %v2823, %v2847
    %v2916 = vsel %vm2281, %v2825, %v2849
    %v2917 = vsel %vm2278, %v2668, %v2692
    %v2918 = vsel %vm2279, %v2670, %v2694
    %v2919 = vsel %vm2280, %v2829, %v2853
    %v2920 = vsel %vm2281, %v2831, %v2855
    %v2921 = vsel %vm2278, %v2698, %v2722
    %v2922 = vsel %vm2279, %v2700, %v2724
    %v2923 = vsel %vm2280, %v2859, %v2883
    %v2924 = vsel %vm2281, %v2861, %v2885
    %v2925 = vsel %vm2278, %v2704, %v2728
    %v2926 = vsel %vm2279, %v2706, %v2730
    %v2927 = vsel %vm2280, %v2865, %v2889
    %v2928 = vsel %vm2281, %v2867, %v2891
    %v2929 = vsel %vm2278, %v2710, %v2734
    %v2930 = vsel %vm2279, %v2712, %v2736
    %v2931 = vsel %vm2280, %v2871, %v2895
    %v2932 = vsel %vm2281, %v2873, %v2897
    %v2933 = vsel %vm2278, %v2716, %v2740
    %v2934 = vsel %vm2279, %v2718, %v2742
    %v2935 = vsel %vm2280, %v2877, %v2901
    %v2936 = vsel %vm2281, %v2879, %v2903
    %v2937 = vsel %vm2483, %v2905, %v2921
    %v2938 = vsel %vm2484, %v2906, %v2922
    %v2939 = vsel %vm2485, %v2907, %v2923
    %v2940 = vsel %vm2486, %v2908, %v2924
    %v2941 = vsel %vm2483, %v2909, %v2925
    %v2942 = vsel %vm2484, %v2910, %v2926
    %v2943 = vsel %vm2485, %v2911, %v2927
    %v2944 = vsel %vm2486, %v2912, %v2928
    %v2945 = vsel %vm2483, %v2913, %v2929
    %v2946 = vsel %vm2484, %v2914, %v2930
    %v2947 = vsel %vm2485, %v2915, %v2931
    %v2948 = vsel %vm2486, %v2916, %v2932
    %v2949 = vsel %vm2483, %v2917, %v2933
    %v2950 = vsel %vm2484, %v2918, %v2934
    %v2951 = vsel %vm2485, %v2919, %v2935
    %v2952 = vsel %vm2486, %v2920, %v2936
    %v2953 = vld [vmem:[%s7] sm:$0xff]
    %v2954 = vld [vmem:[%s7 + $0x8] sm:$0xff]
    %v2955 = vld [vmem:[%s7 + $0x10] sm:$0xff]
    %v2956 = vld [vmem:[%s7 + $0x18] sm:$0xff]
    %2958 = vset.pattern.permute.xlu0 0
    %2959 = vperm.xlu0 %2958, %v2953
    %v2960 = vpop.permute.xlu0 %2959
    %2963 = vset.pattern.permute.xlu0 0
    %2964 = vperm.xlu0 %2963, %v2954
    %v2965 = vpop.permute.xlu0 %2964
    %2968 = vset.pattern.permute.xlu0 0
    %2969 = vperm.xlu0 %2968, %v2955
    %v2970 = vpop.permute.xlu0 %2969
    %2973 = vset.pattern.permute.xlu0 0
    %2974 = vperm.xlu0 %2973, %v2956
    %v2975 = vpop.permute.xlu0 %2974
    %v2977 = vadd.f32 %v2937, %v2960
    %v2978 = vadd.f32 %v2938, %v2960
    %v2979 = vadd.f32 %v2939, %v2960
    %v2980 = vadd.f32 %v2940, %v2960
    %v2981 = vadd.f32 %v2941, %v2965
    %v2982 = vadd.f32 %v2942, %v2965
    %v2983 = vadd.f32 %v2943, %v2965
    %v2984 = vadd.f32 %v2944, %v2965
    %v2985 = vadd.f32 %v2945, %v2970
    %v2986 = vadd.f32 %v2946, %v2970
    %v2987 = vadd.f32 %v2947, %v2970
    %v2988 = vadd.f32 %v2948, %v2970
    %v2989 = vadd.f32 %v2949, %v2975
    %v2990 = vadd.f32 %v2950, %v2975
    %v2991 = vadd.f32 %v2951, %v2975
    %v2992 = vadd.f32 %v2952, %v2975
    %v2993 = vmax.f32 %v2977, 0.0
    %v2994 = vmax.f32 %v2978, 0.0
    %v2995 = vmax.f32 %v2979, 0.0
    %v2996 = vmax.f32 %v2980, 0.0
    %v2997 = vmax.f32 %v2981, 0.0
    %v2998 = vmax.f32 %v2982, 0.0
    %v2999 = vmax.f32 %v2983, 0.0
    %v3000 = vmax.f32 %v2984, 0.0
    %v3001 = vmax.f32 %v2985, 0.0
    %v3002 = vmax.f32 %v2986, 0.0
    %v3003 = vmax.f32 %v2987, 0.0
    %v3004 = vmax.f32 %v2988, 0.0
    %v3005 = vmax.f32 %v2989, 0.0
    %v3006 = vmax.f32 %v2990, 0.0
    %v3007 = vmax.f32 %v2991, 0.0
    %v3008 = vmax.f32 %v2992, 0.0
    %3013 = vrot.lane.b32.xlu0 %v2996, 17
    %v3014 = vpop.permute.xlu0 %3013
    %3015 = vrot.lane.b32.xlu0 %v3000, 17
    %v3016 = vpop.permute.xlu0 %3015
    %3017 = vrot.lane.b32.xlu0 %v3004, 17
    %v3018 = vpop.permute.xlu0 %3017
    %3019 = vrot.lane.b32.xlu0 %v3008, 17
    %v3020 = vpop.permute.xlu0 %3019
    %3037 = vrot.lane.b32.xlu0 %v2993, 17
    %v3038 = vpop.permute.xlu0 %3037
    %3039 = vrot.lane.b32.xlu0 %v2994, 17
    %v3040 = vpop.permute.xlu0 %3039
    %3041 = vrot.lane.b32.xlu0 %v2995, 17
    %v3042 = vpop.permute.xlu0 %3041
    %3043 = vrot.lane.b32.xlu0 %v2997, 17
    %v3044 = vpop.permute.xlu0 %3043
    %3045 = vrot.lane.b32.xlu0 %v2998, 17
    %v3046 = vpop.permute.xlu0 %3045
    %3047 = vrot.lane.b32.xlu0 %v2999, 17
    %v3048 = vpop.permute.xlu0 %3047
    %3049 = vrot.lane.b32.xlu0 %v3001, 17
    %v3050 = vpop.permute.xlu0 %3049
    %3051 = vrot.lane.b32.xlu0 %v3002, 17
    %v3052 = vpop.permute.xlu0 %3051
    %3053 = vrot.lane.b32.xlu0 %v3003, 17
    %v3054 = vpop.permute.xlu0 %3053
    %3055 = vrot.lane.b32.xlu0 %v3005, 17
    %v3056 = vpop.permute.xlu0 %3055
    %3057 = vrot.lane.b32.xlu0 %v3006, 17
    %v3058 = vpop.permute.xlu0 %3057
    %3059 = vrot.lane.b32.xlu0 %v3007, 17
    %v3060 = vpop.permute.xlu0 %3059
    %v3061 = vsel %vm62, %v3038, %v3040
    %v3062 = vsel %vm62, %v3040, %v3042
    %v3063 = vsel %vm62, %v3042, %v3014
    %v3064 = vsel %vm62, %v3044, %v3046
    %v3065 = vsel %vm62, %v3046, %v3048
    %v3066 = vsel %vm62, %v3048, %v3016
    %v3067 = vsel %vm62, %v3050, %v3052
    %v3068 = vsel %vm62, %v3052, %v3054
    %v3069 = vsel %vm62, %v3054, %v3018
    %v3070 = vsel %vm62, %v3056, %v3058
    %v3071 = vsel %vm62, %v3058, %v3060
    %v3072 = vsel %vm62, %v3060, %v3020
    %v3089 = vsel %vm62, %v3014, %v3038
    %v3090 = vsel %vm62, %v3016, %v3044
    %v3091 = vsel %vm62, %v3018, %v3050
    %v3092 = vsel %vm62, %v3020, %v3056
    %v3093 = vsel %vm91, %v3089, 0.0
    %v3094 = vsel %vm92, %v3061, 0.0
    %v3095 = vsel %vm93, %v3062, 0.0
    %v3096 = vsel %vm94, %v3063, 0.0
    %v3097 = vsel %vm91, %v3090, 0.0
    %v3098 = vsel %vm92, %v3064, 0.0
    %v3099 = vsel %vm93, %v3065, 0.0
    %v3100 = vsel %vm94, %v3066, 0.0
    %v3101 = vsel %vm91, %v3091, 0.0
    %v3102 = vsel %vm92, %v3067, 0.0
    %v3103 = vsel %vm93, %v3068, 0.0
    %v3104 = vsel %vm94, %v3069, 0.0
    %v3105 = vsel %vm91, %v3092, 0.0
    %v3106 = vsel %vm92, %v3070, 0.0
    %v3107 = vsel %vm93, %v3071, 0.0
    %v3108 = vsel %vm94, %v3072, 0.0
    %3109 = vst [vmem:[#allocation2] sm:$0xff] %v3093
    %3110 = vst [vmem:[#allocation2 + $0x8] sm:$0xff] %v3094
    %3111 = vst [vmem:[#allocation2 + $0x10] sm:$0xff] %v3095
    %3112 = vst [vmem:[#allocation2 + $0x18] sm:$0xff] %v3096
    %3113 = vst [vmem:[#allocation2 + $0x20] sm:$0xff] %v3097
    %3114 = vst [vmem:[#allocation2 + $0x28] sm:$0xff] %v3098
    %3115 = vst [vmem:[#allocation2 + $0x30] sm:$0xff] %v3099
    %3116 = vst [vmem:[#allocation2 + $0x38] sm:$0xff] %v3100
    %3117 = vst [vmem:[#allocation2 + $0x40] sm:$0xff] %v3101
    %3118 = vst [vmem:[#allocation2 + $0x48] sm:$0xff] %v3102
    %3119 = vst [vmem:[#allocation2 + $0x50] sm:$0xff] %v3103
    %3120 = vst [vmem:[#allocation2 + $0x58] sm:$0xff] %v3104
    %3121 = vst [vmem:[#allocation2 + $0x60] sm:$0xff] %v3105
    %3122 = vst [vmem:[#allocation2 + $0x68] sm:$0xff] %v3106
    %3123 = vst [vmem:[#allocation2 + $0x70] sm:$0xff] %v3107
    %3124 = vst [vmem:[#allocation2 + $0x78] sm:$0xff] %v3108
    %3125 = vrot.lane.b32.xlu0 %v2996, 16
    %v3126 = vpop.permute.xlu0 %3125
    %3127 = vrot.lane.b32.xlu0 %v3000, 16
    %v3128 = vpop.permute.xlu0 %3127
    %3129 = vrot.lane.b32.xlu0 %v3004, 16
    %v3130 = vpop.permute.xlu0 %3129
    %3131 = vrot.lane.b32.xlu0 %v3008, 16
    %v3132 = vpop.permute.xlu0 %3131
    %3137 = vrot.lane.b32.xlu0 %v2993, 16
    %v3138 = vpop.permute.xlu0 %3137
    %3139 = vrot.lane.b32.xlu0 %v2994, 16
    %v3140 = vpop.permute.xlu0 %3139
    %3141 = vrot.lane.b32.xlu0 %v2995, 16
    %v3142 = vpop.permute.xlu0 %3141
    %3143 = vrot.lane.b32.xlu0 %v2997, 16
    %v3144 = vpop.permute.xlu0 %3143
    %3145 = vrot.lane.b32.xlu0 %v2998, 16
    %v3146 = vpop.permute.xlu0 %3145
    %3147 = vrot.lane.b32.xlu0 %v2999, 16
    %v3148 = vpop.permute.xlu0 %3147
    %3149 = vrot.lane.b32.xlu0 %v3001, 16
    %v3150 = vpop.permute.xlu0 %3149
    %3151 = vrot.lane.b32.xlu0 %v3002, 16
    %v3152 = vpop.permute.xlu0 %3151
    %3153 = vrot.lane.b32.xlu0 %v3003, 16
    %v3154 = vpop.permute.xlu0 %3153
    %3155 = vrot.lane.b32.xlu0 %v3005, 16
    %v3156 = vpop.permute.xlu0 %3155
    %3157 = vrot.lane.b32.xlu0 %v3006, 16
    %v3158 = vpop.permute.xlu0 %3157
    %3159 = vrot.lane.b32.xlu0 %v3007, 16
    %v3160 = vpop.permute.xlu0 %3159
    %v3161 = vsel %vm112, %v3138, %v3140
    %v3162 = vsel %vm112, %v3140, %v3142
    %v3163 = vsel %vm112, %v3142, %v3126
    %v3164 = vsel %vm112, %v3144, %v3146
    %v3165 = vsel %vm112, %v3146, %v3148
    %v3166 = vsel %vm112, %v3148, %v3128
    %v3167 = vsel %vm112, %v3150, %v3152
    %v3168 = vsel %vm112, %v3152, %v3154
    %v3169 = vsel %vm112, %v3154, %v3130
    %v3170 = vsel %vm112, %v3156, %v3158
    %v3171 = vsel %vm112, %v3158, %v3160
    %v3172 = vsel %vm112, %v3160, %v3132
    %v3189 = vsel %vm112, %v3126, %v3138
    %v3190 = vsel %vm112, %v3128, %v3144
    %v3191 = vsel %vm112, %v3130, %v3150
    %v3192 = vsel %vm112, %v3132, %v3156
    %v3193 = vsel %vm138, %v3189, 0.0
    %v3194 = vsel %vm139, %v3161, 0.0
    %v3195 = vsel %vm140, %v3162, 0.0
    %v3196 = vsel %vm141, %v3163, 0.0
    %v3197 = vsel %vm138, %v3190, 0.0
    %v3198 = vsel %vm139, %v3164, 0.0
    %v3199 = vsel %vm140, %v3165, 0.0
    %v3200 = vsel %vm141, %v3166, 0.0
    %v3201 = vsel %vm138, %v3191, 0.0
    %v3202 = vsel %vm139, %v3167, 0.0
    %v3203 = vsel %vm140, %v3168, 0.0
    %v3204 = vsel %vm141, %v3169, 0.0
    %v3205 = vsel %vm138, %v3192, 0.0
    %v3206 = vsel %vm139, %v3170, 0.0
    %v3207 = vsel %vm140, %v3171, 0.0
    %v3208 = vsel %vm141, %v3172, 0.0
    %3209 = vst [vmem:[#allocation2 + $0x80] sm:$0xff] %v3193
    %3210 = vst [vmem:[#allocation2 + $0x88] sm:$0xff] %v3194
    %3211 = vst [vmem:[#allocation2 + $0x90] sm:$0xff] %v3195
    %3212 = vst [vmem:[#allocation2 + $0x98] sm:$0xff] %v3196
    %3213 = vst [vmem:[#allocation2 + $0xa0] sm:$0xff] %v3197
    %3214 = vst [vmem:[#allocation2 + $0xa8] sm:$0xff] %v3198
    %3215 = vst [vmem:[#allocation2 + $0xb0] sm:$0xff] %v3199
    %3216 = vst [vmem:[#allocation2 + $0xb8] sm:$0xff] %v3200
    %3217 = vst [vmem:[#allocation2 + $0xc0] sm:$0xff] %v3201
    %3218 = vst [vmem:[#allocation2 + $0xc8] sm:$0xff] %v3202
    %3219 = vst [vmem:[#allocation2 + $0xd0] sm:$0xff] %v3203
    %3220 = vst [vmem:[#allocation2 + $0xd8] sm:$0xff] %v3204
    %3221 = vst [vmem:[#allocation2 + $0xe0] sm:$0xff] %v3205
    %3222 = vst [vmem:[#allocation2 + $0xe8] sm:$0xff] %v3206
    %3223 = vst [vmem:[#allocation2 + $0xf0] sm:$0xff] %v3207
    %3224 = vst [vmem:[#allocation2 + $0xf8] sm:$0xff] %v3208
    %3225 = vrot.lane.b32.xlu0 %v2996, 15
    %v3226 = vpop.permute.xlu0 %3225
    %3227 = vrot.lane.b32.xlu0 %v3000, 15
    %v3228 = vpop.permute.xlu0 %3227
    %3229 = vrot.lane.b32.xlu0 %v3004, 15
    %v3230 = vpop.permute.xlu0 %3229
    %3231 = vrot.lane.b32.xlu0 %v3008, 15
    %v3232 = vpop.permute.xlu0 %3231
    %3237 = vrot.lane.b32.xlu0 %v2993, 15
    %v3238 = vpop.permute.xlu0 %3237
    %3239 = vrot.lane.b32.xlu0 %v2994, 15
    %v3240 = vpop.permute.xlu0 %3239
    %3241 = vrot.lane.b32.xlu0 %v2995, 15
    %v3242 = vpop.permute.xlu0 %3241
    %3243 = vrot.lane.b32.xlu0 %v2997, 15
    %v3244 = vpop.permute.xlu0 %3243
    %3245 = vrot.lane.b32.xlu0 %v2998, 15
    %v3246 = vpop.permute.xlu0 %3245
    %3247 = vrot.lane.b32.xlu0 %v2999, 15
    %v3248 = vpop.permute.xlu0 %3247
    %3249 = vrot.lane.b32.xlu0 %v3001, 15
    %v3250 = vpop.permute.xlu0 %3249
    %3251 = vrot.lane.b32.xlu0 %v3002, 15
    %v3252 = vpop.permute.xlu0 %3251
    %3253 = vrot.lane.b32.xlu0 %v3003, 15
    %v3254 = vpop.permute.xlu0 %3253
    %3255 = vrot.lane.b32.xlu0 %v3005, 15
    %v3256 = vpop.permute.xlu0 %3255
    %3257 = vrot.lane.b32.xlu0 %v3006, 15
    %v3258 = vpop.permute.xlu0 %3257
    %3259 = vrot.lane.b32.xlu0 %v3007, 15
    %v3260 = vpop.permute.xlu0 %3259
    %v3261 = vsel %vm159, %v3238, %v3240
    %v3262 = vsel %vm159, %v3240, %v3242
    %v3263 = vsel %vm159, %v3242, %v3226
    %v3264 = vsel %vm159, %v3244, %v3246
    %v3265 = vsel %vm159, %v3246, %v3248
    %v3266 = vsel %vm159, %v3248, %v3228
    %v3267 = vsel %vm159, %v3250, %v3252
    %v3268 = vsel %vm159, %v3252, %v3254
    %v3269 = vsel %vm159, %v3254, %v3230
    %v3270 = vsel %vm159, %v3256, %v3258
    %v3271 = vsel %vm159, %v3258, %v3260
    %v3272 = vsel %vm159, %v3260, %v3232
    %v3289 = vsel %vm159, %v3226, %v3238
    %v3290 = vsel %vm159, %v3228, %v3244
    %v3291 = vsel %vm159, %v3230, %v3250
    %v3292 = vsel %vm159, %v3232, %v3256
    %v3293 = vsel %vm187, %v3289, 0.0
    %v3294 = vsel %vm188, %v3261, 0.0
    %v3295 = vsel %vm189, %v3262, 0.0
    %v3296 = vsel %vm190, %v3263, 0.0
    %v3297 = vsel %vm187, %v3290, 0.0
    %v3298 = vsel %vm188, %v3264, 0.0
    %v3299 = vsel %vm189, %v3265, 0.0
    %v3300 = vsel %vm190, %v3266, 0.0
    %v3301 = vsel %vm187, %v3291, 0.0
    %v3302 = vsel %vm188, %v3267, 0.0
    %v3303 = vsel %vm189, %v3268, 0.0
    %v3304 = vsel %vm190, %v3269, 0.0
    %v3305 = vsel %vm187, %v3292, 0.0
    %v3306 = vsel %vm188, %v3270, 0.0
    %v3307 = vsel %vm189, %v3271, 0.0
    %v3308 = vsel %vm190, %v3272, 0.0
    %3309 = vst [vmem:[#allocation2 + $0x100] sm:$0xff] %v3293
    %3310 = vst [vmem:[#allocation2 + $0x108] sm:$0xff] %v3294
    %3311 = vst [vmem:[#allocation2 + $0x110] sm:$0xff] %v3295
    %3312 = vst [vmem:[#allocation2 + $0x118] sm:$0xff] %v3296
    %3313 = vst [vmem:[#allocation2 + $0x120] sm:$0xff] %v3297
    %3314 = vst [vmem:[#allocation2 + $0x128] sm:$0xff] %v3298
    %3315 = vst [vmem:[#allocation2 + $0x130] sm:$0xff] %v3299
    %3316 = vst [vmem:[#allocation2 + $0x138] sm:$0xff] %v3300
    %3317 = vst [vmem:[#allocation2 + $0x140] sm:$0xff] %v3301
    %3318 = vst [vmem:[#allocation2 + $0x148] sm:$0xff] %v3302
    %3319 = vst [vmem:[#allocation2 + $0x150] sm:$0xff] %v3303
    %3320 = vst [vmem:[#allocation2 + $0x158] sm:$0xff] %v3304
    %3321 = vst [vmem:[#allocation2 + $0x160] sm:$0xff] %v3305
    %3322 = vst [vmem:[#allocation2 + $0x168] sm:$0xff] %v3306
    %3323 = vst [vmem:[#allocation2 + $0x170] sm:$0xff] %v3307
    %3324 = vst [vmem:[#allocation2 + $0x178] sm:$0xff] %v3308
    %3325 = vrot.lane.b32.xlu0 %v2996, 1
    %v3326 = vpop.permute.xlu0 %3325
    %3327 = vrot.lane.b32.xlu0 %v3000, 1
    %v3328 = vpop.permute.xlu0 %3327
    %3329 = vrot.lane.b32.xlu0 %v3004, 1
    %v3330 = vpop.permute.xlu0 %3329
    %3331 = vrot.lane.b32.xlu0 %v3008, 1
    %v3332 = vpop.permute.xlu0 %3331
    %3337 = vrot.lane.b32.xlu0 %v2993, 1
    %v3338 = vpop.permute.xlu0 %3337
    %3339 = vrot.lane.b32.xlu0 %v2994, 1
    %v3340 = vpop.permute.xlu0 %3339
    %3341 = vrot.lane.b32.xlu0 %v2995, 1
    %v3342 = vpop.permute.xlu0 %3341
    %3343 = vrot.lane.b32.xlu0 %v2997, 1
    %v3344 = vpop.permute.xlu0 %3343
    %3345 = vrot.lane.b32.xlu0 %v2998, 1
    %v3346 = vpop.permute.xlu0 %3345
    %3347 = vrot.lane.b32.xlu0 %v2999, 1
    %v3348 = vpop.permute.xlu0 %3347
    %3349 = vrot.lane.b32.xlu0 %v3001, 1
    %v3350 = vpop.permute.xlu0 %3349
    %3351 = vrot.lane.b32.xlu0 %v3002, 1
    %v3352 = vpop.permute.xlu0 %3351
    %3353 = vrot.lane.b32.xlu0 %v3003, 1
    %v3354 = vpop.permute.xlu0 %3353
    %3355 = vrot.lane.b32.xlu0 %v3005, 1
    %v3356 = vpop.permute.xlu0 %3355
    %3357 = vrot.lane.b32.xlu0 %v3006, 1
    %v3358 = vpop.permute.xlu0 %3357
    %3359 = vrot.lane.b32.xlu0 %v3007, 1
    %v3360 = vpop.permute.xlu0 %3359
    %v3361 = vsel %vm208, %v3338, %v3340
    %v3362 = vsel %vm208, %v3340, %v3342
    %v3363 = vsel %vm208, %v3342, %v3326
    %v3364 = vsel %vm208, %v3344, %v3346
    %v3365 = vsel %vm208, %v3346, %v3348
    %v3366 = vsel %vm208, %v3348, %v3328
    %v3367 = vsel %vm208, %v3350, %v3352
    %v3368 = vsel %vm208, %v3352, %v3354
    %v3369 = vsel %vm208, %v3354, %v3330
    %v3370 = vsel %vm208, %v3356, %v3358
    %v3371 = vsel %vm208, %v3358, %v3360
    %v3372 = vsel %vm208, %v3360, %v3332
    %v3389 = vsel %vm208, %v3326, %v3338
    %v3390 = vsel %vm208, %v3328, %v3344
    %v3391 = vsel %vm208, %v3330, %v3350
    %v3392 = vsel %vm208, %v3332, %v3356
    %v3393 = vsel %vm234, %v3389, 0.0
    %v3394 = vsel %vm235, %v3361, 0.0
    %v3395 = vsel %vm236, %v3362, 0.0
    %v3396 = vsel %vm237, %v3363, 0.0
    %v3397 = vsel %vm234, %v3390, 0.0
    %v3398 = vsel %vm235, %v3364, 0.0
    %v3399 = vsel %vm236, %v3365, 0.0
    %v3400 = vsel %vm237, %v3366, 0.0
    %v3401 = vsel %vm234, %v3391, 0.0
    %v3402 = vsel %vm235, %v3367, 0.0
    %v3403 = vsel %vm236, %v3368, 0.0
    %v3404 = vsel %vm237, %v3369, 0.0
    %v3405 = vsel %vm234, %v3392, 0.0
    %v3406 = vsel %vm235, %v3370, 0.0
    %v3407 = vsel %vm236, %v3371, 0.0
    %v3408 = vsel %vm237, %v3372, 0.0
    %3409 = vst [vmem:[#allocation2 + $0x180] sm:$0xff] %v3393
    %3410 = vst [vmem:[#allocation2 + $0x188] sm:$0xff] %v3394
    %3411 = vst [vmem:[#allocation2 + $0x190] sm:$0xff] %v3395
    %3412 = vst [vmem:[#allocation2 + $0x198] sm:$0xff] %v3396
    %3413 = vst [vmem:[#allocation2 + $0x1a0] sm:$0xff] %v3397
    %3414 = vst [vmem:[#allocation2 + $0x1a8] sm:$0xff] %v3398
    %3415 = vst [vmem:[#allocation2 + $0x1b0] sm:$0xff] %v3399
    %3416 = vst [vmem:[#allocation2 + $0x1b8] sm:$0xff] %v3400
    %3417 = vst [vmem:[#allocation2 + $0x1c0] sm:$0xff] %v3401
    %3418 = vst [vmem:[#allocation2 + $0x1c8] sm:$0xff] %v3402
    %3419 = vst [vmem:[#allocation2 + $0x1d0] sm:$0xff] %v3403
    %3420 = vst [vmem:[#allocation2 + $0x1d8] sm:$0xff] %v3404
    %3421 = vst [vmem:[#allocation2 + $0x1e0] sm:$0xff] %v3405
    %3422 = vst [vmem:[#allocation2 + $0x1e8] sm:$0xff] %v3406
    %3423 = vst [vmem:[#allocation2 + $0x1f0] sm:$0xff] %v3407
    %3424 = vst [vmem:[#allocation2 + $0x1f8] sm:$0xff] %v3408
    %3425 = vst [vmem:[#allocation2 + $0x200] sm:$0xff] %v2993
    %3426 = vst [vmem:[#allocation2 + $0x208] sm:$0xff] %v2994
    %3427 = vst [vmem:[#allocation2 + $0x210] sm:$0xff] %v2995
    %3428 = vst [vmem:[#allocation2 + $0x218] sm:$0xff] %v2996
    %3429 = vst [vmem:[#allocation2 + $0x220] sm:$0xff] %v2997
    %3430 = vst [vmem:[#allocation2 + $0x228] sm:$0xff] %v2998
    %3431 = vst [vmem:[#allocation2 + $0x230] sm:$0xff] %v2999
    %3432 = vst [vmem:[#allocation2 + $0x238] sm:$0xff] %v3000
    %3433 = vst [vmem:[#allocation2 + $0x240] sm:$0xff] %v3001
    %3434 = vst [vmem:[#allocation2 + $0x248] sm:$0xff] %v3002
    %3435 = vst [vmem:[#allocation2 + $0x250] sm:$0xff] %v3003
    %3436 = vst [vmem:[#allocation2 + $0x258] sm:$0xff] %v3004
    %3437 = vst [vmem:[#allocation2 + $0x260] sm:$0xff] %v3005
    %3438 = vst [vmem:[#allocation2 + $0x268] sm:$0xff] %v3006
    %3439 = vst [vmem:[#allocation2 + $0x270] sm:$0xff] %v3007
    %3440 = vst [vmem:[#allocation2 + $0x278] sm:$0xff] %v3008
    %3441 = vrot.lane.b32.xlu0 %v2993, 127
    %v3442 = vpop.permute.xlu0 %3441
    %3443 = vrot.lane.b32.xlu0 %v2994, 127
    %v3444 = vpop.permute.xlu0 %3443
    %3445 = vrot.lane.b32.xlu0 %v2995, 127
    %v3446 = vpop.permute.xlu0 %3445
    %3447 = vrot.lane.b32.xlu0 %v2996, 127
    %v3448 = vpop.permute.xlu0 %3447
    %3449 = vrot.lane.b32.xlu0 %v2997, 127
    %v3450 = vpop.permute.xlu0 %3449
    %3451 = vrot.lane.b32.xlu0 %v2998, 127
    %v3452 = vpop.permute.xlu0 %3451
    %3453 = vrot.lane.b32.xlu0 %v2999, 127
    %v3454 = vpop.permute.xlu0 %3453
    %3455 = vrot.lane.b32.xlu0 %v3000, 127
    %v3456 = vpop.permute.xlu0 %3455
    %3457 = vrot.lane.b32.xlu0 %v3001, 127
    %v3458 = vpop.permute.xlu0 %3457
    %3459 = vrot.lane.b32.xlu0 %v3002, 127
    %v3460 = vpop.permute.xlu0 %3459
    %3461 = vrot.lane.b32.xlu0 %v3003, 127
    %v3462 = vpop.permute.xlu0 %3461
    %3463 = vrot.lane.b32.xlu0 %v3004, 127
    %v3464 = vpop.permute.xlu0 %3463
    %3465 = vrot.lane.b32.xlu0 %v3005, 127
    %v3466 = vpop.permute.xlu0 %3465
    %3467 = vrot.lane.b32.xlu0 %v3006, 127
    %v3468 = vpop.permute.xlu0 %3467
    %3469 = vrot.lane.b32.xlu0 %v3007, 127
    %v3470 = vpop.permute.xlu0 %3469
    %3471 = vrot.lane.b32.xlu0 %v3008, 127
    %v3472 = vpop.permute.xlu0 %3471
    %v3473 = vsel %vm258, %v3442, %v3444
    %v3474 = vsel %vm258, %v3444, %v3446
    %v3475 = vsel %vm258, %v3446, %v3448
    %v3476 = vsel %vm258, %v3450, %v3452
    %v3477 = vsel %vm258, %v3452, %v3454
    %v3478 = vsel %vm258, %v3454, %v3456
    %v3479 = vsel %vm258, %v3458, %v3460
    %v3480 = vsel %vm258, %v3460, %v3462
    %v3481 = vsel %vm258, %v3462, %v3464
    %v3482 = vsel %vm258, %v3466, %v3468
    %v3483 = vsel %vm258, %v3468, %v3470
    %v3484 = vsel %vm258, %v3470, %v3472
    %v3505 = vsel %vm258, %v3448, %v3442
    %v3506 = vsel %vm258, %v3456, %v3450
    %v3507 = vsel %vm258, %v3464, %v3458
    %v3508 = vsel %vm258, %v3472, %v3466
    %v3509 = vsel %vm285, %v3473, 0.0
    %v3510 = vsel %vm286, %v3474, 0.0
    %v3511 = vsel %vm287, %v3475, 0.0
    %v3512 = vsel %vm288, %v3505, 0.0
    %v3513 = vsel %vm285, %v3476, 0.0
    %v3514 = vsel %vm286, %v3477, 0.0
    %v3515 = vsel %vm287, %v3478, 0.0
    %v3516 = vsel %vm288, %v3506, 0.0
    %v3517 = vsel %vm285, %v3479, 0.0
    %v3518 = vsel %vm286, %v3480, 0.0
    %v3519 = vsel %vm287, %v3481, 0.0
    %v3520 = vsel %vm288, %v3507, 0.0
    %v3521 = vsel %vm285, %v3482, 0.0
    %v3522 = vsel %vm286, %v3483, 0.0
    %v3523 = vsel %vm287, %v3484, 0.0
    %v3524 = vsel %vm288, %v3508, 0.0
    %3525 = vst [vmem:[#allocation2 + $0x280] sm:$0xff] %v3509
    %3526 = vst [vmem:[#allocation2 + $0x288] sm:$0xff] %v3510
    %3527 = vst [vmem:[#allocation2 + $0x290] sm:$0xff] %v3511
    %3528 = vst [vmem:[#allocation2 + $0x298] sm:$0xff] %v3512
    %3529 = vst [vmem:[#allocation2 + $0x2a0] sm:$0xff] %v3513
    %3530 = vst [vmem:[#allocation2 + $0x2a8] sm:$0xff] %v3514
    %3531 = vst [vmem:[#allocation2 + $0x2b0] sm:$0xff] %v3515
    %3532 = vst [vmem:[#allocation2 + $0x2b8] sm:$0xff] %v3516
    %3533 = vst [vmem:[#allocation2 + $0x2c0] sm:$0xff] %v3517
    %3534 = vst [vmem:[#allocation2 + $0x2c8] sm:$0xff] %v3518
    %3535 = vst [vmem:[#allocation2 + $0x2d0] sm:$0xff] %v3519
    %3536 = vst [vmem:[#allocation2 + $0x2d8] sm:$0xff] %v3520
    %3537 = vst [vmem:[#allocation2 + $0x2e0] sm:$0xff] %v3521
    %3538 = vst [vmem:[#allocation2 + $0x2e8] sm:$0xff] %v3522
    %3539 = vst [vmem:[#allocation2 + $0x2f0] sm:$0xff] %v3523
    %3540 = vst [vmem:[#allocation2 + $0x2f8] sm:$0xff] %v3524
    %3541 = vrot.lane.b32.xlu0 %v2993, 113
    %v3542 = vpop.permute.xlu0 %3541
    %3543 = vrot.lane.b32.xlu0 %v2994, 113
    %v3544 = vpop.permute.xlu0 %3543
    %3545 = vrot.lane.b32.xlu0 %v2995, 113
    %v3546 = vpop.permute.xlu0 %3545
    %3547 = vrot.lane.b32.xlu0 %v2996, 113
    %v3548 = vpop.permute.xlu0 %3547
    %3549 = vrot.lane.b32.xlu0 %v2997, 113
    %v3550 = vpop.permute.xlu0 %3549
    %3551 = vrot.lane.b32.xlu0 %v2998, 113
    %v3552 = vpop.permute.xlu0 %3551
    %3553 = vrot.lane.b32.xlu0 %v2999, 113
    %v3554 = vpop.permute.xlu0 %3553
    %3555 = vrot.lane.b32.xlu0 %v3000, 113
    %v3556 = vpop.permute.xlu0 %3555
    %3557 = vrot.lane.b32.xlu0 %v3001, 113
    %v3558 = vpop.permute.xlu0 %3557
    %3559 = vrot.lane.b32.xlu0 %v3002, 113
    %v3560 = vpop.permute.xlu0 %3559
    %3561 = vrot.lane.b32.xlu0 %v3003, 113
    %v3562 = vpop.permute.xlu0 %3561
    %3563 = vrot.lane.b32.xlu0 %v3004, 113
    %v3564 = vpop.permute.xlu0 %3563
    %3565 = vrot.lane.b32.xlu0 %v3005, 113
    %v3566 = vpop.permute.xlu0 %3565
    %3567 = vrot.lane.b32.xlu0 %v3006, 113
    %v3568 = vpop.permute.xlu0 %3567
    %3569 = vrot.lane.b32.xlu0 %v3007, 113
    %v3570 = vpop.permute.xlu0 %3569
    %3571 = vrot.lane.b32.xlu0 %v3008, 113
    %v3572 = vpop.permute.xlu0 %3571
    %v3573 = vsel %vm305, %v3542, %v3544
    %v3574 = vsel %vm305, %v3544, %v3546
    %v3575 = vsel %vm305, %v3546, %v3548
    %v3576 = vsel %vm305, %v3550, %v3552
    %v3577 = vsel %vm305, %v3552, %v3554
    %v3578 = vsel %vm305, %v3554, %v3556
    %v3579 = vsel %vm305, %v3558, %v3560
    %v3580 = vsel %vm305, %v3560, %v3562
    %v3581 = vsel %vm305, %v3562, %v3564
    %v3582 = vsel %vm305, %v3566, %v3568
    %v3583 = vsel %vm305, %v3568, %v3570
    %v3584 = vsel %vm305, %v3570, %v3572
    %v3605 = vsel %vm305, %v3548, %v3542
    %v3606 = vsel %vm305, %v3556, %v3550
    %v3607 = vsel %vm305, %v3564, %v3558
    %v3608 = vsel %vm305, %v3572, %v3566
    %v3609 = vsel %vm334, %v3573, 0.0
    %v3610 = vsel %vm335, %v3574, 0.0
    %v3611 = vsel %vm336, %v3575, 0.0
    %v3612 = vsel %vm337, %v3605, 0.0
    %v3613 = vsel %vm334, %v3576, 0.0
    %v3614 = vsel %vm335, %v3577, 0.0
    %v3615 = vsel %vm336, %v3578, 0.0
    %v3616 = vsel %vm337, %v3606, 0.0
    %v3617 = vsel %vm334, %v3579, 0.0
    %v3618 = vsel %vm335, %v3580, 0.0
    %v3619 = vsel %vm336, %v3581, 0.0
    %v3620 = vsel %vm337, %v3607, 0.0
    %v3621 = vsel %vm334, %v3582, 0.0
    %v3622 = vsel %vm335, %v3583, 0.0
    %v3623 = vsel %vm336, %v3584, 0.0
    %v3624 = vsel %vm337, %v3608, 0.0
    %3625 = vst [vmem:[#allocation2 + $0x300] sm:$0xff] %v3609
    %3626 = vst [vmem:[#allocation2 + $0x308] sm:$0xff] %v3610
    %3627 = vst [vmem:[#allocation2 + $0x310] sm:$0xff] %v3611
    %3628 = vst [vmem:[#allocation2 + $0x318] sm:$0xff] %v3612
    %3629 = vst [vmem:[#allocation2 + $0x320] sm:$0xff] %v3613
    %3630 = vst [vmem:[#allocation2 + $0x328] sm:$0xff] %v3614
    %3631 = vst [vmem:[#allocation2 + $0x330] sm:$0xff] %v3615
    %3632 = vst [vmem:[#allocation2 + $0x338] sm:$0xff] %v3616
    %3633 = vst [vmem:[#allocation2 + $0x340] sm:$0xff] %v3617
    %3634 = vst [vmem:[#allocation2 + $0x348] sm:$0xff] %v3618
    %3635 = vst [vmem:[#allocation2 + $0x350] sm:$0xff] %v3619
    %3636 = vst [vmem:[#allocation2 + $0x358] sm:$0xff] %v3620
    %3637 = vst [vmem:[#allocation2 + $0x360] sm:$0xff] %v3621
    %3638 = vst [vmem:[#allocation2 + $0x368] sm:$0xff] %v3622
    %3639 = vst [vmem:[#allocation2 + $0x370] sm:$0xff] %v3623
    %3640 = vst [vmem:[#allocation2 + $0x378] sm:$0xff] %v3624
    %3641 = vrot.lane.b32.xlu0 %v2993, 112
    %v3642 = vpop.permute.xlu0 %3641
    %3643 = vrot.lane.b32.xlu0 %v2994, 112
    %v3644 = vpop.permute.xlu0 %3643
    %3645 = vrot.lane.b32.xlu0 %v2995, 112
    %v3646 = vpop.permute.xlu0 %3645
    %3647 = vrot.lane.b32.xlu0 %v2996, 112
    %v3648 = vpop.permute.xlu0 %3647
    %3649 = vrot.lane.b32.xlu0 %v2997, 112
    %v3650 = vpop.permute.xlu0 %3649
    %3651 = vrot.lane.b32.xlu0 %v2998, 112
    %v3652 = vpop.permute.xlu0 %3651
    %3653 = vrot.lane.b32.xlu0 %v2999, 112
    %v3654 = vpop.permute.xlu0 %3653
    %3655 = vrot.lane.b32.xlu0 %v3000, 112
    %v3656 = vpop.permute.xlu0 %3655
    %3657 = vrot.lane.b32.xlu0 %v3001, 112
    %v3658 = vpop.permute.xlu0 %3657
    %3659 = vrot.lane.b32.xlu0 %v3002, 112
    %v3660 = vpop.permute.xlu0 %3659
    %3661 = vrot.lane.b32.xlu0 %v3003, 112
    %v3662 = vpop.permute.xlu0 %3661
    %3663 = vrot.lane.b32.xlu0 %v3004, 112
    %v3664 = vpop.permute.xlu0 %3663
    %3665 = vrot.lane.b32.xlu0 %v3005, 112
    %v3666 = vpop.permute.xlu0 %3665
    %3667 = vrot.lane.b32.xlu0 %v3006, 112
    %v3668 = vpop.permute.xlu0 %3667
    %3669 = vrot.lane.b32.xlu0 %v3007, 112
    %v3670 = vpop.permute.xlu0 %3669
    %3671 = vrot.lane.b32.xlu0 %v3008, 112
    %v3672 = vpop.permute.xlu0 %3671
    %v3673 = vsel %vm354, %v3642, %v3644
    %v3674 = vsel %vm354, %v3644, %v3646
    %v3675 = vsel %vm354, %v3646, %v3648
    %v3676 = vsel %vm354, %v3650, %v3652
    %v3677 = vsel %vm354, %v3652, %v3654
    %v3678 = vsel %vm354, %v3654, %v3656
    %v3679 = vsel %vm354, %v3658, %v3660
    %v3680 = vsel %vm354, %v3660, %v3662
    %v3681 = vsel %vm354, %v3662, %v3664
    %v3682 = vsel %vm354, %v3666, %v3668
    %v3683 = vsel %vm354, %v3668, %v3670
    %v3684 = vsel %vm354, %v3670, %v3672
    %v3705 = vsel %vm354, %v3648, %v3642
    %v3706 = vsel %vm354, %v3656, %v3650
    %v3707 = vsel %vm354, %v3664, %v3658
    %v3708 = vsel %vm354, %v3672, %v3666
    %v3709 = vsel %vm381, %v3673, 0.0
    %v3710 = vsel %vm382, %v3674, 0.0
    %v3711 = vsel %vm383, %v3675, 0.0
    %v3712 = vsel %vm384, %v3705, 0.0
    %v3713 = vsel %vm381, %v3676, 0.0
    %v3714 = vsel %vm382, %v3677, 0.0
    %v3715 = vsel %vm383, %v3678, 0.0
    %v3716 = vsel %vm384, %v3706, 0.0
    %v3717 = vsel %vm381, %v3679, 0.0
    %v3718 = vsel %vm382, %v3680, 0.0
    %v3719 = vsel %vm383, %v3681, 0.0
    %v3720 = vsel %vm384, %v3707, 0.0
    %v3721 = vsel %vm381, %v3682, 0.0
    %v3722 = vsel %vm382, %v3683, 0.0
    %v3723 = vsel %vm383, %v3684, 0.0
    %v3724 = vsel %vm384, %v3708, 0.0
    %3725 = vst [vmem:[#allocation2 + $0x380] sm:$0xff] %v3709
    %3726 = vst [vmem:[#allocation2 + $0x388] sm:$0xff] %v3710
    %3727 = vst [vmem:[#allocation2 + $0x390] sm:$0xff] %v3711
    %3728 = vst [vmem:[#allocation2 + $0x398] sm:$0xff] %v3712
    %3729 = vst [vmem:[#allocation2 + $0x3a0] sm:$0xff] %v3713
    %3730 = vst [vmem:[#allocation2 + $0x3a8] sm:$0xff] %v3714
    %3731 = vst [vmem:[#allocation2 + $0x3b0] sm:$0xff] %v3715
    %3732 = vst [vmem:[#allocation2 + $0x3b8] sm:$0xff] %v3716
    %3733 = vst [vmem:[#allocation2 + $0x3c0] sm:$0xff] %v3717
    %3734 = vst [vmem:[#allocation2 + $0x3c8] sm:$0xff] %v3718
    %3735 = vst [vmem:[#allocation2 + $0x3d0] sm:$0xff] %v3719
    %3736 = vst [vmem:[#allocation2 + $0x3d8] sm:$0xff] %v3720
    %3737 = vst [vmem:[#allocation2 + $0x3e0] sm:$0xff] %v3721
    %3738 = vst [vmem:[#allocation2 + $0x3e8] sm:$0xff] %v3722
    %3739 = vst [vmem:[#allocation2 + $0x3f0] sm:$0xff] %v3723
    %3740 = vst [vmem:[#allocation2 + $0x3f8] sm:$0xff] %v3724
    %3741 = vrot.lane.b32.xlu0 %v2993, 111
    %v3742 = vpop.permute.xlu0 %3741
    %3743 = vrot.lane.b32.xlu0 %v2994, 111
    %v3744 = vpop.permute.xlu0 %3743
    %3745 = vrot.lane.b32.xlu0 %v2995, 111
    %v3746 = vpop.permute.xlu0 %3745
    %3747 = vrot.lane.b32.xlu0 %v2996, 111
    %v3748 = vpop.permute.xlu0 %3747
    %3749 = vrot.lane.b32.xlu0 %v2997, 111
    %v3750 = vpop.permute.xlu0 %3749
    %3751 = vrot.lane.b32.xlu0 %v2998, 111
    %v3752 = vpop.permute.xlu0 %3751
    %3753 = vrot.lane.b32.xlu0 %v2999, 111
    %v3754 = vpop.permute.xlu0 %3753
    %3755 = vrot.lane.b32.xlu0 %v3000, 111
    %v3756 = vpop.permute.xlu0 %3755
    %3757 = vrot.lane.b32.xlu0 %v3001, 111
    %v3758 = vpop.permute.xlu0 %3757
    %3759 = vrot.lane.b32.xlu0 %v3002, 111
    %v3760 = vpop.permute.xlu0 %3759
    %3761 = vrot.lane.b32.xlu0 %v3003, 111
    %v3762 = vpop.permute.xlu0 %3761
    %3763 = vrot.lane.b32.xlu0 %v3004, 111
    %v3764 = vpop.permute.xlu0 %3763
    %3765 = vrot.lane.b32.xlu0 %v3005, 111
    %v3766 = vpop.permute.xlu0 %3765
    %3767 = vrot.lane.b32.xlu0 %v3006, 111
    %v3768 = vpop.permute.xlu0 %3767
    %3769 = vrot.lane.b32.xlu0 %v3007, 111
    %v3770 = vpop.permute.xlu0 %3769
    %3771 = vrot.lane.b32.xlu0 %v3008, 111
    %v3772 = vpop.permute.xlu0 %3771
    %v3773 = vsel %vm401, %v3742, %v3744
    %v3774 = vsel %vm401, %v3744, %v3746
    %v3775 = vsel %vm401, %v3746, %v3748
    %v3776 = vsel %vm401, %v3750, %v3752
    %v3777 = vsel %vm401, %v3752, %v3754
    %v3778 = vsel %vm401, %v3754, %v3756
    %v3779 = vsel %vm401, %v3758, %v3760
    %v3780 = vsel %vm401, %v3760, %v3762
    %v3781 = vsel %vm401, %v3762, %v3764
    %v3782 = vsel %vm401, %v3766, %v3768
    %v3783 = vsel %vm401, %v3768, %v3770
    %v3784 = vsel %vm401, %v3770, %v3772
    %v3805 = vsel %vm401, %v3748, %v3742
    %v3806 = vsel %vm401, %v3756, %v3750
    %v3807 = vsel %vm401, %v3764, %v3758
    %v3808 = vsel %vm401, %v3772, %v3766
    %v3809 = vsel %vm429, %v3773, 0.0
    %v3810 = vsel %vm430, %v3774, 0.0
    %v3811 = vsel %vm431, %v3775, 0.0
    %v3812 = vsel %vm432, %v3805, 0.0
    %v3813 = vsel %vm429, %v3776, 0.0
    %v3814 = vsel %vm430, %v3777, 0.0
    %v3815 = vsel %vm431, %v3778, 0.0
    %v3816 = vsel %vm432, %v3806, 0.0
    %v3817 = vsel %vm429, %v3779, 0.0
    %v3818 = vsel %vm430, %v3780, 0.0
    %v3819 = vsel %vm431, %v3781, 0.0
    %v3820 = vsel %vm432, %v3807, 0.0
    %v3821 = vsel %vm429, %v3782, 0.0
    %v3822 = vsel %vm430, %v3783, 0.0
    %v3823 = vsel %vm431, %v3784, 0.0
    %v3824 = vsel %vm432, %v3808, 0.0
    %3825 = vst [vmem:[#allocation2 + $0x400] sm:$0xff] %v3809
    %3826 = vst [vmem:[#allocation2 + $0x408] sm:$0xff] %v3810
    %3827 = vst [vmem:[#allocation2 + $0x410] sm:$0xff] %v3811
    %3828 = vst [vmem:[#allocation2 + $0x418] sm:$0xff] %v3812
    %3829 = vst [vmem:[#allocation2 + $0x420] sm:$0xff] %v3813
    %3830 = vst [vmem:[#allocation2 + $0x428] sm:$0xff] %v3814
    %3831 = vst [vmem:[#allocation2 + $0x430] sm:$0xff] %v3815
    %3832 = vst [vmem:[#allocation2 + $0x438] sm:$0xff] %v3816
    %3833 = vst [vmem:[#allocation2 + $0x440] sm:$0xff] %v3817
    %3834 = vst [vmem:[#allocation2 + $0x448] sm:$0xff] %v3818
    %3835 = vst [vmem:[#allocation2 + $0x450] sm:$0xff] %v3819
    %3836 = vst [vmem:[#allocation2 + $0x458] sm:$0xff] %v3820
    %3837 = vst [vmem:[#allocation2 + $0x460] sm:$0xff] %v3821
    %3838 = vst [vmem:[#allocation2 + $0x468] sm:$0xff] %v3822
    %3839 = vst [vmem:[#allocation2 + $0x470] sm:$0xff] %v3823
    %3840 = vst [vmem:[#allocation2 + $0x478] sm:$0xff] %v3824
    %v3841 = vld [vmem:[#allocation2] sm:$0xff]
    %v3842 = vld [vmem:[#allocation2 + $0x8] sm:$0xff]
    %v3843 = vld [vmem:[#allocation2 + $0x10] sm:$0xff]
    %v3844 = vld [vmem:[#allocation2 + $0x18] sm:$0xff]
    %v3845 = vld [vmem:[#allocation2 + $0x20] sm:$0xff]
    %v3846 = vld [vmem:[#allocation2 + $0x28] sm:$0xff]
    %v3847 = vld [vmem:[#allocation2 + $0x30] sm:$0xff]
    %v3848 = vld [vmem:[#allocation2 + $0x38] sm:$0xff]
    %v3849 = vld [vmem:[#allocation2 + $0x40] sm:$0xff]
    %v3850 = vld [vmem:[#allocation2 + $0x48] sm:$0xff]
    %v3851 = vld [vmem:[#allocation2 + $0x50] sm:$0xff]
    %v3852 = vld [vmem:[#allocation2 + $0x58] sm:$0xff]
    %v3853 = vld [vmem:[#allocation2 + $0x60] sm:$0xff]
    %v3854 = vld [vmem:[#allocation2 + $0x68] sm:$0xff]
    %v3855 = vld [vmem:[#allocation2 + $0x70] sm:$0xff]
    %v3856 = vld [vmem:[#allocation2 + $0x78] sm:$0xff]
    %v3857 = vld [vmem:[#allocation2 + $0x80] sm:$0xff]
    %v3858 = vld [vmem:[#allocation2 + $0x88] sm:$0xff]
    %v3859 = vld [vmem:[#allocation2 + $0x90] sm:$0xff]
    %v3860 = vld [vmem:[#allocation2 + $0x98] sm:$0xff]
    %v3861 = vld [vmem:[#allocation2 + $0xa0] sm:$0xff]
    %v3862 = vld [vmem:[#allocation2 + $0xa8] sm:$0xff]
    %v3863 = vld [vmem:[#allocation2 + $0xb0] sm:$0xff]
    %v3864 = vld [vmem:[#allocation2 + $0xb8] sm:$0xff]
    %v3865 = vld [vmem:[#allocation2 + $0xc0] sm:$0xff]
    %v3866 = vld [vmem:[#allocation2 + $0xc8] sm:$0xff]
    %v3867 = vld [vmem:[#allocation2 + $0xd0] sm:$0xff]
    %v3868 = vld [vmem:[#allocation2 + $0xd8] sm:$0xff]
    %v3869 = vld [vmem:[#allocation2 + $0xe0] sm:$0xff]
    %v3870 = vld [vmem:[#allocation2 + $0xe8] sm:$0xff]
    %v3871 = vld [vmem:[#allocation2 + $0xf0] sm:$0xff]
    %v3872 = vld [vmem:[#allocation2 + $0xf8] sm:$0xff]
    %v3873 = vld [vmem:[#allocation2 + $0x100] sm:$0xff]
    %v3874 = vld [vmem:[#allocation2 + $0x108] sm:$0xff]
    %v3875 = vld [vmem:[#allocation2 + $0x110] sm:$0xff]
    %v3876 = vld [vmem:[#allocation2 + $0x118] sm:$0xff]
    %v3877 = vld [vmem:[#allocation2 + $0x120] sm:$0xff]
    %v3878 = vld [vmem:[#allocation2 + $0x128] sm:$0xff]
    %v3879 = vld [vmem:[#allocation2 + $0x130] sm:$0xff]
    %v3880 = vld [vmem:[#allocation2 + $0x138] sm:$0xff]
    %v3881 = vld [vmem:[#allocation2 + $0x140] sm:$0xff]
    %v3882 = vld [vmem:[#allocation2 + $0x148] sm:$0xff]
    %v3883 = vld [vmem:[#allocation2 + $0x150] sm:$0xff]
    %v3884 = vld [vmem:[#allocation2 + $0x158] sm:$0xff]
    %v3885 = vld [vmem:[#allocation2 + $0x160] sm:$0xff]
    %v3886 = vld [vmem:[#allocation2 + $0x168] sm:$0xff]
    %v3887 = vld [vmem:[#allocation2 + $0x170] sm:$0xff]
    %v3888 = vld [vmem:[#allocation2 + $0x178] sm:$0xff]
    %v3889 = vld [vmem:[#allocation2 + $0x180] sm:$0xff]
    %v3890 = vld [vmem:[#allocation2 + $0x188] sm:$0xff]
    %v3891 = vld [vmem:[#allocation2 + $0x190] sm:$0xff]
    %v3892 = vld [vmem:[#allocation2 + $0x198] sm:$0xff]
    %v3893 = vld [vmem:[#allocation2 + $0x1a0] sm:$0xff]
    %v3894 = vld [vmem:[#allocation2 + $0x1a8] sm:$0xff]
    %v3895 = vld [vmem:[#allocation2 + $0x1b0] sm:$0xff]
    %v3896 = vld [vmem:[#allocation2 + $0x1b8] sm:$0xff]
    %v3897 = vld [vmem:[#allocation2 + $0x1c0] sm:$0xff]
    %v3898 = vld [vmem:[#allocation2 + $0x1c8] sm:$0xff]
    %v3899 = vld [vmem:[#allocation2 + $0x1d0] sm:$0xff]
    %v3900 = vld [vmem:[#allocation2 + $0x1d8] sm:$0xff]
    %v3901 = vld [vmem:[#allocation2 + $0x1e0] sm:$0xff]
    %v3902 = vld [vmem:[#allocation2 + $0x1e8] sm:$0xff]
    %v3903 = vld [vmem:[#allocation2 + $0x1f0] sm:$0xff]
    %v3904 = vld [vmem:[#allocation2 + $0x1f8] sm:$0xff]
    %v3905 = vld [vmem:[#allocation2 + $0x200] sm:$0xff]
    %v3906 = vld [vmem:[#allocation2 + $0x208] sm:$0xff]
    %v3907 = vld [vmem:[#allocation2 + $0x210] sm:$0xff]
    %v3908 = vld [vmem:[#allocation2 + $0x218] sm:$0xff]
    %v3909 = vld [vmem:[#allocation2 + $0x220] sm:$0xff]
    %v3910 = vld [vmem:[#allocation2 + $0x228] sm:$0xff]
    %v3911 = vld [vmem:[#allocation2 + $0x230] sm:$0xff]
    %v3912 = vld [vmem:[#allocation2 + $0x238] sm:$0xff]
    %v3913 = vld [vmem:[#allocation2 + $0x240] sm:$0xff]
    %v3914 = vld [vmem:[#allocation2 + $0x248] sm:$0xff]
    %v3915 = vld [vmem:[#allocation2 + $0x250] sm:$0xff]
    %v3916 = vld [vmem:[#allocation2 + $0x258] sm:$0xff]
    %v3917 = vld [vmem:[#allocation2 + $0x260] sm:$0xff]
    %v3918 = vld [vmem:[#allocation2 + $0x268] sm:$0xff]
    %v3919 = vld [vmem:[#allocation2 + $0x270] sm:$0xff]
    %v3920 = vld [vmem:[#allocation2 + $0x278] sm:$0xff]
    %v3921 = vld [vmem:[#allocation2 + $0x280] sm:$0xff]
    %v3922 = vld [vmem:[#allocation2 + $0x288] sm:$0xff]
    %v3923 = vld [vmem:[#allocation2 + $0x290] sm:$0xff]
    %v3924 = vld [vmem:[#allocation2 + $0x298] sm:$0xff]
    %v3925 = vld [vmem:[#allocation2 + $0x2a0] sm:$0xff]
    %v3926 = vld [vmem:[#allocation2 + $0x2a8] sm:$0xff]
    %v3927 = vld [vmem:[#allocation2 + $0x2b0] sm:$0xff]
    %v3928 = vld [vmem:[#allocation2 + $0x2b8] sm:$0xff]
    %v3929 = vld [vmem:[#allocation2 + $0x2c0] sm:$0xff]
    %v3930 = vld [vmem:[#allocation2 + $0x2c8] sm:$0xff]
    %v3931 = vld [vmem:[#allocation2 + $0x2d0] sm:$0xff]
    %v3932 = vld [vmem:[#allocation2 + $0x2d8] sm:$0xff]
    %v3933 = vld [vmem:[#allocation2 + $0x2e0] sm:$0xff]
    %v3934 = vld [vmem:[#allocation2 + $0x2e8] sm:$0xff]
    %v3935 = vld [vmem:[#allocation2 + $0x2f0] sm:$0xff]
    %v3936 = vld [vmem:[#allocation2 + $0x2f8] sm:$0xff]
    %v3937 = vld [vmem:[#allocation2 + $0x300] sm:$0xff]
    %v3938 = vld [vmem:[#allocation2 + $0x308] sm:$0xff]
    %v3939 = vld [vmem:[#allocation2 + $0x310] sm:$0xff]
    %v3940 = vld [vmem:[#allocation2 + $0x318] sm:$0xff]
    %v3941 = vld [vmem:[#allocation2 + $0x320] sm:$0xff]
    %v3942 = vld [vmem:[#allocation2 + $0x328] sm:$0xff]
    %v3943 = vld [vmem:[#allocation2 + $0x330] sm:$0xff]
    %v3944 = vld [vmem:[#allocation2 + $0x338] sm:$0xff]
    %v3945 = vld [vmem:[#allocation2 + $0x340] sm:$0xff]
    %v3946 = vld [vmem:[#allocation2 + $0x348] sm:$0xff]
    %v3947 = vld [vmem:[#allocation2 + $0x350] sm:$0xff]
    %v3948 = vld [vmem:[#allocation2 + $0x358] sm:$0xff]
    %v3949 = vld [vmem:[#allocation2 + $0x360] sm:$0xff]
    %v3950 = vld [vmem:[#allocation2 + $0x368] sm:$0xff]
    %v3951 = vld [vmem:[#allocation2 + $0x370] sm:$0xff]
    %v3952 = vld [vmem:[#allocation2 + $0x378] sm:$0xff]
    %v3953 = vld [vmem:[#allocation2 + $0x380] sm:$0xff]
    %v3954 = vld [vmem:[#allocation2 + $0x388] sm:$0xff]
    %v3955 = vld [vmem:[#allocation2 + $0x390] sm:$0xff]
    %v3956 = vld [vmem:[#allocation2 + $0x398] sm:$0xff]
    %v3957 = vld [vmem:[#allocation2 + $0x3a0] sm:$0xff]
    %v3958 = vld [vmem:[#allocation2 + $0x3a8] sm:$0xff]
    %v3959 = vld [vmem:[#allocation2 + $0x3b0] sm:$0xff]
    %v3960 = vld [vmem:[#allocation2 + $0x3b8] sm:$0xff]
    %v3961 = vld [vmem:[#allocation2 + $0x3c0] sm:$0xff]
    %v3962 = vld [vmem:[#allocation2 + $0x3c8] sm:$0xff]
    %v3963 = vld [vmem:[#allocation2 + $0x3d0] sm:$0xff]
    %v3964 = vld [vmem:[#allocation2 + $0x3d8] sm:$0xff]
    %v3965 = vld [vmem:[#allocation2 + $0x3e0] sm:$0xff]
    %v3966 = vld [vmem:[#allocation2 + $0x3e8] sm:$0xff]
    %v3967 = vld [vmem:[#allocation2 + $0x3f0] sm:$0xff]
    %v3968 = vld [vmem:[#allocation2 + $0x3f8] sm:$0xff]
    %v3969 = vld [vmem:[#allocation2 + $0x400] sm:$0xff]
    %v3970 = vld [vmem:[#allocation2 + $0x408] sm:$0xff]
    %v3971 = vld [vmem:[#allocation2 + $0x410] sm:$0xff]
    %v3972 = vld [vmem:[#allocation2 + $0x418] sm:$0xff]
    %v3973 = vld [vmem:[#allocation2 + $0x420] sm:$0xff]
    %v3974 = vld [vmem:[#allocation2 + $0x428] sm:$0xff]
    %v3975 = vld [vmem:[#allocation2 + $0x430] sm:$0xff]
    %v3976 = vld [vmem:[#allocation2 + $0x438] sm:$0xff]
    %v3977 = vld [vmem:[#allocation2 + $0x440] sm:$0xff]
    %v3978 = vld [vmem:[#allocation2 + $0x448] sm:$0xff]
    %v3979 = vld [vmem:[#allocation2 + $0x450] sm:$0xff]
    %v3980 = vld [vmem:[#allocation2 + $0x458] sm:$0xff]
    %v3981 = vld [vmem:[#allocation2 + $0x460] sm:$0xff]
    %v3982 = vld [vmem:[#allocation2 + $0x468] sm:$0xff]
    %v3983 = vld [vmem:[#allocation2 + $0x470] sm:$0xff]
    %v3984 = vld [vmem:[#allocation2 + $0x478] sm:$0xff]
    %v3985 = vld [vmem:[%s8] sm:$0x77]
    %v3986 = vld [vmem:[%s8 + $0x8] sm:$0x7]
    %v3987 = vld [vmem:[%s9] sm:$0x7]
    %3989 = vset.pattern.permute.xlu0 0
    %3990 = vperm.xlu0 %3989, %v3987
    %v3991 = vpop.permute.xlu0 %3990
    %v3995 = vcombine.high %v3985, %v3985
    %v3997 = vsel %vm1724, %v3986, 0
    %3999 = vmatprep.subr.mxu0 %v3902
    %4000 = vmatpush1.msra.mxu0 %v3901
    %4001 = vmatprep.subr.mxu0 %v3898
    %4002 = vmatpush1.msra.mxu0 %v3897
    %4003 = vmatprep.subr.mxu0 %v3894
    %4004 = vmatpush1.msra.mxu0 %v3893
    %4005 = vmatprep.subr.mxu0 %v3890
    %4006 = vmatpush1.msra.mxu0 %v3889
    %4007 = vmatprep.subr.mxu0 %v3886
    %4008 = vmatpush1.msra.mxu0 %v3885
    %4009 = vmatprep.subr.mxu0 %v3882
    %4010 = vmatpush1.msra.mxu0 %v3881
    %4011 = vmatprep.subr.mxu0 %v3878
    %4012 = vmatpush1.msra.mxu0 %v3877
    %4013 = vmatprep.subr.mxu0 %v3874
    %4014 = vmatpush1.msra.mxu0 %v3873
    %4015 = vmatprep.subr.mxu0 %v3870
    %4016 = vmatpush1.msra.mxu0 %v3869
    %4017 = vmatprep.subr.mxu0 %v3866
    %4018 = vmatpush1.msra.mxu0 %v3865
    %4019 = vmatprep.subr.mxu0 %v3862
    %4020 = vmatpush1.msra.mxu0 %v3861
    %4021 = vmatprep.subr.mxu0 %v3858
    %4022 = vmatpush1.msra.mxu0 %v3857
    %4023 = vmatprep.subr.mxu0 %v3854
    %4024 = vmatpush1.msra.mxu0 %v3853
    %4025 = vmatprep.subr.mxu0 %v3850
    %4026 = vmatpush1.msra.mxu0 %v3849
    %4027 = vmatprep.subr.mxu0 %v3846
    %4028 = vmatpush1.msra.mxu0 %v3845
    %4029 = vmatprep.subr.mxu0 %v3842
    %4030 = vmatpush1.msra.mxu0 %v3841
    %4031 = vmatprep.subr.mxu0 %v3966
    %4032 = vmatpush2.msra.mxu0 %v3965
    %4033 = vmatprep.subr.mxu0 %v3962
    %4034 = vmatpush2.msra.mxu0 %v3961
    %4035 = vmatprep.subr.mxu0 %v3958
    %4036 = vmatpush2.msra.mxu0 %v3957
    %4037 = vmatprep.subr.mxu0 %v3954
    %4038 = vmatpush2.msra.mxu0 %v3953
    %4039 = vmatprep.subr.mxu0 %v3950
    %4040 = vmatpush2.msra.mxu0 %v3949
    %4041 = vmatprep.subr.mxu0 %v3946
    %4042 = vmatpush2.msra.mxu0 %v3945
    %4043 = vmatprep.subr.mxu0 %v3942
    %4044 = vmatpush2.msra.mxu0 %v3941
    %4045 = vmatprep.subr.mxu0 %v3938
    %4046 = vmatpush2.msra.mxu0 %v3937
    %4047 = vmatprep.subr.mxu0 %v3934
    %4048 = vmatpush2.msra.mxu0 %v3933
    %4049 = vmatprep.subr.mxu0 %v3930
    %4050 = vmatpush2.msra.mxu0 %v3929
    %4051 = vmatprep.subr.mxu0 %v3926
    %4052 = vmatpush2.msra.mxu0 %v3925
    %4053 = vmatprep.subr.mxu0 %v3922
    %4054 = vmatpush2.msra.mxu0 %v3921
    %4055 = vmatprep.subr.mxu0 %v3918
    %4056 = vmatpush2.msra.mxu0 %v3917
    %4057 = vmatprep.subr.mxu0 %v3914
    %4058 = vmatpush2.msra.mxu0 %v3913
    %4059 = vmatprep.subr.mxu0 %v3910
    %4060 = vmatpush2.msra.mxu0 %v3909
    %4061 = vmatprep.subr.mxu0 %v3906
    %4062 = vmatpush2.msra.mxu0 %v3905
    %4063 = vmatprep.mubr.f32.mxu0 %v3995
    %4064 = vmatmul.mubr.f32.gmra.mxu0 %v3985
    %v4065 = vpop.f32.mrf.mxu0
    %v4066 = vadd.f32 %v3991, %v4065
    %v4067 = vpop.f32.mrf.mxu0
    %v4068 = vadd.f32 %v3991, %v4067
    %4069 = vdwg.mxu0
    %4070 = vmatprep.subr.mxu0 0.0
    %4071 = vmatpush1.msra.mxu0 0.0
    %4072 = vmatprep.subr.mxu0 0.0
    %4073 = vmatpush1.msra.mxu0 0.0
    %4074 = vmatprep.subr.mxu0 0.0
    %4075 = vmatpush1.msra.mxu0 0.0
    %4076 = vmatprep.subr.mxu0 0.0
    %4077 = vmatpush1.msra.mxu0 0.0
    %4078 = vmatprep.subr.mxu0 0.0
    %4079 = vmatpush1.msra.mxu0 0.0
    %4080 = vmatprep.subr.mxu0 0.0
    %4081 = vmatpush1.msra.mxu0 0.0
    %4082 = vmatprep.subr.mxu0 0.0
    %4083 = vmatpush1.msra.mxu0 0.0
    %4084 = vmatprep.subr.mxu0 0.0
    %4085 = vmatpush1.msra.mxu0 0.0
    %4086 = vmatprep.subr.mxu0 0.0
    %4087 = vmatpush1.msra.mxu0 0.0
    %4088 = vmatprep.subr.mxu0 0.0
    %4089 = vmatpush1.msra.mxu0 0.0
    %4090 = vmatprep.subr.mxu0 0.0
    %4091 = vmatpush1.msra.mxu0 0.0
    %4092 = vmatprep.subr.mxu0 0.0
    %4093 = vmatpush1.msra.mxu0 0.0
    %4094 = vmatprep.subr.mxu0 %v3982
    %4095 = vmatpush1.msra.mxu0 %v3981
    %4096 = vmatprep.subr.mxu0 %v3978
    %4097 = vmatpush1.msra.mxu0 %v3977
    %4098 = vmatprep.subr.mxu0 %v3974
    %4099 = vmatpush1.msra.mxu0 %v3973
    %4100 = vmatprep.subr.mxu0 %v3970
    %4101 = vmatpush1.msra.mxu0 %v3969
    %4102 = vmatprep.subr.mxu0 0.0
    %4103 = vmatpush2.msra.mxu0 0.0
    %4104 = vmatprep.subr.mxu0 0.0
    %4105 = vmatpush2.msra.mxu0 0.0
    %4106 = vmatprep.subr.mxu0 0.0
    %4107 = vmatpush2.msra.mxu0 0.0
    %4108 = vmatprep.subr.mxu0 0.0
    %4109 = vmatpush2.msra.mxu0 0.0
    %4110 = vmatprep.subr.mxu0 0.0
    %4111 = vmatpush2.msra.mxu0 0.0
    %4112 = vmatprep.subr.mxu0 0.0
    %4113 = vmatpush2.msra.mxu0 0.0
    %4114 = vmatprep.subr.mxu0 0.0
    %4115 = vmatpush2.msra.mxu0 0.0
    %4116 = vmatprep.subr.mxu0 0.0
    %4117 = vmatpush2.msra.mxu0 0.0
    %4118 = vmatprep.subr.mxu0 0.0
    %4119 = vmatpush2.msra.mxu0 0.0
    %4120 = vmatprep.subr.mxu0 0.0
    %4121 = vmatpush2.msra.mxu0 0.0
    %4122 = vmatprep.subr.mxu0 0.0
    %4123 = vmatpush2.msra.mxu0 0.0
    %4124 = vmatprep.subr.mxu0 0.0
    %4125 = vmatpush2.msra.mxu0 0.0
    %4126 = vmatprep.subr.mxu0 0.0
    %4127 = vmatpush2.msra.mxu0 0.0
    %4128 = vmatprep.subr.mxu0 0.0
    %4129 = vmatpush2.msra.mxu0 0.0
    %4130 = vmatprep.subr.mxu0 0.0
    %4131 = vmatpush2.msra.mxu0 0.0
    %4132 = vmatprep.subr.mxu0 0.0
    %4133 = vmatpush2.msra.mxu0 0.0
    %4134 = vmatprep.mubr.f32.mxu0 0.0
    %4135 = vmatmul.mubr.f32.gmra.mxu0 %v3997
    %v4136 = vpop.f32.mrf.mxu0
    %v4137 = vadd.f32 %v4066, %v4136
    %v4138 = vpop.f32.mrf.mxu0
    %v4139 = vadd.f32 %v4068, %v4138
    %4140 = vdwg.mxu0
    %4141 = vmatprep.subr.mxu0 %v3904
    %4142 = vmatpush1.msra.mxu0 %v3903
    %4143 = vmatprep.subr.mxu0 %v3900
    %4144 = vmatpush1.msra.mxu0 %v3899
    %4145 = vmatprep.subr.mxu0 %v3896
    %4146 = vmatpush1.msra.mxu0 %v3895
    %4147 = vmatprep.subr.mxu0 %v3892
    %4148 = vmatpush1.msra.mxu0 %v3891
    %4149 = vmatprep.subr.mxu0 %v3888
    %4150 = vmatpush1.msra.mxu0 %v3887
    %4151 = vmatprep.subr.mxu0 %v3884
    %4152 = vmatpush1.msra.mxu0 %v3883
    %4153 = vmatprep.subr.mxu0 %v3880
    %4154 = vmatpush1.msra.mxu0 %v3879
    %4155 = vmatprep.subr.mxu0 %v3876
    %4156 = vmatpush1.msra.mxu0 %v3875
    %4157 = vmatprep.subr.mxu0 %v3872
    %4158 = vmatpush1.msra.mxu0 %v3871
    %4159 = vmatprep.subr.mxu0 %v3868
    %4160 = vmatpush1.msra.mxu0 %v3867
    %4161 = vmatprep.subr.mxu0 %v3864
    %4162 = vmatpush1.msra.mxu0 %v3863
    %4163 = vmatprep.subr.mxu0 %v3860
    %4164 = vmatpush1.msra.mxu0 %v3859
    %4165 = vmatprep.subr.mxu0 %v3856
    %4166 = vmatpush1.msra.mxu0 %v3855
    %4167 = vmatprep.subr.mxu0 %v3852
    %4168 = vmatpush1.msra.mxu0 %v3851
    %4169 = vmatprep.subr.mxu0 %v3848
    %4170 = vmatpush1.msra.mxu0 %v3847
    %4171 = vmatprep.subr.mxu0 %v3844
    %4172 = vmatpush1.msra.mxu0 %v3843
    %4173 = vmatprep.subr.mxu0 %v3968
    %4174 = vmatpush2.msra.mxu0 %v3967
    %4175 = vmatprep.subr.mxu0 %v3964
    %4176 = vmatpush2.msra.mxu0 %v3963
    %4177 = vmatprep.subr.mxu0 %v3960
    %4178 = vmatpush2.msra.mxu0 %v3959
    %4179 = vmatprep.subr.mxu0 %v3956
    %4180 = vmatpush2.msra.mxu0 %v3955
    %4181 = vmatprep.subr.mxu0 %v3952
    %4182 = vmatpush2.msra.mxu0 %v3951
    %4183 = vmatprep.subr.mxu0 %v3948
    %4184 = vmatpush2.msra.mxu0 %v3947
    %4185 = vmatprep.subr.mxu0 %v3944
    %4186 = vmatpush2.msra.mxu0 %v3943
    %4187 = vmatprep.subr.mxu0 %v3940
    %4188 = vmatpush2.msra.mxu0 %v3939
    %4189 = vmatprep.subr.mxu0 %v3936
    %4190 = vmatpush2.msra.mxu0 %v3935
    %4191 = vmatprep.subr.mxu0 %v3932
    %4192 = vmatpush2.msra.mxu0 %v3931
    %4193 = vmatprep.subr.mxu0 %v3928
    %4194 = vmatpush2.msra.mxu0 %v3927
    %4195 = vmatprep.subr.mxu0 %v3924
    %4196 = vmatpush2.msra.mxu0 %v3923
    %4197 = vmatprep.subr.mxu0 %v3920
    %4198 = vmatpush2.msra.mxu0 %v3919
    %4199 = vmatprep.subr.mxu0 %v3916
    %4200 = vmatpush2.msra.mxu0 %v3915
    %4201 = vmatprep.subr.mxu0 %v3912
    %4202 = vmatpush2.msra.mxu0 %v3911
    %4203 = vmatprep.subr.mxu0 %v3908
    %4204 = vmatpush2.msra.mxu0 %v3907
    %4205 = vmatprep.mubr.f32.mxu0 %v3995
    %4206 = vmatmul.mubr.f32.gmra.mxu0 %v3985
    %v4207 = vpop.f32.mrf.mxu0
    %v4208 = vadd.f32 %v3991, %v4207
    %v4209 = vpop.f32.mrf.mxu0
    %v4210 = vadd.f32 %v3991, %v4209
    %4211 = vdwg.mxu0
    %4212 = vmatprep.subr.mxu0 0.0
    %4213 = vmatpush1.msra.mxu0 0.0
    %4214 = vmatprep.subr.mxu0 0.0
    %4215 = vmatpush1.msra.mxu0 0.0
    %4216 = vmatprep.subr.mxu0 0.0
    %4217 = vmatpush1.msra.mxu0 0.0
    %4218 = vmatprep.subr.mxu0 0.0
    %4219 = vmatpush1.msra.mxu0 0.0
    %4220 = vmatprep.subr.mxu0 0.0
    %4221 = vmatpush1.msra.mxu0 0.0
    %4222 = vmatprep.subr.mxu0 0.0
    %4223 = vmatpush1.msra.mxu0 0.0
    %4224 = vmatprep.subr.mxu0 0.0
    %4225 = vmatpush1.msra.mxu0 0.0
    %4226 = vmatprep.subr.mxu0 0.0
    %4227 = vmatpush1.msra.mxu0 0.0
    %4228 = vmatprep.subr.mxu0 0.0
    %4229 = vmatpush1.msra.mxu0 0.0
    %4230 = vmatprep.subr.mxu0 0.0
    %4231 = vmatpush1.msra.mxu0 0.0
    %4232 = vmatprep.subr.mxu0 0.0
    %4233 = vmatpush1.msra.mxu0 0.0
    %4234 = vmatprep.subr.mxu0 0.0
    %4235 = vmatpush1.msra.mxu0 0.0
    %4236 = vmatprep.subr.mxu0 %v3984
    %4237 = vmatpush1.msra.mxu0 %v3983
    %4238 = vmatprep.subr.mxu0 %v3980
    %4239 = vmatpush1.msra.mxu0 %v3979
    %4240 = vmatprep.subr.mxu0 %v3976
    %4241 = vmatpush1.msra.mxu0 %v3975
    %4242 = vmatprep.subr.mxu0 %v3972
    %4243 = vmatpush1.msra.mxu0 %v3971
    %4244 = vmatprep.subr.mxu0 0.0
    %4245 = vmatpush2.msra.mxu0 0.0
    %4246 = vmatprep.subr.mxu0 0.0
    %4247 = vmatpush2.msra.mxu0 0.0
    %4248 = vmatprep.subr.mxu0 0.0
    %4249 = vmatpush2.msra.mxu0 0.0
    %4250 = vmatprep.subr.mxu0 0.0
    %4251 = vmatpush2.msra.mxu0 0.0
    %4252 = vmatprep.subr.mxu0 0.0
    %4253 = vmatpush2.msra.mxu0 0.0
    %4254 = vmatprep.subr.mxu0 0.0
    %4255 = vmatpush2.msra.mxu0 0.0
    %4256 = vmatprep.subr.mxu0 0.0
    %4257 = vmatpush2.msra.mxu0 0.0
    %4258 = vmatprep.subr.mxu0 0.0
    %4259 = vmatpush2.msra.mxu0 0.0
    %4260 = vmatprep.subr.mxu0 0.0
    %4261 = vmatpush2.msra.mxu0 0.0
    %4262 = vmatprep.subr.mxu0 0.0
    %4263 = vmatpush2.msra.mxu0 0.0
    %4264 = vmatprep.subr.mxu0 0.0
    %4265 = vmatpush2.msra.mxu0 0.0
    %4266 = vmatprep.subr.mxu0 0.0
    %4267 = vmatpush2.msra.mxu0 0.0
    %4268 = vmatprep.subr.mxu0 0.0
    %4269 = vmatpush2.msra.mxu0 0.0
    %4270 = vmatprep.subr.mxu0 0.0
    %4271 = vmatpush2.msra.mxu0 0.0
    %4272 = vmatprep.subr.mxu0 0.0
    %4273 = vmatpush2.msra.mxu0 0.0
    %4274 = vmatprep.subr.mxu0 0.0
    %4275 = vmatpush2.msra.mxu0 0.0
    %4276 = vmatprep.mubr.f32.mxu0 0.0
    %4277 = vmatmul.mubr.f32.gmra.mxu0 %v3997
    %v4278 = vpop.f32.mrf.mxu0
    %v4279 = vadd.f32 %v4208, %v4278
    %v4280 = vpop.f32.mrf.mxu0
    %v4281 = vadd.f32 %v4210, %v4280
    %4282 = vdwg.mxu0
    %v4287 = vcombine.low %v4137, %v4139
    %v4288 = vcombine.low %v4279, %v4281
    %4291 = vst [vmem:[#allocation3] sm:$0x77] %v4287
    %4292 = vst [vmem:[#allocation3 + $0x8] sm:$0x77] %v4288
    // Predicated region
    $region42: #{tpu_custom_call.1} parent=1 // pred_check
      _
    $region43: #{tpu_custom_call.1} parent=1 // pred_check_branch
      %4294 = sbr.rel (0) target = $region45
    $region44: #{tpu_custom_call.1} parent=1 // pred_region
      %s4296 = ssub.s32 256, 256
      %4297 = vsyncadd [#allocation4], %s4296
      %s4299 = sshll.u32 [#allocation3], 4
      %s4300 = int_to_ptr.vmem [resolvable:$true] %s4299
      %4302 = dma.vmem_to_hbm [thread:$0]  %s4300, 256, %s10, [#allocation4]
    $region45: #{tpu_custom_call.1} parent=1 // pred_fallthru
      _
    // Predicated region
    $region46: #{tpu_custom_call.1} parent=1 // pred_check
      _
    $region47: #{tpu_custom_call.1} parent=1 // pred_check_branch
      %4304 = sbr.rel (0) target = $region49
    $region48: #{tpu_custom_call.1} parent=1 // pred_region
      %4305 = dma.done [#allocation4], 256
    $region49: #{tpu_custom_call.1} parent=1 // pred_fallthru
      _
    %4306 = vsyncpa [#allocation4], 1

</llo_original>
